<compile_context>
chip_gen: v7x
topology: tpu7x:2x2x1
jax: 0.10.0
libtpu: 0.0.40
codegen_flags: <defaults>
</compile_context>

<pallas_src>
import jax
import jax.numpy as jnp
from jax import lax
from jax.experimental import pallas as pl
from jax.experimental.pallas import tpu as pltpu

# Channel sizes fixed by the module.
C_IN = 128
C_B1 = 43      # branch1x1
C_B2 = 43      # branch1x1_2 (on max-pooled x)
C_RED = 24     # branch3x3_reduce
C_B3 = 42      # branch3x3
C_OUT = C_B1 + C_B2 + C_B3          # 128  (lane-dense output)


# ------------------------------ fused kernel --------------------------------

def _inception_kernel(x_ref, wb1_ref, sb1_ref, cb1_ref,
                      wb2_ref, sb2_ref, cb2_ref,
                      wr_ref, sr_ref, cr_ref,
                      w3_ref, s3_ref, c3_ref,
                      o_ref, hpad_ref, rpad_ref):
    # x_ref   : (1, H, W, 128)  NHWC activations for one batch element (f32)
    # wb1/wb2 : (128, 43) bf16  1x1 weights (in, out) for b1 (on x) / b2 (on pool)
    # wr      : (128, 24) bf16  1x1 reduce weights
    # w3      : (9, 24, 42) bf16  3x3 weights, leading index k = ky*3 + kx
    # s*/c*   : (1, Cb) f32     folded BN scale / bias per branch
    # o_ref   : (1, H, W, 128)  concat([b1, b2, b3], channel)
    # hpad_ref: (H+2, W, 128)   f32 scratch, H halo (-inf) for the max pool
    # rpad_ref: (H+2, W, 24)    f32 scratch, H halo (0) for the 3x3 conv
    H, W = o_ref.shape[1], o_ref.shape[2]
    HW = H * W
    f32 = jnp.float32
    bf16 = jnp.bfloat16

    x = x_ref[0].reshape(HW, C_IN)                                 # (HW, 128)

    # Column-index masks at full lane width (no mod, no mask broadcasts).
    wq = lax.broadcasted_iota(jnp.int32, (H, W, C_IN), 1).reshape(HW, C_IN)
    at_w0 = wq == 0                    # output column w == 0
    at_wl = wq == W - 1                # output column w == W-1

    # ---- 3x3 max pool, stride 1, pad 1 ----
    # Horizontal 3-tap max: XLU rolls on the flattened view + edge masks.
    # (Row-boundary wrap of the roll lands only on masked positions.)
    left = jnp.where(at_w0, -jnp.inf, pltpu.roll(x, 1, axis=0))        # x[.., w-1]
    right = jnp.where(at_wl, -jnp.inf, pltpu.roll(x, HW - 1, axis=0))  # x[.., w+1]
    hx = jnp.maximum(x, jnp.maximum(left, right))                      # (HW, 128)

    # Vertical 3-tap max through an H-halo scratch (leading-dim slices only;
    # only the two halo rows are filled, every step -> megacore-safe).
    hpad_ref[0:1, :, :] = jnp.full((1, W, C_IN), -jnp.inf, f32)
    hpad_ref[H + 1:H + 2, :, :] = jnp.full((1, W, C_IN), -jnp.inf, f32)
    hpad_ref[1:H + 1, :, :] = hx.reshape(H, W, C_IN)
    up = hpad_ref[0:H, :, :].reshape(HW, C_IN)                         # hx[h-1]
    dn = hpad_ref[2:H + 2, :, :].reshape(HW, C_IN)                     # hx[h+1]
    pooled = jnp.maximum(hx, jnp.maximum(up, dn))                      # (HW, 128)

    # ---- the three 1x1 convs (+ folded BN + relu): three lane-aligned dots ----
    xb = x.astype(bf16)
    pb = pooled.astype(bf16)
    b1 = jnp.dot(xb, wb1_ref[...], preferred_element_type=f32)         # (HW, 43)
    b1 = jnp.maximum(b1 * sb1_ref[...] + cb1_ref[...], 0.0)
    b2 = jnp.dot(pb, wb2_ref[...], preferred_element_type=f32)         # (HW, 43)
    b2 = jnp.maximum(b2 * sb2_ref[...] + cb2_ref[...], 0.0)
    red = jnp.dot(xb, wr_ref[...], preferred_element_type=f32)         # (HW, 24)
    red = jnp.maximum(red * sr_ref[...] + cr_ref[...], 0.0)

    # ---- 3x3 conv on the reduce branch: 9 accumulated lane-aligned dots ----
    wq24 = lax.broadcasted_iota(jnp.int32, (H, W, C_RED), 1).reshape(HW, C_RED)
    r_w0 = wq24 == 0
    r_wl = wq24 == W - 1

    rpad_ref[0:1, :, :] = jnp.zeros((1, W, C_RED), f32)
    rpad_ref[H + 1:H + 2, :, :] = jnp.zeros((1, W, C_RED), f32)
    rpad_ref[1:H + 1, :, :] = red.reshape(H, W, C_RED)

    acc = jnp.zeros((HW, C_B3), f32)
    for ky in range(3):
        v = rpad_ref[ky:ky + H, :, :].reshape(HW, C_RED)      # red[h+ky-1, :, :]
        taps = (
            jnp.where(r_w0, 0.0, pltpu.roll(v, 1, axis=0)),       # kx=0: [.., w-1]
            v,                                                    # kx=1
            jnp.where(r_wl, 0.0, pltpu.roll(v, HW - 1, axis=0)),  # kx=2: [.., w+1]
        )
        for kx in range(3):
            acc = acc + jnp.dot(taps[kx].astype(bf16), w3_ref[ky * 3 + kx],
                                preferred_element_type=f32)
    b3 = jnp.maximum(acc * s3_ref[...] + c3_ref[...], 0.0)            # (HW, 42)

    # ---- lane-dense 128-channel output: [b1 | b2 | b3] ----
    out = jnp.concatenate([b1, b2, b3], axis=1)                       # (HW, 128)
    o_ref[0] = out.reshape(H, W, C_OUT).astype(o_ref.dtype)


def inception_pallas(x_nhwc, p):
    N, H, W, C = x_nhwc.shape
    assert C == C_IN
    full2 = lambda n: (0, 0)
    full3 = lambda n: (0, 0, 0)
    return pl.pallas_call(
        _inception_kernel,
        out_shape=jax.ShapeDtypeStruct((N, H, W, C_OUT), x_nhwc.dtype),
        grid=(N,),
        in_specs=[
            pl.BlockSpec((1, H, W, C_IN), lambda n: (n, 0, 0, 0)),
            pl.BlockSpec((C_IN, C_B1), full2),      # wb1 (bf16)
            pl.BlockSpec((1, C_B1), full2),         # sb1
            pl.BlockSpec((1, C_B1), full2),         # cb1
            pl.BlockSpec((C_IN, C_B2), full2),      # wb2 (bf16)
            pl.BlockSpec((1, C_B2), full2),         # sb2
            pl.BlockSpec((1, C_B2), full2),         # cb2
            pl.BlockSpec((C_IN, C_RED), full2),     # wr (bf16)
            pl.BlockSpec((1, C_RED), full2),        # sr
            pl.BlockSpec((1, C_RED), full2),        # cr
            pl.BlockSpec((9, C_RED, C_B3), full3),  # w3 (bf16)
            pl.BlockSpec((1, C_B3), full2),         # s3
            pl.BlockSpec((1, C_B3), full2),         # c3
        ],
        out_specs=pl.BlockSpec((1, H, W, C_OUT), lambda n: (n, 0, 0, 0)),
        scratch_shapes=[
            pltpu.VMEM((H + 2, W, C_IN), jnp.float32),   # pool H-halo (hx)
            pltpu.VMEM((H + 2, W, C_RED), jnp.float32),  # conv H-halo (red)
        ],
        compiler_params=pltpu.CompilerParams(dimension_semantics=("parallel",)),
    )(x_nhwc, p['wb1'], p['sb1'], p['cb1'],
      p['wb2'], p['sb2'], p['cb2'],
      p['wr'], p['sr'], p['cr'],
      p['w3'], p['s3'], p['c3'])


# ------------------------------- parameters ---------------------------------

def _fold_bn(gamma, beta, mean, var, eps=1e-5):
    scale = gamma / jnp.sqrt(var + eps)
    bias = beta - mean * scale
    return scale, bias


def init_params(key):
    ks = jax.random.split(key, 8)

    def conv_w(k, cout, cin, kh, kw):
        fan_in = cin * kh * kw
        return jax.random.normal(k, (cout, cin, kh, kw), jnp.float32) * (2.0 / fan_in) ** 0.5

    def bn(k, c):
        k1, k2, k3, k4 = jax.random.split(k, 4)
        gamma = 1.0 + 0.1 * jax.random.normal(k1, (c,), jnp.float32)
        beta = 0.1 * jax.random.normal(k2, (c,), jnp.float32)
        mean = 0.1 * jax.random.normal(k3, (c,), jnp.float32)
        var = jax.random.uniform(k4, (c,), jnp.float32, minval=0.5, maxval=1.5)
        return _fold_bn(gamma, beta, mean, var)

    # Raw (torch-layout) weights.
    w_b1 = conv_w(ks[0], C_B1, C_IN, 1, 1)[:, :, 0, 0]          # (43, 128)
    s_b1, b_b1 = bn(ks[1], C_B1)
    w_b2 = conv_w(ks[2], C_B2, C_IN, 1, 1)[:, :, 0, 0]          # (43, 128)
    s_b2, b_b2 = bn(ks[3], C_B2)
    w_r = conv_w(ks[4], C_RED, C_IN, 1, 1)[:, :, 0, 0]          # (24, 128)
    s_r, b_r = bn(ks[5], C_RED)
    w_c3 = conv_w(ks[6], C_B3, C_RED, 3, 3)                     # (42, 24, 3, 3)
    s_c3, b_c3 = bn(ks[7], C_B3)

    bf16 = jnp.bfloat16
    kernel = dict(
        wb1=w_b1.T.astype(bf16), sb1=s_b1[None, :], cb1=b_b1[None, :],
        wb2=w_b2.T.astype(bf16), sb2=s_b2[None, :], cb2=b_b2[None, :],
        wr=w_r.T.astype(bf16),   sr=s_r[None, :],   cr=b_r[None, :],
        # (ky, kx, cin, cout) stacked as (9, 24, 42), k = ky*3 + kx
        w3=jnp.transpose(w_c3, (2, 3, 1, 0)).reshape(9, C_RED, C_B3).astype(bf16),
        s3=s_c3[None, :], c3=b_c3[None, :],
    )
    ref = dict(w_b1=w_b1, s_b1=s_b1, b_b1=b_b1,
               w_b2=w_b2, s_b2=s_b2, b_b2=b_b2,
               w_r=w_r, s_r=s_r, b_r=b_r,
               w_c3=w_c3, s_c3=s_c3, b_c3=b_c3)
    return dict(kernel=kernel, ref=ref)


# -------------------------------- forward -----------------------------------

@jax.jit
def inception_forward(x_nchw, params):
    x = jnp.transpose(x_nchw, (0, 2, 3, 1))          # NCHW -> NHWC (C on lanes)
    out = inception_pallas(x, params['kernel'])
    return jnp.transpose(out, (0, 3, 1, 2))          # back to NCHW


# ------------------------------- reference ----------------------------------

def inception_reference(x_nchw, p):
    HP = lax.Precision.HIGHEST
    x = jnp.transpose(x_nchw, (0, 2, 3, 1))

    def bnrelu(y, s, b):
        return jnp.maximum(y * s.reshape(1, 1, 1, -1) + b.reshape(1, 1, 1, -1), 0.0)

    b1 = bnrelu(jnp.einsum('nhwc,dc->nhwd', x, p['w_b1'], precision=HP),
                p['s_b1'], p['b_b1'])
    pooled = lax.reduce_window(x, -jnp.inf, lax.max,
                               (1, 3, 3, 1), (1, 1, 1, 1), 'SAME')
    b2 = bnrelu(jnp.einsum('nhwc,dc->nhwd', pooled, p['w_b2'], precision=HP),
                p['s_b2'], p['b_b2'])
    red = bnrelu(jnp.einsum('nhwc,dc->nhwd', x, p['w_r'], precision=HP),
                 p['s_r'], p['b_r'])
    w_hwio = jnp.transpose(p['w_c3'], (2, 3, 1, 0))
    c3 = lax.conv_general_dilated(red, w_hwio, (1, 1), 'SAME',
                                  dimension_numbers=('NHWC', 'HWIO', 'NHWC'),
                                  precision=HP)
    b3 = bnrelu(c3, p['s_c3'], p['b_c3'])
    out = jnp.concatenate([b1, b2, b3], axis=-1)
    return jnp.transpose(out, (0, 3, 1, 2))


# ---------------------------------- main -------------------------------------

if __name__ == "__main__":
    key = jax.random.PRNGKey(0)
    kx, kp = jax.random.split(key)
    # PyTorch-style NCHW input; in_channels fixed at 128 by the module.
    x = jax.random.normal(kx, (2, 128, 16, 16), jnp.float32)
    params = init_params(kp)

    out = inception_forward(x, params)
    out = jax.block_until_ready(out)
    assert out.shape == (2, 128, 16, 16), out.shape

    ref = inception_reference(x, params['ref'])
    max_err = float(jnp.max(jnp.abs(out - ref)))
    assert jnp.allclose(out, ref, rtol=2e-2, atol=2e-2), max_err

    print("KERNEL_OK")
</pallas_src>

<mosaic_0001>
module attributes {stable_mosaic.version = 11 : i64} {
  func.func @_inception_kernel(%arg0: i32, %arg1: memref<1x16x16x128xf32, #tpu.memory_space<vmem>>, %arg2: memref<128x43xbf16, #tpu.memory_space<vmem>>, %arg3: memref<1x43xf32, #tpu.memory_space<vmem>>, %arg4: memref<1x43xf32, #tpu.memory_space<vmem>>, %arg5: memref<128x43xbf16, #tpu.memory_space<vmem>>, %arg6: memref<1x43xf32, #tpu.memory_space<vmem>>, %arg7: memref<1x43xf32, #tpu.memory_space<vmem>>, %arg8: memref<128x24xbf16, #tpu.memory_space<vmem>>, %arg9: memref<1x24xf32, #tpu.memory_space<vmem>>, %arg10: memref<1x24xf32, #tpu.memory_space<vmem>>, %arg11: memref<9x24x42xbf16, #tpu.memory_space<vmem>>, %arg12: memref<1x42xf32, #tpu.memory_space<vmem>>, %arg13: memref<1x42xf32, #tpu.memory_space<vmem>>, %arg14: memref<1x16x16x128xf32, #tpu.memory_space<vmem>>, %arg15: memref<18x16x128xf32, #tpu.memory_space<vmem>>, %arg16: memref<18x16x24xf32, #tpu.memory_space<vmem>>) attributes {dimension_semantics = [#tpu.dimension_semantics<parallel>], iteration_bounds = array<i64: 2>, scalar_prefetch = 0 : i64, scratch_operands = 2 : i64, tpu.core_type = #tpu.core_type<tc>, window_params = [{transform_indices = @transform_0, window_bounds = array<i64: 1, 16, 16, 128>}, {pipeline_mode = #tpu.pipeline_mode<synchronous>, transform_indices = @transform_1, window_bounds = array<i64: 128, 43>}, {pipeline_mode = #tpu.pipeline_mode<synchronous>, transform_indices = @transform_2, window_bounds = array<i64: 1, 43>}, {pipeline_mode = #tpu.pipeline_mode<synchronous>, transform_indices = @transform_3, window_bounds = array<i64: 1, 43>}, {pipeline_mode = #tpu.pipeline_mode<synchronous>, transform_indices = @transform_4, window_bounds = array<i64: 128, 43>}, {pipeline_mode = #tpu.pipeline_mode<synchronous>, transform_indices = @transform_5, window_bounds = array<i64: 1, 43>}, {pipeline_mode = #tpu.pipeline_mode<synchronous>, transform_indices = @transform_6, window_bounds = array<i64: 1, 43>}, {pipeline_mode = #tpu.pipeline_mode<synchronous>, transform_indices = @transform_7, window_bounds = array<i64: 128, 24>}, {pipeline_mode = #tpu.pipeline_mode<synchronous>, transform_indices = @transform_8, window_bounds = array<i64: 1, 24>}, {pipeline_mode = #tpu.pipeline_mode<synchronous>, transform_indices = @transform_9, window_bounds = array<i64: 1, 24>}, {pipeline_mode = #tpu.pipeline_mode<synchronous>, transform_indices = @transform_10, window_bounds = array<i64: 9, 24, 42>}, {pipeline_mode = #tpu.pipeline_mode<synchronous>, transform_indices = @transform_11, window_bounds = array<i64: 1, 42>}, {pipeline_mode = #tpu.pipeline_mode<synchronous>, transform_indices = @transform_12, window_bounds = array<i64: 1, 42>}, {transform_indices = @transform_13, window_bounds = array<i64: 1, 16, 16, 128>}]} {
    %c0 = arith.constant 0 : index
    %c0_0 = arith.constant 0 : index
    %c0_1 = arith.constant 0 : index
    %c0_2 = arith.constant 0 : index
    %0 = vector.load %arg1[%c0, %c0_0, %c0_1, %c0_2] : memref<1x16x16x128xf32, #tpu.memory_space<vmem>>, vector<1x16x16x128xf32>
    %1 = vector.shape_cast %0 : vector<1x16x16x128xf32> to vector<16x16x128xf32>
    %2 = vector.shape_cast %1 : vector<16x16x128xf32> to vector<256x128xf32>
    %3 = tpu.iota {dimensions = array<i32: 1>} : vector<16x16x128xi32>
    %4 = vector.shape_cast %3 : vector<16x16x128xi32> to vector<256x128xi32>
    %c0_i32 = arith.constant 0 : i32
    %5 = vector.broadcast %c0_i32 : i32 to vector<256x128xi32>
    %6 = arith.cmpi eq, %4, %5 : vector<256x128xi32>
    %c15_i32 = arith.constant 15 : i32
    %7 = vector.broadcast %c15_i32 : i32 to vector<256x128xi32>
    %8 = arith.cmpi eq, %4, %7 : vector<256x128xi32>
    %c1_i32 = arith.constant 1 : i32
    %9 = tpu.dynamic_rotate %2 by %c1_i32 dim 0 : vector<256x128xf32>, i32 -> vector<256x128xf32>
    %cst = arith.constant 0xFF800000 : f32
    %10 = vector.broadcast %cst : f32 to vector<256x128xf32>
    %11 = arith.select %6, %10, %9 : vector<256x128xi1>, vector<256x128xf32>
    %c255_i32 = arith.constant 255 : i32
    %12 = tpu.dynamic_rotate %2 by %c255_i32 dim 0 : vector<256x128xf32>, i32 -> vector<256x128xf32>
    %cst_3 = arith.constant 0xFF800000 : f32
    %13 = vector.broadcast %cst_3 : f32 to vector<256x128xf32>
    %14 = arith.select %8, %13, %12 : vector<256x128xi1>, vector<256x128xf32>
    %15 = arith.maximumf %11, %14 : vector<256x128xf32>
    %16 = arith.maximumf %2, %15 : vector<256x128xf32>
    %cst_4 = arith.constant 0xFF800000 : f32
    %17 = vector.broadcast %cst_4 : f32 to vector<1x16x128xf32>
    %c0_5 = arith.constant 0 : index
    %c0_6 = arith.constant 0 : index
    %c0_7 = arith.constant 0 : index
    %18 = vector.load %arg15[%c0_5, %c0_6, %c0_7] : memref<18x16x128xf32, #tpu.memory_space<vmem>>, vector<1x16x128xf32>
    tpu.vector_store %arg15[%c0_5, %c0_6, %c0_7], %17 {strides = array<i32>} : memref<18x16x128xf32, #tpu.memory_space<vmem>>, vector<1x16x128xf32>,
    %cst_8 = arith.constant 0xFF800000 : f32
    %19 = vector.broadcast %cst_8 : f32 to vector<1x16x128xf32>
    %c17 = arith.constant 17 : index
    %c0_9 = arith.constant 0 : index
    %c0_10 = arith.constant 0 : index
    %20 = vector.load %arg15[%c17, %c0_9, %c0_10] : memref<18x16x128xf32, #tpu.memory_space<vmem>>, vector<1x16x128xf32>
    tpu.vector_store %arg15[%c17, %c0_9, %c0_10], %19 {strides = array<i32>} : memref<18x16x128xf32, #tpu.memory_space<vmem>>, vector<1x16x128xf32>,
    %21 = vector.shape_cast %16 : vector<256x128xf32> to vector<16x16x128xf32>
    %c1 = arith.constant 1 : index
    %c0_11 = arith.constant 0 : index
    %c0_12 = arith.constant 0 : index
    %22 = vector.load %arg15[%c1, %c0_11, %c0_12] : memref<18x16x128xf32, #tpu.memory_space<vmem>>, vector<16x16x128xf32>
    tpu.vector_store %arg15[%c1, %c0_11, %c0_12], %21 {strides = array<i32>} : memref<18x16x128xf32, #tpu.memory_space<vmem>>, vector<16x16x128xf32>,
    %c0_13 = arith.constant 0 : index
    %c0_14 = arith.constant 0 : index
    %c0_15 = arith.constant 0 : index
    %23 = vector.load %arg15[%c0_13, %c0_14, %c0_15] : memref<18x16x128xf32, #tpu.memory_space<vmem>>, vector<16x16x128xf32>
    %24 = vector.shape_cast %23 : vector<16x16x128xf32> to vector<256x128xf32>
    %c2 = arith.constant 2 : index
    %c0_16 = arith.constant 0 : index
    %c0_17 = arith.constant 0 : index
    %25 = vector.load %arg15[%c2, %c0_16, %c0_17] : memref<18x16x128xf32, #tpu.memory_space<vmem>>, vector<16x16x128xf32>
    %26 = vector.shape_cast %25 : vector<16x16x128xf32> to vector<256x128xf32>
    %27 = arith.maximumf %24, %26 : vector<256x128xf32>
    %28 = arith.maximumf %16, %27 : vector<256x128xf32>
    %29 = arith.truncf %2 : vector<256x128xf32> to vector<256x128xbf16>
    %30 = arith.truncf %28 : vector<256x128xf32> to vector<256x128xbf16>
    %c0_18 = arith.constant 0 : index
    %c0_19 = arith.constant 0 : index
    %31 = vector.load %arg2[%c0_18, %c0_19] : memref<128x43xbf16, #tpu.memory_space<vmem>>, vector<128x43xbf16>
    %cst_20 = arith.constant dense<0.000000e+00> : vector<256x43xf32>
    %32 = tpu.matmul %29, %31, %cst_20 {dimension_numbers = #tpu.dot_dimension_numbers<[1], [0], [0], [1], [0, 0, 1, 1], [], []>} : vector<256x128xbf16>, vector<128x43xbf16>, vector<256x43xf32> -> vector<256x43xf32>
    %c0_21 = arith.constant 0 : index
    %c0_22 = arith.constant 0 : index
    %33 = vector.load %arg3[%c0_21, %c0_22] : memref<1x43xf32, #tpu.memory_space<vmem>>, vector<1x43xf32>
    %34 = vector.broadcast %33 : vector<1x43xf32> to vector<256x43xf32>
    %35 = arith.mulf %32, %34 : vector<256x43xf32>
    %c0_23 = arith.constant 0 : index
    %c0_24 = arith.constant 0 : index
    %36 = vector.load %arg4[%c0_23, %c0_24] : memref<1x43xf32, #tpu.memory_space<vmem>>, vector<1x43xf32>
    %37 = vector.broadcast %36 : vector<1x43xf32> to vector<256x43xf32>
    %38 = arith.addf %35, %37 : vector<256x43xf32>
    %cst_25 = arith.constant 0.000000e+00 : f32
    %39 = vector.broadcast %cst_25 : f32 to vector<256x43xf32>
    %40 = arith.maximumf %38, %39 : vector<256x43xf32>
    %c0_26 = arith.constant 0 : index
    %c0_27 = arith.constant 0 : index
    %41 = vector.load %arg5[%c0_26, %c0_27] : memref<128x43xbf16, #tpu.memory_space<vmem>>, vector<128x43xbf16>
    %cst_28 = arith.constant dense<0.000000e+00> : vector<256x43xf32>
    %42 = tpu.matmul %30, %41, %cst_28 {dimension_numbers = #tpu.dot_dimension_numbers<[1], [0], [0], [1], [0, 0, 1, 1], [], []>} : vector<256x128xbf16>, vector<128x43xbf16>, vector<256x43xf32> -> vector<256x43xf32>
    %c0_29 = arith.constant 0 : index
    %c0_30 = arith.constant 0 : index
    %43 = vector.load %arg6[%c0_29, %c0_30] : memref<1x43xf32, #tpu.memory_space<vmem>>, vector<1x43xf32>
    %44 = vector.broadcast %43 : vector<1x43xf32> to vector<256x43xf32>
    %45 = arith.mulf %42, %44 : vector<256x43xf32>
    %c0_31 = arith.constant 0 : index
    %c0_32 = arith.constant 0 : index
    %46 = vector.load %arg7[%c0_31, %c0_32] : memref<1x43xf32, #tpu.memory_space<vmem>>, vector<1x43xf32>
    %47 = vector.broadcast %46 : vector<1x43xf32> to vector<256x43xf32>
    %48 = arith.addf %45, %47 : vector<256x43xf32>
    %cst_33 = arith.constant 0.000000e+00 : f32
    %49 = vector.broadcast %cst_33 : f32 to vector<256x43xf32>
    %50 = arith.maximumf %48, %49 : vector<256x43xf32>
    %c0_34 = arith.constant 0 : index
    %c0_35 = arith.constant 0 : index
    %51 = vector.load %arg8[%c0_34, %c0_35] : memref<128x24xbf16, #tpu.memory_space<vmem>>, vector<128x24xbf16>
    %cst_36 = arith.constant dense<0.000000e+00> : vector<256x24xf32>
    %52 = tpu.matmul %29, %51, %cst_36 {dimension_numbers = #tpu.dot_dimension_numbers<[1], [0], [0], [1], [0, 0, 1, 1], [], []>} : vector<256x128xbf16>, vector<128x24xbf16>, vector<256x24xf32> -> vector<256x24xf32>
    %c0_37 = arith.constant 0 : index
    %c0_38 = arith.constant 0 : index
    %53 = vector.load %arg9[%c0_37, %c0_38] : memref<1x24xf32, #tpu.memory_space<vmem>>, vector<1x24xf32>
    %54 = vector.broadcast %53 : vector<1x24xf32> to vector<256x24xf32>
    %55 = arith.mulf %52, %54 : vector<256x24xf32>
    %c0_39 = arith.constant 0 : index
    %c0_40 = arith.constant 0 : index
    %56 = vector.load %arg10[%c0_39, %c0_40] : memref<1x24xf32, #tpu.memory_space<vmem>>, vector<1x24xf32>
    %57 = vector.broadcast %56 : vector<1x24xf32> to vector<256x24xf32>
    %58 = arith.addf %55, %57 : vector<256x24xf32>
    %cst_41 = arith.constant 0.000000e+00 : f32
    %59 = vector.broadcast %cst_41 : f32 to vector<256x24xf32>
    %60 = arith.maximumf %58, %59 : vector<256x24xf32>
    %61 = tpu.iota {dimensions = array<i32: 1>} : vector<16x16x24xi32>
    %62 = vector.shape_cast %61 : vector<16x16x24xi32> to vector<256x24xi32>
    %c0_i32_42 = arith.constant 0 : i32
    %63 = vector.broadcast %c0_i32_42 : i32 to vector<256x24xi32>
    %64 = arith.cmpi eq, %62, %63 : vector<256x24xi32>
    %c15_i32_43 = arith.constant 15 : i32
    %65 = vector.broadcast %c15_i32_43 : i32 to vector<256x24xi32>
    %66 = arith.cmpi eq, %62, %65 : vector<256x24xi32>
    %cst_44 = arith.constant 0.000000e+00 : f32
    %67 = vector.broadcast %cst_44 : f32 to vector<1x16x24xf32>
    %c0_45 = arith.constant 0 : index
    %c0_46 = arith.constant 0 : index
    %c0_47 = arith.constant 0 : index
    %68 = vector.load %arg16[%c0_45, %c0_46, %c0_47] : memref<18x16x24xf32, #tpu.memory_space<vmem>>, vector<1x16x24xf32>
    tpu.vector_store %arg16[%c0_45, %c0_46, %c0_47], %67 {strides = array<i32>} : memref<18x16x24xf32, #tpu.memory_space<vmem>>, vector<1x16x24xf32>,
    %cst_48 = arith.constant 0.000000e+00 : f32
    %69 = vector.broadcast %cst_48 : f32 to vector<1x16x24xf32>
    %c17_49 = arith.constant 17 : index
    %c0_50 = arith.constant 0 : index
    %c0_51 = arith.constant 0 : index
    %70 = vector.load %arg16[%c17_49, %c0_50, %c0_51] : memref<18x16x24xf32, #tpu.memory_space<vmem>>, vector<1x16x24xf32>
    tpu.vector_store %arg16[%c17_49, %c0_50, %c0_51], %69 {strides = array<i32>} : memref<18x16x24xf32, #tpu.memory_space<vmem>>, vector<1x16x24xf32>,
    %71 = vector.shape_cast %60 : vector<256x24xf32> to vector<16x16x24xf32>
    %c1_52 = arith.constant 1 : index
    %c0_53 = arith.constant 0 : index
    %c0_54 = arith.constant 0 : index
    %72 = vector.load %arg16[%c1_52, %c0_53, %c0_54] : memref<18x16x24xf32, #tpu.memory_space<vmem>>, vector<16x16x24xf32>
    tpu.vector_store %arg16[%c1_52, %c0_53, %c0_54], %71 {strides = array<i32>} : memref<18x16x24xf32, #tpu.memory_space<vmem>>, vector<16x16x24xf32>,
    %cst_55 = arith.constant 0.000000e+00 : f32
    %73 = vector.broadcast %cst_55 : f32 to vector<256x42xf32>
    %c0_56 = arith.constant 0 : index
    %c0_57 = arith.constant 0 : index
    %c0_58 = arith.constant 0 : index
    %74 = vector.load %arg16[%c0_56, %c0_57, %c0_58] : memref<18x16x24xf32, #tpu.memory_space<vmem>>, vector<16x16x24xf32>
    %75 = vector.shape_cast %74 : vector<16x16x24xf32> to vector<256x24xf32>
    %c1_i32_59 = arith.constant 1 : i32
    %76 = tpu.dynamic_rotate %75 by %c1_i32_59 dim 0 : vector<256x24xf32>, i32 -> vector<256x24xf32>
    %cst_60 = arith.constant 0.000000e+00 : f32
    %77 = vector.broadcast %cst_60 : f32 to vector<256x24xf32>
    %78 = arith.select %64, %77, %76 : vector<256x24xi1>, vector<256x24xf32>
    %c255_i32_61 = arith.constant 255 : i32
    %79 = tpu.dynamic_rotate %75 by %c255_i32_61 dim 0 : vector<256x24xf32>, i32 -> vector<256x24xf32>
    %cst_62 = arith.constant 0.000000e+00 : f32
    %80 = vector.broadcast %cst_62 : f32 to vector<256x24xf32>
    %81 = arith.select %66, %80, %79 : vector<256x24xi1>, vector<256x24xf32>
    %82 = arith.truncf %78 : vector<256x24xf32> to vector<256x24xbf16>
    %c0_63 = arith.constant 0 : index
    %c0_64 = arith.constant 0 : index
    %c0_65 = arith.constant 0 : index
    %83 = vector.load %arg11[%c0_63, %c0_64, %c0_65] : memref<9x24x42xbf16, #tpu.memory_space<vmem>>, vector<1x24x42xbf16>
    %84 = vector.shape_cast %83 : vector<1x24x42xbf16> to vector<24x42xbf16>
    %cst_66 = arith.constant dense<0.000000e+00> : vector<256x42xf32>
    %85 = tpu.matmul %82, %84, %cst_66 {dimension_numbers = #tpu.dot_dimension_numbers<[1], [0], [0], [1], [0, 0, 1, 1], [], []>} : vector<256x24xbf16>, vector<24x42xbf16>, vector<256x42xf32> -> vector<256x42xf32>
    %86 = arith.addf %73, %85 : vector<256x42xf32>
    %87 = arith.truncf %75 : vector<256x24xf32> to vector<256x24xbf16>
    %c1_67 = arith.constant 1 : index
    %c0_68 = arith.constant 0 : index
    %c0_69 = arith.constant 0 : index
    %88 = vector.load %arg11[%c1_67, %c0_68, %c0_69] : memref<9x24x42xbf16, #tpu.memory_space<vmem>>, vector<1x24x42xbf16>
    %89 = vector.shape_cast %88 : vector<1x24x42xbf16> to vector<24x42xbf16>
    %cst_70 = arith.constant dense<0.000000e+00> : vector<256x42xf32>
    %90 = tpu.matmul %87, %89, %cst_70 {dimension_numbers = #tpu.dot_dimension_numbers<[1], [0], [0], [1], [0, 0, 1, 1], [], []>} : vector<256x24xbf16>, vector<24x42xbf16>, vector<256x42xf32> -> vector<256x42xf32>
    %91 = arith.addf %86, %90 : vector<256x42xf32>
    %92 = arith.truncf %81 : vector<256x24xf32> to vector<256x24xbf16>
    %c2_71 = arith.constant 2 : index
    %c0_72 = arith.constant 0 : index
    %c0_73 = arith.constant 0 : index
    %93 = vector.load %arg11[%c2_71, %c0_72, %c0_73] : memref<9x24x42xbf16, #tpu.memory_space<vmem>>, vector<1x24x42xbf16>
    %94 = vector.shape_cast %93 : vector<1x24x42xbf16> to vector<24x42xbf16>
    %cst_74 = arith.constant dense<0.000000e+00> : vector<256x42xf32>
    %95 = tpu.matmul %92, %94, %cst_74 {dimension_numbers = #tpu.dot_dimension_numbers<[1], [0], [0], [1], [0, 0, 1, 1], [], []>} : vector<256x24xbf16>, vector<24x42xbf16>, vector<256x42xf32> -> vector<256x42xf32>
    %96 = arith.addf %91, %95 : vector<256x42xf32>
    %c1_75 = arith.constant 1 : index
    %c0_76 = arith.constant 0 : index
    %c0_77 = arith.constant 0 : index
    %97 = vector.load %arg16[%c1_75, %c0_76, %c0_77] : memref<18x16x24xf32, #tpu.memory_space<vmem>>, vector<16x16x24xf32>
    %98 = vector.shape_cast %97 : vector<16x16x24xf32> to vector<256x24xf32>
    %c1_i32_78 = arith.constant 1 : i32
    %99 = tpu.dynamic_rotate %98 by %c1_i32_78 dim 0 : vector<256x24xf32>, i32 -> vector<256x24xf32>
    %cst_79 = arith.constant 0.000000e+00 : f32
    %100 = vector.broadcast %cst_79 : f32 to vector<256x24xf32>
    %101 = arith.select %64, %100, %99 : vector<256x24xi1>, vector<256x24xf32>
    %c255_i32_80 = arith.constant 255 : i32
    %102 = tpu.dynamic_rotate %98 by %c255_i32_80 dim 0 : vector<256x24xf32>, i32 -> vector<256x24xf32>
    %cst_81 = arith.constant 0.000000e+00 : f32
    %103 = vector.broadcast %cst_81 : f32 to vector<256x24xf32>
    %104 = arith.select %66, %103, %102 : vector<256x24xi1>, vector<256x24xf32>
    %105 = arith.truncf %101 : vector<256x24xf32> to vector<256x24xbf16>
    %c3 = arith.constant 3 : index
    %c0_82 = arith.constant 0 : index
    %c0_83 = arith.constant 0 : index
    %106 = vector.load %arg11[%c3, %c0_82, %c0_83] : memref<9x24x42xbf16, #tpu.memory_space<vmem>>, vector<1x24x42xbf16>
    %107 = vector.shape_cast %106 : vector<1x24x42xbf16> to vector<24x42xbf16>
    %cst_84 = arith.constant dense<0.000000e+00> : vector<256x42xf32>
    %108 = tpu.matmul %105, %107, %cst_84 {dimension_numbers = #tpu.dot_dimension_numbers<[1], [0], [0], [1], [0, 0, 1, 1], [], []>} : vector<256x24xbf16>, vector<24x42xbf16>, vector<256x42xf32> -> vector<256x42xf32>
    %109 = arith.addf %96, %108 : vector<256x42xf32>
    %110 = arith.truncf %98 : vector<256x24xf32> to vector<256x24xbf16>
    %c4 = arith.constant 4 : index
    %c0_85 = arith.constant 0 : index
    %c0_86 = arith.constant 0 : index
    %111 = vector.load %arg11[%c4, %c0_85, %c0_86] : memref<9x24x42xbf16, #tpu.memory_space<vmem>>, vector<1x24x42xbf16>
    %112 = vector.shape_cast %111 : vector<1x24x42xbf16> to vector<24x42xbf16>
    %cst_87 = arith.constant dense<0.000000e+00> : vector<256x42xf32>
    %113 = tpu.matmul %110, %112, %cst_87 {dimension_numbers = #tpu.dot_dimension_numbers<[1], [0], [0], [1], [0, 0, 1, 1], [], []>} : vector<256x24xbf16>, vector<24x42xbf16>, vector<256x42xf32> -> vector<256x42xf32>
    %114 = arith.addf %109, %113 : vector<256x42xf32>
    %115 = arith.truncf %104 : vector<256x24xf32> to vector<256x24xbf16>
    %c5 = arith.constant 5 : index
    %c0_88 = arith.constant 0 : index
    %c0_89 = arith.constant 0 : index
    %116 = vector.load %arg11[%c5, %c0_88, %c0_89] : memref<9x24x42xbf16, #tpu.memory_space<vmem>>, vector<1x24x42xbf16>
    %117 = vector.shape_cast %116 : vector<1x24x42xbf16> to vector<24x42xbf16>
    %cst_90 = arith.constant dense<0.000000e+00> : vector<256x42xf32>
    %118 = tpu.matmul %115, %117, %cst_90 {dimension_numbers = #tpu.dot_dimension_numbers<[1], [0], [0], [1], [0, 0, 1, 1], [], []>} : vector<256x24xbf16>, vector<24x42xbf16>, vector<256x42xf32> -> vector<256x42xf32>
    %119 = arith.addf %114, %118 : vector<256x42xf32>
    %c2_91 = arith.constant 2 : index
    %c0_92 = arith.constant 0 : index
    %c0_93 = arith.constant 0 : index
    %120 = vector.load %arg16[%c2_91, %c0_92, %c0_93] : memref<18x16x24xf32, #tpu.memory_space<vmem>>, vector<16x16x24xf32>
    %121 = vector.shape_cast %120 : vector<16x16x24xf32> to vector<256x24xf32>
    %c1_i32_94 = arith.constant 1 : i32
    %122 = tpu.dynamic_rotate %121 by %c1_i32_94 dim 0 : vector<256x24xf32>, i32 -> vector<256x24xf32>
    %cst_95 = arith.constant 0.000000e+00 : f32
    %123 = vector.broadcast %cst_95 : f32 to vector<256x24xf32>
    %124 = arith.select %64, %123, %122 : vector<256x24xi1>, vector<256x24xf32>
    %c255_i32_96 = arith.constant 255 : i32
    %125 = tpu.dynamic_rotate %121 by %c255_i32_96 dim 0 : vector<256x24xf32>, i32 -> vector<256x24xf32>
    %cst_97 = arith.constant 0.000000e+00 : f32
    %126 = vector.broadcast %cst_97 : f32 to vector<256x24xf32>
    %127 = arith.select %66, %126, %125 : vector<256x24xi1>, vector<256x24xf32>
    %128 = arith.truncf %124 : vector<256x24xf32> to vector<256x24xbf16>
    %c6 = arith.constant 6 : index
    %c0_98 = arith.constant 0 : index
    %c0_99 = arith.constant 0 : index
    %129 = vector.load %arg11[%c6, %c0_98, %c0_99] : memref<9x24x42xbf16, #tpu.memory_space<vmem>>, vector<1x24x42xbf16>
    %130 = vector.shape_cast %129 : vector<1x24x42xbf16> to vector<24x42xbf16>
    %cst_100 = arith.constant dense<0.000000e+00> : vector<256x42xf32>
    %131 = tpu.matmul %128, %130, %cst_100 {dimension_numbers = #tpu.dot_dimension_numbers<[1], [0], [0], [1], [0, 0, 1, 1], [], []>} : vector<256x24xbf16>, vector<24x42xbf16>, vector<256x42xf32> -> vector<256x42xf32>
    %132 = arith.addf %119, %131 : vector<256x42xf32>
    %133 = arith.truncf %121 : vector<256x24xf32> to vector<256x24xbf16>
    %c7 = arith.constant 7 : index
    %c0_101 = arith.constant 0 : index
    %c0_102 = arith.constant 0 : index
    %134 = vector.load %arg11[%c7, %c0_101, %c0_102] : memref<9x24x42xbf16, #tpu.memory_space<vmem>>, vector<1x24x42xbf16>
    %135 = vector.shape_cast %134 : vector<1x24x42xbf16> to vector<24x42xbf16>
    %cst_103 = arith.constant dense<0.000000e+00> : vector<256x42xf32>
    %136 = tpu.matmul %133, %135, %cst_103 {dimension_numbers = #tpu.dot_dimension_numbers<[1], [0], [0], [1], [0, 0, 1, 1], [], []>} : vector<256x24xbf16>, vector<24x42xbf16>, vector<256x42xf32> -> vector<256x42xf32>
    %137 = arith.addf %132, %136 : vector<256x42xf32>
    %138 = arith.truncf %127 : vector<256x24xf32> to vector<256x24xbf16>
    %c8 = arith.constant 8 : index
    %c0_104 = arith.constant 0 : index
    %c0_105 = arith.constant 0 : index
    %139 = vector.load %arg11[%c8, %c0_104, %c0_105] : memref<9x24x42xbf16, #tpu.memory_space<vmem>>, vector<1x24x42xbf16>
    %140 = vector.shape_cast %139 : vector<1x24x42xbf16> to vector<24x42xbf16>
    %cst_106 = arith.constant dense<0.000000e+00> : vector<256x42xf32>
    %141 = tpu.matmul %138, %140, %cst_106 {dimension_numbers = #tpu.dot_dimension_numbers<[1], [0], [0], [1], [0, 0, 1, 1], [], []>} : vector<256x24xbf16>, vector<24x42xbf16>, vector<256x42xf32> -> vector<256x42xf32>
    %142 = arith.addf %137, %141 : vector<256x42xf32>
    %c0_107 = arith.constant 0 : index
    %c0_108 = arith.constant 0 : index
    %143 = vector.load %arg12[%c0_107, %c0_108] : memref<1x42xf32, #tpu.memory_space<vmem>>, vector<1x42xf32>
    %144 = vector.broadcast %143 : vector<1x42xf32> to vector<256x42xf32>
    %145 = arith.mulf %142, %144 : vector<256x42xf32>
    %c0_109 = arith.constant 0 : index
    %c0_110 = arith.constant 0 : index
    %146 = vector.load %arg13[%c0_109, %c0_110] : memref<1x42xf32, #tpu.memory_space<vmem>>, vector<1x42xf32>
    %147 = vector.broadcast %146 : vector<1x42xf32> to vector<256x42xf32>
    %148 = arith.addf %145, %147 : vector<256x42xf32>
    %cst_111 = arith.constant 0.000000e+00 : f32
    %149 = vector.broadcast %cst_111 : f32 to vector<256x42xf32>
    %150 = arith.maximumf %148, %149 : vector<256x42xf32>
    %151 = tpu.concatenate %40, %50, %150 in 1 : vector<256x43xf32>, vector<256x43xf32>, vector<256x42xf32> -> vector<256x128xf32>
    %152 = vector.shape_cast %151 : vector<256x128xf32> to vector<16x16x128xf32>
    %c0_112 = arith.constant 0 : index
    %c0_113 = arith.constant 0 : index
    %c0_114 = arith.constant 0 : index
    %c0_115 = arith.constant 0 : index
    %153 = vector.load %arg14[%c0_112, %c0_113, %c0_114, %c0_115] : memref<1x16x16x128xf32, #tpu.memory_space<vmem>>, vector<1x16x16x128xf32>
    %154 = vector.shape_cast %153 : vector<1x16x16x128xf32> to vector<16x16x128xf32>
    %155 = vector.shape_cast %152 : vector<16x16x128xf32> to vector<1x16x16x128xf32>
    tpu.vector_store %arg14[%c0_112, %c0_113, %c0_114, %c0_115], %155 {strides = array<i32>} : memref<1x16x16x128xf32, #tpu.memory_space<vmem>>, vector<1x16x16x128xf32>,
    return
  }
  func.func @transform_0(%arg0: i32) -> (i32, i32, i32, i32) {
    %c0_i32 = arith.constant 0 : i32
    %c0_i32_0 = arith.constant 0 : i32
    %c0_i32_1 = arith.constant 0 : i32
    %c0_i32_2 = arith.constant 0 : i32
    return %arg0, %c0_i32, %c0_i32_0, %c0_i32_1 : i32, i32, i32, i32
  }
  func.func @transform_1(%arg0: i32) -> (i32, i32) {
    %c0_i32 = arith.constant 0 : i32
    %c0_i32_0 = arith.constant 0 : i32
    %c0_i32_1 = arith.constant 0 : i32
    return %c0_i32, %c0_i32_0 : i32, i32
  }
  func.func @transform_2(%arg0: i32) -> (i32, i32) {
    %c0_i32 = arith.constant 0 : i32
    %c0_i32_0 = arith.constant 0 : i32
    %c0_i32_1 = arith.constant 0 : i32
    return %c0_i32, %c0_i32_0 : i32, i32
  }
  func.func @transform_3(%arg0: i32) -> (i32, i32) {
    %c0_i32 = arith.constant 0 : i32
    %c0_i32_0 = arith.constant 0 : i32
    %c0_i32_1 = arith.constant 0 : i32
    return %c0_i32, %c0_i32_0 : i32, i32
  }
  func.func @transform_4(%arg0: i32) -> (i32, i32) {
    %c0_i32 = arith.constant 0 : i32
    %c0_i32_0 = arith.constant 0 : i32
    %c0_i32_1 = arith.constant 0 : i32
    return %c0_i32, %c0_i32_0 : i32, i32
  }
  func.func @transform_5(%arg0: i32) -> (i32, i32) {
    %c0_i32 = arith.constant 0 : i32
    %c0_i32_0 = arith.constant 0 : i32
    %c0_i32_1 = arith.constant 0 : i32
    return %c0_i32, %c0_i32_0 : i32, i32
  }
  func.func @transform_6(%arg0: i32) -> (i32, i32) {
    %c0_i32 = arith.constant 0 : i32
    %c0_i32_0 = arith.constant 0 : i32
    %c0_i32_1 = arith.constant 0 : i32
    return %c0_i32, %c0_i32_0 : i32, i32
  }
  func.func @transform_7(%arg0: i32) -> (i32, i32) {
    %c0_i32 = arith.constant 0 : i32
    %c0_i32_0 = arith.constant 0 : i32
    %c0_i32_1 = arith.constant 0 : i32
    return %c0_i32, %c0_i32_0 : i32, i32
  }
  func.func @transform_8(%arg0: i32) -> (i32, i32) {
    %c0_i32 = arith.constant 0 : i32
    %c0_i32_0 = arith.constant 0 : i32
    %c0_i32_1 = arith.constant 0 : i32
    return %c0_i32, %c0_i32_0 : i32, i32
  }
  func.func @transform_9(%arg0: i32) -> (i32, i32) {
    %c0_i32 = arith.constant 0 : i32
    %c0_i32_0 = arith.constant 0 : i32
    %c0_i32_1 = arith.constant 0 : i32
    return %c0_i32, %c0_i32_0 : i32, i32
  }
  func.func @transform_10(%arg0: i32) -> (i32, i32, i32) {
    %c0_i32 = arith.constant 0 : i32
    %c0_i32_0 = arith.constant 0 : i32
    %c0_i32_1 = arith.constant 0 : i32
    %c0_i32_2 = arith.constant 0 : i32
    return %c0_i32, %c0_i32_0, %c0_i32_1 : i32, i32, i32
  }
  func.func @transform_11(%arg0: i32) -> (i32, i32) {
    %c0_i32 = arith.constant 0 : i32
    %c0_i32_0 = arith.constant 0 : i32
    %c0_i32_1 = arith.constant 0 : i32
    return %c0_i32, %c0_i32_0 : i32, i32
  }
  func.func @transform_12(%arg0: i32) -> (i32, i32) {
    %c0_i32 = arith.constant 0 : i32
    %c0_i32_0 = arith.constant 0 : i32
    %c0_i32_1 = arith.constant 0 : i32
    return %c0_i32, %c0_i32_0 : i32, i32
  }
  func.func @transform_13(%arg0: i32) -> (i32, i32, i32, i32) {
    %c0_i32 = arith.constant 0 : i32
    %c0_i32_0 = arith.constant 0 : i32
    %c0_i32_1 = arith.constant 0 : i32
    %c0_i32_2 = arith.constant 0 : i32
    return %arg0, %c0_i32, %c0_i32_0, %c0_i32_1 : i32, i32, i32, i32
  }
}

</mosaic_0001>

<llo_original>
// kernel: inception_forward.1
$region0: #{inception_forward.1}
  #allocation0 [shape = 'u32[]', space=smem, size = 0x4, offset = 0x4, fixed_abs, tag = 'smem constant byte address 0x4 - core index']
  #allocation1 [shape = 'u32[144,128]{1,0:T(1,128)}', space=vmem, size = 0x12000, scoped, tag = 'internal scratch']
  #allocation2 [shape = 'f32[18,16,128]{2,1,0:T(8,128)}', space=vmem, size = 0x24000, scoped, tag = 'scratch operand']
  #allocation3 [shape = 'f32[18,16,24]{2,1,0:T(8,128)}', space=vmem, size = 0x24000, scoped, tag = 'scratch operand']
  %s0 = inlined_call_operand.hbm [shape: f32[2,16,16,128], index: 0, kind: input, shape index: {}]
  %s1 = inlined_call_operand.vmem [shape: bf16[128,43], index: 1, kind: input, shape index: {}]
  %s2 = inlined_call_operand.vmem [shape: f32[1,43], index: 2, kind: input, shape index: {}]
  %s3 = inlined_call_operand.vmem [shape: f32[1,43], index: 3, kind: input, shape index: {}]
  %s4 = inlined_call_operand.vmem [shape: bf16[128,43], index: 4, kind: input, shape index: {}]
  %s5 = inlined_call_operand.vmem [shape: f32[1,43], index: 5, kind: input, shape index: {}]
  %s6 = inlined_call_operand.vmem [shape: f32[1,43], index: 6, kind: input, shape index: {}]
  %s7 = inlined_call_operand.vmem [shape: bf16[128,24], index: 7, kind: input, shape index: {}]
  %s8 = inlined_call_operand.vmem [shape: f32[1,24], index: 8, kind: input, shape index: {}]
  %s9 = inlined_call_operand.vmem [shape: f32[1,24], index: 9, kind: input, shape index: {}]
  %s10 = inlined_call_operand.vmem [shape: bf16[9,24,42], index: 10, kind: input, shape index: {}]
  %s11 = inlined_call_operand.vmem [shape: f32[1,42], index: 11, kind: input, shape index: {}]
  %s12 = inlined_call_operand.vmem [shape: f32[1,42], index: 12, kind: input, shape index: {}]
  %s13 = inlined_call_operand.hbm [shape: f32[2,16,16,128], index: 13, kind: output, shape index: {}]
  %s14 = sld [smem:[#allocation0]]
  $region89: #{inception_forward.1} parent=0
    _
  %s16 = ssub.s32 1, %s14
  %s17 = scalar_select 0, %s16, %s14
  $region1: #{inception_forward.1} parent=0
    #allocation4 [shape = 'u8[262144]{0}', space=vmem, size = 0x40000, scoped, tag = 'input window, operand 0']
    #allocation5 [shape = 's32[2]{0}', space=sflag, size = 0x8, scoped, tag = 'scoped memory for inception_forward.1']
    #allocation6 [shape = 's32[2]{0}', space=sflag, size = 0x8, scoped, tag = 'scoped memory for inception_forward.1']
    #allocation7 [shape = 'u8[262144]{0}', space=vmem, size = 0x40000, scoped, tag = 'output window, operand 0']
    %18 = vsyncpa [#allocation5], 0
    %s19 = scalar_lea.sflag [#allocation5], 1
    %20 = vsyncpa %s19, 0
    %21 = vsyncpa [#allocation6], 0
    %s22 = scalar_lea.sflag [#allocation6], 1
    %23 = vsyncpa %s22, 0
    loop: start=0, step=1, limit=4
    $region2: #{inception_forward.1} parent=1 // loop_pre_header
      _
    $region3: #{inception_forward.1} parent=1 // loop_header
      %s25 = sphi 0, %s29
      %p26 = scmp.ge.s32.totalorder %s25, 4
      %s35 = sphi 0, %s37
      %s38 = sphi 0, %s35
      %s39 = sphi 0, %s38
      %s55 = sphi 0, %s39
      %s59 = sphi 0, %s59
      %s61 = sphi 0, %s59
      %s62 = sphi 0, %s61
      %s76 = sphi 0, %s62
      %s80 = sphi 0, %s80
      %s82 = sphi 0, %s80
      %s83 = sphi 0, %s82
      %s97 = sphi 0, %s83
      %s101 = sphi 0, %s101
      %s103 = sphi 0, %s101
      %s104 = sphi 0, %s103
      %s118 = sphi 0, %s104
      %s122 = sphi 0, %s122
      %s124 = sphi 0, %s122
      %s125 = sphi 0, %s124
      %s139 = sphi 0, %s125
      %s143 = sphi 0, %s143
      %s145 = sphi 0, %s143
      %s146 = sphi 0, %s145
      %s160 = sphi 0, %s146
      %s164 = sphi 0, %s164
      %s166 = sphi 0, %s164
      %s167 = sphi 0, %s166
      %s181 = sphi 0, %s167
      %s185 = sphi 0, %s185
      %s187 = sphi 0, %s185
      %s188 = sphi 0, %s187
      %s202 = sphi 0, %s188
      %s206 = sphi 0, %s206
      %s208 = sphi 0, %s206
      %s209 = sphi 0, %s208
      %s223 = sphi 0, %s209
      %s227 = sphi 0, %s227
      %s229 = sphi 0, %s227
      %s230 = sphi 0, %s229
      %s244 = sphi 0, %s230
      %s248 = sphi 0, %s248
      %s250 = sphi 0, %s248
      %s251 = sphi 0, %s250
      %s265 = sphi 0, %s251
      %s269 = sphi 0, %s269
      %s271 = sphi 0, %s269
      %s272 = sphi 0, %s271
      %s286 = sphi 0, %s272
      %s290 = sphi 0, %s290
      %s292 = sphi 0, %s290
      %s293 = sphi 0, %s292
      %s307 = sphi 0, %s293
      %s313 = sphi 0, %s315
      %s316 = sphi 0, %s313
      %s317 = sphi 0, %s316
      %s333 = sphi 0, %s317
    $region4: #{inception_forward.1} parent=1 // loop_header_branch
      %28 = sbr.rel (%p26) target = $region8
    $region5: #{inception_forward.1} parent=1 // loop_body
      %s30 = ssub.s32 %s25, 1
      %s31 = ssub.s32 %s25, 2
      %s32 = sadd.s32 %s25, 1
      %s33 = ssub.s32 %s25, %s32
      %p34 = scmp.eq.s32.totalorder %s33, 0
      %s36 = sadd.s32 %s35, 1
      %s37 = scalar_select %p34, %s35, %s36
      %p40 = pneg %p34
      %p41 = scmp.eq.s32.totalorder %s25, 1
      %p42 = por %p40, %p41
      %p43 = scmp.ne.s32.totalorder %s35, %s38
      %p44 = scmp.eq.s32.totalorder %s25, 0
      %p45 = por %p43, %p44
      %p46 = scmp.ne.s32.totalorder %s35, %s38
      %p47 = scmp.eq.s32.totalorder %s30, 1
      %p48 = por %p46, %p47
      %p49 = scmp.ne.s32.totalorder %s38, %s39
      %p50 = scmp.eq.s32.totalorder %s30, 0
      %p51 = por %p49, %p50
      %p52 = scmp.ne.s32.totalorder %s38, %s39
      %p53 = scmp.eq.s32.totalorder %s31, 1
      %p54 = por %p52, %p53
      %p56 = scmp.ne.s32.totalorder %s39, %s55
      %p57 = scmp.eq.s32.totalorder %s31, 0
      %p58 = por %p56, %p57
      %s60 = sadd.s32 %s59, 1
      %p63 = scmp.eq.s32.totalorder %s25, 1
      %p64 = scmp.ne.s32.totalorder %s59, %s61
      %p65 = scmp.eq.s32.totalorder %s25, 0
      %p66 = por %p64, %p65
      %p67 = scmp.ne.s32.totalorder %s59, %s61
      %p68 = scmp.eq.s32.totalorder %s30, 1
      %p69 = por %p67, %p68
      %p70 = scmp.ne.s32.totalorder %s61, %s62
      %p71 = scmp.eq.s32.totalorder %s30, 0
      %p72 = por %p70, %p71
      %p73 = scmp.ne.s32.totalorder %s61, %s62
      %p74 = scmp.eq.s32.totalorder %s31, 1
      %p75 = por %p73, %p74
      %p77 = scmp.ne.s32.totalorder %s62, %s76
      %p78 = scmp.eq.s32.totalorder %s31, 0
      %p79 = por %p77, %p78
      %s81 = sadd.s32 %s80, 1
      %p84 = scmp.eq.s32.totalorder %s25, 1
      %p85 = scmp.ne.s32.totalorder %s80, %s82
      %p86 = scmp.eq.s32.totalorder %s25, 0
      %p87 = por %p85, %p86
      %p88 = scmp.ne.s32.totalorder %s80, %s82
      %p89 = scmp.eq.s32.totalorder %s30, 1
      %p90 = por %p88, %p89
      %p91 = scmp.ne.s32.totalorder %s82, %s83
      %p92 = scmp.eq.s32.totalorder %s30, 0
      %p93 = por %p91, %p92
      %p94 = scmp.ne.s32.totalorder %s82, %s83
      %p95 = scmp.eq.s32.totalorder %s31, 1
      %p96 = por %p94, %p95
      %p98 = scmp.ne.s32.totalorder %s83, %s97
      %p99 = scmp.eq.s32.totalorder %s31, 0
      %p100 = por %p98, %p99
      %s102 = sadd.s32 %s101, 1
      %p105 = scmp.eq.s32.totalorder %s25, 1
      %p106 = scmp.ne.s32.totalorder %s101, %s103
      %p107 = scmp.eq.s32.totalorder %s25, 0
      %p108 = por %p106, %p107
      %p109 = scmp.ne.s32.totalorder %s101, %s103
      %p110 = scmp.eq.s32.totalorder %s30, 1
      %p111 = por %p109, %p110
      %p112 = scmp.ne.s32.totalorder %s103, %s104
      %p113 = scmp.eq.s32.totalorder %s30, 0
      %p114 = por %p112, %p113
      %p115 = scmp.ne.s32.totalorder %s103, %s104
      %p116 = scmp.eq.s32.totalorder %s31, 1
      %p117 = por %p115, %p116
      %p119 = scmp.ne.s32.totalorder %s104, %s118
      %p120 = scmp.eq.s32.totalorder %s31, 0
      %p121 = por %p119, %p120
      %s123 = sadd.s32 %s122, 1
      %p126 = scmp.eq.s32.totalorder %s25, 1
      %p127 = scmp.ne.s32.totalorder %s122, %s124
      %p128 = scmp.eq.s32.totalorder %s25, 0
      %p129 = por %p127, %p128
      %p130 = scmp.ne.s32.totalorder %s122, %s124
      %p131 = scmp.eq.s32.totalorder %s30, 1
      %p132 = por %p130, %p131
      %p133 = scmp.ne.s32.totalorder %s124, %s125
      %p134 = scmp.eq.s32.totalorder %s30, 0
      %p135 = por %p133, %p134
      %p136 = scmp.ne.s32.totalorder %s124, %s125
      %p137 = scmp.eq.s32.totalorder %s31, 1
      %p138 = por %p136, %p137
      %p140 = scmp.ne.s32.totalorder %s125, %s139
      %p141 = scmp.eq.s32.totalorder %s31, 0
      %p142 = por %p140, %p141
      %s144 = sadd.s32 %s143, 1
      %p147 = scmp.eq.s32.totalorder %s25, 1
      %p148 = scmp.ne.s32.totalorder %s143, %s145
      %p149 = scmp.eq.s32.totalorder %s25, 0
      %p150 = por %p148, %p149
      %p151 = scmp.ne.s32.totalorder %s143, %s145
      %p152 = scmp.eq.s32.totalorder %s30, 1
      %p153 = por %p151, %p152
      %p154 = scmp.ne.s32.totalorder %s145, %s146
      %p155 = scmp.eq.s32.totalorder %s30, 0
      %p156 = por %p154, %p155
      %p157 = scmp.ne.s32.totalorder %s145, %s146
      %p158 = scmp.eq.s32.totalorder %s31, 1
      %p159 = por %p157, %p158
      %p161 = scmp.ne.s32.totalorder %s146, %s160
      %p162 = scmp.eq.s32.totalorder %s31, 0
      %p163 = por %p161, %p162
      %s165 = sadd.s32 %s164, 1
      %p168 = scmp.eq.s32.totalorder %s25, 1
      %p169 = scmp.ne.s32.totalorder %s164, %s166
      %p170 = scmp.eq.s32.totalorder %s25, 0
      %p171 = por %p169, %p170
      %p172 = scmp.ne.s32.totalorder %s164, %s166
      %p173 = scmp.eq.s32.totalorder %s30, 1
      %p174 = por %p172, %p173
      %p175 = scmp.ne.s32.totalorder %s166, %s167
      %p176 = scmp.eq.s32.totalorder %s30, 0
      %p177 = por %p175, %p176
      %p178 = scmp.ne.s32.totalorder %s166, %s167
      %p179 = scmp.eq.s32.totalorder %s31, 1
      %p180 = por %p178, %p179
      %p182 = scmp.ne.s32.totalorder %s167, %s181
      %p183 = scmp.eq.s32.totalorder %s31, 0
      %p184 = por %p182, %p183
      %s186 = sadd.s32 %s185, 1
      %p189 = scmp.eq.s32.totalorder %s25, 1
      %p190 = scmp.ne.s32.totalorder %s185, %s187
      %p191 = scmp.eq.s32.totalorder %s25, 0
      %p192 = por %p190, %p191
      %p193 = scmp.ne.s32.totalorder %s185, %s187
      %p194 = scmp.eq.s32.totalorder %s30, 1
      %p195 = por %p193, %p194
      %p196 = scmp.ne.s32.totalorder %s187, %s188
      %p197 = scmp.eq.s32.totalorder %s30, 0
      %p198 = por %p196, %p197
      %p199 = scmp.ne.s32.totalorder %s187, %s188
      %p200 = scmp.eq.s32.totalorder %s31, 1
      %p201 = por %p199, %p200
      %p203 = scmp.ne.s32.totalorder %s188, %s202
      %p204 = scmp.eq.s32.totalorder %s31, 0
      %p205 = por %p203, %p204
      %s207 = sadd.s32 %s206, 1
      %p210 = scmp.eq.s32.totalorder %s25, 1
      %p211 = scmp.ne.s32.totalorder %s206, %s208
      %p212 = scmp.eq.s32.totalorder %s25, 0
      %p213 = por %p211, %p212
      %p214 = scmp.ne.s32.totalorder %s206, %s208
      %p215 = scmp.eq.s32.totalorder %s30, 1
      %p216 = por %p214, %p215
      %p217 = scmp.ne.s32.totalorder %s208, %s209
      %p218 = scmp.eq.s32.totalorder %s30, 0
      %p219 = por %p217, %p218
      %p220 = scmp.ne.s32.totalorder %s208, %s209
      %p221 = scmp.eq.s32.totalorder %s31, 1
      %p222 = por %p220, %p221
      %p224 = scmp.ne.s32.totalorder %s209, %s223
      %p225 = scmp.eq.s32.totalorder %s31, 0
      %p226 = por %p224, %p225
      %s228 = sadd.s32 %s227, 1
      %p231 = scmp.eq.s32.totalorder %s25, 1
      %p232 = scmp.ne.s32.totalorder %s227, %s229
      %p233 = scmp.eq.s32.totalorder %s25, 0
      %p234 = por %p232, %p233
      %p235 = scmp.ne.s32.totalorder %s227, %s229
      %p236 = scmp.eq.s32.totalorder %s30, 1
      %p237 = por %p235, %p236
      %p238 = scmp.ne.s32.totalorder %s229, %s230
      %p239 = scmp.eq.s32.totalorder %s30, 0
      %p240 = por %p238, %p239
      %p241 = scmp.ne.s32.totalorder %s229, %s230
      %p242 = scmp.eq.s32.totalorder %s31, 1
      %p243 = por %p241, %p242
      %p245 = scmp.ne.s32.totalorder %s230, %s244
      %p246 = scmp.eq.s32.totalorder %s31, 0
      %p247 = por %p245, %p246
      %s249 = sadd.s32 %s248, 1
      %p252 = scmp.eq.s32.totalorder %s25, 1
      %p253 = scmp.ne.s32.totalorder %s248, %s250
      %p254 = scmp.eq.s32.totalorder %s25, 0
      %p255 = por %p253, %p254
      %p256 = scmp.ne.s32.totalorder %s248, %s250
      %p257 = scmp.eq.s32.totalorder %s30, 1
      %p258 = por %p256, %p257
      %p259 = scmp.ne.s32.totalorder %s250, %s251
      %p260 = scmp.eq.s32.totalorder %s30, 0
      %p261 = por %p259, %p260
      %p262 = scmp.ne.s32.totalorder %s250, %s251
      %p263 = scmp.eq.s32.totalorder %s31, 1
      %p264 = por %p262, %p263
      %p266 = scmp.ne.s32.totalorder %s251, %s265
      %p267 = scmp.eq.s32.totalorder %s31, 0
      %p268 = por %p266, %p267
      %s270 = sadd.s32 %s269, 1
      %p273 = scmp.eq.s32.totalorder %s25, 1
      %p274 = scmp.ne.s32.totalorder %s269, %s271
      %p275 = scmp.eq.s32.totalorder %s25, 0
      %p276 = por %p274, %p275
      %p277 = scmp.ne.s32.totalorder %s269, %s271
      %p278 = scmp.eq.s32.totalorder %s30, 1
      %p279 = por %p277, %p278
      %p280 = scmp.ne.s32.totalorder %s271, %s272
      %p281 = scmp.eq.s32.totalorder %s30, 0
      %p282 = por %p280, %p281
      %p283 = scmp.ne.s32.totalorder %s271, %s272
      %p284 = scmp.eq.s32.totalorder %s31, 1
      %p285 = por %p283, %p284
      %p287 = scmp.ne.s32.totalorder %s272, %s286
      %p288 = scmp.eq.s32.totalorder %s31, 0
      %p289 = por %p287, %p288
      %s291 = sadd.s32 %s290, 1
      %p294 = scmp.eq.s32.totalorder %s25, 1
      %p295 = scmp.ne.s32.totalorder %s290, %s292
      %p296 = scmp.eq.s32.totalorder %s25, 0
      %p297 = por %p295, %p296
      %p298 = scmp.ne.s32.totalorder %s290, %s292
      %p299 = scmp.eq.s32.totalorder %s30, 1
      %p300 = por %p298, %p299
      %p301 = scmp.ne.s32.totalorder %s292, %s293
      %p302 = scmp.eq.s32.totalorder %s30, 0
      %p303 = por %p301, %p302
      %p304 = scmp.ne.s32.totalorder %s292, %s293
      %p305 = scmp.eq.s32.totalorder %s31, 1
      %p306 = por %p304, %p305
      %p308 = scmp.ne.s32.totalorder %s293, %s307
      %p309 = scmp.eq.s32.totalorder %s31, 0
      %p310 = por %p308, %p309
      %s311 = ssub.s32 %s25, %s32
      %p312 = scmp.eq.s32.totalorder %s311, 0
      %s314 = sadd.s32 %s313, 1
      %s315 = scalar_select %p312, %s313, %s314
      %p318 = pneg %p312
      %p319 = scmp.eq.s32.totalorder %s25, 1
      %p320 = por %p318, %p319
      %p321 = scmp.ne.s32.totalorder %s313, %s316
      %p322 = scmp.eq.s32.totalorder %s25, 0
      %p323 = por %p321, %p322
      %p324 = scmp.ne.s32.totalorder %s313, %s316
      %p325 = scmp.eq.s32.totalorder %s30, 1
      %p326 = por %p324, %p325
      %p327 = scmp.ne.s32.totalorder %s316, %s317
      %p328 = scmp.eq.s32.totalorder %s30, 0
      %p329 = por %p327, %p328
      %p330 = scmp.ne.s32.totalorder %s316, %s317
      %p331 = scmp.eq.s32.totalorder %s31, 1
      %p332 = por %p330, %p331
      %p334 = scmp.ne.s32.totalorder %s317, %s333
      %p335 = scmp.eq.s32.totalorder %s31, 0
      %p336 = por %p334, %p335
      %p337 = scmp.le.s32.totalorder 1, %s25
      %p338 = scmp.lt.s32.totalorder %s25, 3
      %p339 = pnand %p337, %p338
      %p340 = pneg %p339
      // Predicated region
      $region9: #{inception_forward.1} parent=5 // pred_check
        _
      $region10: #{inception_forward.1} parent=5 // pred_check_branch
        %342 = sbr.rel (%p339) target = $region12
      $region11: #{inception_forward.1} parent=5 // pred_region
        %s343 = ssub.s32 %s25, 1
        // Predicated region
        $region13: #{inception_forward.1} parent=11 // pred_check
          %p344 = pneg %p72
        $region14: #{inception_forward.1} parent=11 // pred_check_branch
          %346 = sbr.rel (%p344) target = $region16
        $region15: #{inception_forward.1} parent=11 // pred_region
          _
        $region16: #{inception_forward.1} parent=11 // pred_fallthru
          _
        // Predicated region
        $region17: #{inception_forward.1} parent=11 // pred_check
          %p347 = pneg %p93
        $region18: #{inception_forward.1} parent=11 // pred_check_branch
          %349 = sbr.rel (%p347) target = $region20
        $region19: #{inception_forward.1} parent=11 // pred_region
          _
        $region20: #{inception_forward.1} parent=11 // pred_fallthru
          _
        // Predicated region
        $region21: #{inception_forward.1} parent=11 // pred_check
          %p350 = pneg %p114
        $region22: #{inception_forward.1} parent=11 // pred_check_branch
          %352 = sbr.rel (%p350) target = $region24
        $region23: #{inception_forward.1} parent=11 // pred_region
          _
        $region24: #{inception_forward.1} parent=11 // pred_fallthru
          _
        // Predicated region
        $region25: #{inception_forward.1} parent=11 // pred_check
          %p353 = pneg %p135
        $region26: #{inception_forward.1} parent=11 // pred_check_branch
          %355 = sbr.rel (%p353) target = $region28
        $region27: #{inception_forward.1} parent=11 // pred_region
          _
        $region28: #{inception_forward.1} parent=11 // pred_fallthru
          _
        // Predicated region
        $region29: #{inception_forward.1} parent=11 // pred_check
          %p356 = pneg %p156
        $region30: #{inception_forward.1} parent=11 // pred_check_branch
          %358 = sbr.rel (%p356) target = $region32
        $region31: #{inception_forward.1} parent=11 // pred_region
          _
        $region32: #{inception_forward.1} parent=11 // pred_fallthru
          _
        // Predicated region
        $region33: #{inception_forward.1} parent=11 // pred_check
          %p359 = pneg %p177
        $region34: #{inception_forward.1} parent=11 // pred_check_branch
          %361 = sbr.rel (%p359) target = $region36
        $region35: #{inception_forward.1} parent=11 // pred_region
          _
        $region36: #{inception_forward.1} parent=11 // pred_fallthru
          _
        // Predicated region
        $region37: #{inception_forward.1} parent=11 // pred_check
          %p362 = pneg %p198
        $region38: #{inception_forward.1} parent=11 // pred_check_branch
          %364 = sbr.rel (%p362) target = $region40
        $region39: #{inception_forward.1} parent=11 // pred_region
          _
        $region40: #{inception_forward.1} parent=11 // pred_fallthru
          _
        // Predicated region
        $region41: #{inception_forward.1} parent=11 // pred_check
          %p365 = pneg %p219
        $region42: #{inception_forward.1} parent=11 // pred_check_branch
          %367 = sbr.rel (%p365) target = $region44
        $region43: #{inception_forward.1} parent=11 // pred_region
          _
        $region44: #{inception_forward.1} parent=11 // pred_fallthru
          _
        // Predicated region
        $region45: #{inception_forward.1} parent=11 // pred_check
          %p368 = pneg %p240
        $region46: #{inception_forward.1} parent=11 // pred_check_branch
          %370 = sbr.rel (%p368) target = $region48
        $region47: #{inception_forward.1} parent=11 // pred_region
          _
        $region48: #{inception_forward.1} parent=11 // pred_fallthru
          _
        // Predicated region
        $region49: #{inception_forward.1} parent=11 // pred_check
          %p371 = pneg %p261
        $region50: #{inception_forward.1} parent=11 // pred_check_branch
          %373 = sbr.rel (%p371) target = $region52
        $region51: #{inception_forward.1} parent=11 // pred_region
          _
        $region52: #{inception_forward.1} parent=11 // pred_fallthru
          _
        // Predicated region
        $region53: #{inception_forward.1} parent=11 // pred_check
          %p374 = pneg %p282
        $region54: #{inception_forward.1} parent=11 // pred_check_branch
          %376 = sbr.rel (%p374) target = $region56
        $region55: #{inception_forward.1} parent=11 // pred_region
          _
        $region56: #{inception_forward.1} parent=11 // pred_fallthru
          _
        // Predicated region
        $region57: #{inception_forward.1} parent=11 // pred_check
          %p377 = pneg %p303
        $region58: #{inception_forward.1} parent=11 // pred_check_branch
          %379 = sbr.rel (%p377) target = $region60
        $region59: #{inception_forward.1} parent=11 // pred_region
          _
        $region60: #{inception_forward.1} parent=11 // pred_fallthru
          _
      $region12: #{inception_forward.1} parent=5 // pred_fallthru
        _
      %p380 = scmp.lt.s32.totalorder %s25, 2
      // Predicated region
      $region61: #{inception_forward.1} parent=5 // pred_check
        %p381 = pneg %p380
      $region62: #{inception_forward.1} parent=5 // pred_check_branch
        %383 = sbr.rel (%p381) target = $region64
      $region63: #{inception_forward.1} parent=5 // pred_region
        // Predicated region
        $region65: #{inception_forward.1} parent=63 // pred_check
          %p384 = pneg %p45
        $region66: #{inception_forward.1} parent=63 // pred_check_branch
          %386 = sbr.rel (%p384) target = $region68
        $region67: #{inception_forward.1} parent=63 // pred_region
          %s387 = sand.u32 %s35, 1
          %s388 = scalar_lea.sflag [#allocation5], %s387
          %s389 = sand.u32 %s35, 1
          %s390 = smul.addr %s389, 256
          %s391 = scalar_lea.vmem [#allocation4], %s390
          %s393 = ssub.s32 4096, 4096
          %394 = vsyncadd %s388, %s393
          %s395 = smul.addr %s25, 32
          %s396 = smul.addr %s395, 128
          %s397 = scalar_lea.hbm %s0, %s396
          %s398 = sshll.u32 %s391, 4
          %s399 = int_to_ptr.vmem [resolvable:$true] %s398
          %404 = dma.hbm_to_vmem [thread:$0]  %s397, 4096, %s399, %s388, 128, 128, 8
        $region68: #{inception_forward.1} parent=63 // pred_fallthru
          _
      $region64: #{inception_forward.1} parent=5 // pred_fallthru
        _
      %p405 = scmp.le.s32.totalorder 1, %s25
      %p406 = scmp.lt.s32.totalorder %s25, 3
      %p407 = pnand %p405, %p406
      %p408 = pneg %p407
      // Predicated region
      $region69: #{inception_forward.1} parent=5 // pred_check
        _
      $region70: #{inception_forward.1} parent=5 // pred_check_branch
        %410 = sbr.rel (%p407) target = $region72
      $region71: #{inception_forward.1} parent=5 // pred_region
        %s411 = ssub.s32 %s25, 1
        %s412 = sand.u32 %s38, 1
        %s413 = scalar_lea.sflag [#allocation5], %s412
        %s414 = sand.u32 %s38, 1
        %s415 = smul.addr %s414, 256
        %s416 = scalar_lea.vmem [#allocation4], %s415
        // Predicated region
        $region73: #{inception_forward.1} parent=71 // pred_check
          %p417 = pneg %p51
        $region74: #{inception_forward.1} parent=71 // pred_check_branch
          %419 = sbr.rel (%p417) target = $region76
        $region75: #{inception_forward.1} parent=71 // pred_region
          %420 = dma.done %s413, 4096
        $region76: #{inception_forward.1} parent=71 // pred_fallthru
          _
        %s421 = sand.u32 %s38, 1
        %s422 = scalar_lea.sflag [#allocation5], %s421
        %s423 = sand.u32 %s38, 1
        %s424 = smul.addr %s423, 256
        %s425 = scalar_lea.vmem [#allocation4], %s424
        %p426 = pneg %p51
        %p427 = pneg %p48
        %p428 = pneg %p72
        %p429 = pneg %p69
        %p430 = pneg %p93
        %p431 = pneg %p90
        %p432 = pneg %p114
        %p433 = pneg %p111
        %p434 = pneg %p135
        %p435 = pneg %p132
        %p436 = pneg %p156
        %p437 = pneg %p153
        %p438 = pneg %p177
        %p439 = pneg %p174
        %p440 = pneg %p198
        %p441 = pneg %p195
        %p442 = pneg %p219
        %p443 = pneg %p216
        %p444 = pneg %p240
        %p445 = pneg %p237
        %p446 = pneg %p261
        %p447 = pneg %p258
        %p448 = pneg %p282
        %p449 = pneg %p279
        %p450 = pneg %p303
        %p451 = pneg %p300
        %p452 = pneg %p329
        %p453 = pneg %p326
        %s454 = sand.u32 %s316, 1
        %s455 = scalar_lea.sflag [#allocation6], %s454
        %s456 = sand.u32 %s316, 1
        %s457 = smul.addr %s456, 256
        %s458 = scalar_lea.vmem [#allocation7], %s457
        %v460 = vld [vmem:[%s416] sm:$0xff]
        %v461 = vld [vmem:[%s416 + $0x8] sm:$0xff]
        %v462 = vld [vmem:[%s416 + $0x10] sm:$0xff]
        %v463 = vld [vmem:[%s416 + $0x18] sm:$0xff]
        %v464 = vld [vmem:[%s416 + $0x20] sm:$0xff]
        %v465 = vld [vmem:[%s416 + $0x28] sm:$0xff]
        %v466 = vld [vmem:[%s416 + $0x30] sm:$0xff]
        %v467 = vld [vmem:[%s416 + $0x38] sm:$0xff]
        %v468 = vld [vmem:[%s416 + $0x40] sm:$0xff]
        %v469 = vld [vmem:[%s416 + $0x48] sm:$0xff]
        %v470 = vld [vmem:[%s416 + $0x50] sm:$0xff]
        %v471 = vld [vmem:[%s416 + $0x58] sm:$0xff]
        %v472 = vld [vmem:[%s416 + $0x60] sm:$0xff]
        %v473 = vld [vmem:[%s416 + $0x68] sm:$0xff]
        %v474 = vld [vmem:[%s416 + $0x70] sm:$0xff]
        %v475 = vld [vmem:[%s416 + $0x78] sm:$0xff]
        %v476 = vld [vmem:[%s416 + $0x80] sm:$0xff]
        %v477 = vld [vmem:[%s416 + $0x88] sm:$0xff]
        %v478 = vld [vmem:[%s416 + $0x90] sm:$0xff]
        %v479 = vld [vmem:[%s416 + $0x98] sm:$0xff]
        %v480 = vld [vmem:[%s416 + $0xa0] sm:$0xff]
        %v481 = vld [vmem:[%s416 + $0xa8] sm:$0xff]
        %v482 = vld [vmem:[%s416 + $0xb0] sm:$0xff]
        %v483 = vld [vmem:[%s416 + $0xb8] sm:$0xff]
        %v484 = vld [vmem:[%s416 + $0xc0] sm:$0xff]
        %v485 = vld [vmem:[%s416 + $0xc8] sm:$0xff]
        %v486 = vld [vmem:[%s416 + $0xd0] sm:$0xff]
        %v487 = vld [vmem:[%s416 + $0xd8] sm:$0xff]
        %v488 = vld [vmem:[%s416 + $0xe0] sm:$0xff]
        %v489 = vld [vmem:[%s416 + $0xe8] sm:$0xff]
        %v490 = vld [vmem:[%s416 + $0xf0] sm:$0xff]
        %v491 = vld [vmem:[%s416 + $0xf8] sm:$0xff]
        %v492 = vlaneseq
        %v493 = vshrl.u32 %v492, 7
        %v494 = vadd.s32 %v493, 8
        %vm495 = vcmp.eq.s32.totalorder %v493, 0
        %vm496 = vcmp.eq.s32.totalorder %v494, 0
        %vm497 = vcmp.eq.s32.totalorder %v493, 15
        %vm498 = vcmp.eq.s32.totalorder %v494, 15
        %v499 = vrot.slane %v460, 7
        %v500 = vrot.slane %v461, 7
        %v501 = vrot.slane %v462, 7
        %v502 = vrot.slane %v463, 7
        %v503 = vrot.slane %v464, 7
        %v504 = vrot.slane %v465, 7
        %v505 = vrot.slane %v466, 7
        %v506 = vrot.slane %v467, 7
        %v507 = vrot.slane %v468, 7
        %v508 = vrot.slane %v469, 7
        %v509 = vrot.slane %v470, 7
        %v510 = vrot.slane %v471, 7
        %v511 = vrot.slane %v472, 7
        %v512 = vrot.slane %v473, 7
        %v513 = vrot.slane %v474, 7
        %v514 = vrot.slane %v475, 7
        %v515 = vrot.slane %v476, 7
        %v516 = vrot.slane %v477, 7
        %v517 = vrot.slane %v478, 7
        %v518 = vrot.slane %v479, 7
        %v519 = vrot.slane %v480, 7
        %v520 = vrot.slane %v481, 7
        %v521 = vrot.slane %v482, 7
        %v522 = vrot.slane %v483, 7
        %v523 = vrot.slane %v484, 7
        %v524 = vrot.slane %v485, 7
        %v525 = vrot.slane %v486, 7
        %v526 = vrot.slane %v487, 7
        %v527 = vrot.slane %v488, 7
        %v528 = vrot.slane %v489, 7
        %v529 = vrot.slane %v490, 7
        %v530 = vrot.slane %v491, 7
        %vm531 = vcmp.lt.s32.totalorder %v493, 1
        %v532 = vsel %vm531, %v529, %v530
        %v533 = vsel %vm531, %v528, %v529
        %v534 = vsel %vm531, %v527, %v528
        %v535 = vsel %vm531, %v526, %v527
        %v536 = vsel %vm531, %v525, %v526
        %v537 = vsel %vm531, %v524, %v525
        %v538 = vsel %vm531, %v523, %v524
        %v539 = vsel %vm531, %v522, %v523
        %v540 = vsel %vm531, %v521, %v522
        %v541 = vsel %vm531, %v520, %v521
        %v542 = vsel %vm531, %v519, %v520
        %v543 = vsel %vm531, %v518, %v519
        %v544 = vsel %vm531, %v517, %v518
        %v545 = vsel %vm531, %v516, %v517
        %v546 = vsel %vm531, %v515, %v516
        %v547 = vsel %vm531, %v514, %v515
        %v548 = vsel %vm531, %v513, %v514
        %v549 = vsel %vm531, %v512, %v513
        %v550 = vsel %vm531, %v511, %v512
        %v551 = vsel %vm531, %v510, %v511
        %v552 = vsel %vm531, %v509, %v510
        %v553 = vsel %vm531, %v508, %v509
        %v554 = vsel %vm531, %v507, %v508
        %v555 = vsel %vm531, %v506, %v507
        %v556 = vsel %vm531, %v505, %v506
        %v557 = vsel %vm531, %v504, %v505
        %v558 = vsel %vm531, %v503, %v504
        %v559 = vsel %vm531, %v502, %v503
        %v560 = vsel %vm531, %v501, %v502
        %v561 = vsel %vm531, %v500, %v501
        %v562 = vsel %vm531, %v499, %v500
        %v563 = vsel %vm531, %v530, %v499
        %v564 = vsel %vm495, -inf, %v563
        %v565 = vsel %vm496, -inf, %v562
        %v566 = vsel %vm495, -inf, %v561
        %v567 = vsel %vm496, -inf, %v560
        %v568 = vsel %vm495, -inf, %v559
        %v569 = vsel %vm496, -inf, %v558
        %v570 = vsel %vm495, -inf, %v557
        %v571 = vsel %vm496, -inf, %v556
        %v572 = vsel %vm495, -inf, %v555
        %v573 = vsel %vm496, -inf, %v554
        %v574 = vsel %vm495, -inf, %v553
        %v575 = vsel %vm496, -inf, %v552
        %v576 = vsel %vm495, -inf, %v551
        %v577 = vsel %vm496, -inf, %v550
        %v578 = vsel %vm495, -inf, %v549
        %v579 = vsel %vm496, -inf, %v548
        %v580 = vsel %vm495, -inf, %v547
        %v581 = vsel %vm496, -inf, %v546
        %v582 = vsel %vm495, -inf, %v545
        %v583 = vsel %vm496, -inf, %v544
        %v584 = vsel %vm495, -inf, %v543
        %v585 = vsel %vm496, -inf, %v542
        %v586 = vsel %vm495, -inf, %v541
        %v587 = vsel %vm496, -inf, %v540
        %v588 = vsel %vm495, -inf, %v539
        %v589 = vsel %vm496, -inf, %v538
        %v590 = vsel %vm495, -inf, %v537
        %v591 = vsel %vm496, -inf, %v536
        %v592 = vsel %vm495, -inf, %v535
        %v593 = vsel %vm496, -inf, %v534
        %v594 = vsel %vm495, -inf, %v533
        %v595 = vsel %vm496, -inf, %v532
        %v596 = vrot.slane %v460, 1
        %v597 = vrot.slane %v461, 1
        %v598 = vrot.slane %v462, 1
        %v599 = vrot.slane %v463, 1
        %v600 = vrot.slane %v464, 1
        %v601 = vrot.slane %v465, 1
        %v602 = vrot.slane %v466, 1
        %v603 = vrot.slane %v467, 1
        %v604 = vrot.slane %v468, 1
        %v605 = vrot.slane %v469, 1
        %v606 = vrot.slane %v470, 1
        %v607 = vrot.slane %v471, 1
        %v608 = vrot.slane %v472, 1
        %v609 = vrot.slane %v473, 1
        %v610 = vrot.slane %v474, 1
        %v611 = vrot.slane %v475, 1
        %v612 = vrot.slane %v476, 1
        %v613 = vrot.slane %v477, 1
        %v614 = vrot.slane %v478, 1
        %v615 = vrot.slane %v479, 1
        %v616 = vrot.slane %v480, 1
        %v617 = vrot.slane %v481, 1
        %v618 = vrot.slane %v482, 1
        %v619 = vrot.slane %v483, 1
        %v620 = vrot.slane %v484, 1
        %v621 = vrot.slane %v485, 1
        %v622 = vrot.slane %v486, 1
        %v623 = vrot.slane %v487, 1
        %v624 = vrot.slane %v488, 1
        %v625 = vrot.slane %v489, 1
        %v626 = vrot.slane %v490, 1
        %v627 = vrot.slane %v491, 1
        %vm628 = vcmp.lt.s32.totalorder %v493, 7
        %v629 = vsel %vm628, %v626, %v627
        %v630 = vsel %vm628, %v625, %v626
        %v631 = vsel %vm628, %v624, %v625
        %v632 = vsel %vm628, %v623, %v624
        %v633 = vsel %vm628, %v622, %v623
        %v634 = vsel %vm628, %v621, %v622
        %v635 = vsel %vm628, %v620, %v621
        %v636 = vsel %vm628, %v619, %v620
        %v637 = vsel %vm628, %v618, %v619
        %v638 = vsel %vm628, %v617, %v618
        %v639 = vsel %vm628, %v616, %v617
        %v640 = vsel %vm628, %v615, %v616
        %v641 = vsel %vm628, %v614, %v615
        %v642 = vsel %vm628, %v613, %v614
        %v643 = vsel %vm628, %v612, %v613
        %v644 = vsel %vm628, %v611, %v612
        %v645 = vsel %vm628, %v610, %v611
        %v646 = vsel %vm628, %v609, %v610
        %v647 = vsel %vm628, %v608, %v609
        %v648 = vsel %vm628, %v607, %v608
        %v649 = vsel %vm628, %v606, %v607
        %v650 = vsel %vm628, %v605, %v606
        %v651 = vsel %vm628, %v604, %v605
        %v652 = vsel %vm628, %v603, %v604
        %v653 = vsel %vm628, %v602, %v603
        %v654 = vsel %vm628, %v601, %v602
        %v655 = vsel %vm628, %v600, %v601
        %v656 = vsel %vm628, %v599, %v600
        %v657 = vsel %vm628, %v598, %v599
        %v658 = vsel %vm628, %v597, %v598
        %v659 = vsel %vm628, %v596, %v597
        %v660 = vsel %vm628, %v627, %v596
        %v661 = vsel %vm497, -inf, %v659
        %v662 = vsel %vm498, -inf, %v658
        %v663 = vsel %vm497, -inf, %v657
        %v664 = vsel %vm498, -inf, %v656
        %v665 = vsel %vm497, -inf, %v655
        %v666 = vsel %vm498, -inf, %v654
        %v667 = vsel %vm497, -inf, %v653
        %v668 = vsel %vm498, -inf, %v652
        %v669 = vsel %vm497, -inf, %v651
        %v670 = vsel %vm498, -inf, %v650
        %v671 = vsel %vm497, -inf, %v649
        %v672 = vsel %vm498, -inf, %v648
        %v673 = vsel %vm497, -inf, %v647
        %v674 = vsel %vm498, -inf, %v646
        %v675 = vsel %vm497, -inf, %v645
        %v676 = vsel %vm498, -inf, %v644
        %v677 = vsel %vm497, -inf, %v643
        %v678 = vsel %vm498, -inf, %v642
        %v679 = vsel %vm497, -inf, %v641
        %v680 = vsel %vm498, -inf, %v640
        %v681 = vsel %vm497, -inf, %v639
        %v682 = vsel %vm498, -inf, %v638
        %v683 = vsel %vm497, -inf, %v637
        %v684 = vsel %vm498, -inf, %v636
        %v685 = vsel %vm497, -inf, %v635
        %v686 = vsel %vm498, -inf, %v634
        %v687 = vsel %vm497, -inf, %v633
        %v688 = vsel %vm498, -inf, %v632
        %v689 = vsel %vm497, -inf, %v631
        %v690 = vsel %vm498, -inf, %v630
        %v691 = vsel %vm497, -inf, %v629
        %v692 = vsel %vm498, -inf, %v660
        %v693 = vmax.f32 %v564, %v661
        %v694 = vmax.f32 %v565, %v662
        %v695 = vmax.f32 %v566, %v663
        %v696 = vmax.f32 %v567, %v664
        %v697 = vmax.f32 %v568, %v665
        %v698 = vmax.f32 %v569, %v666
        %v699 = vmax.f32 %v570, %v667
        %v700 = vmax.f32 %v571, %v668
        %v701 = vmax.f32 %v572, %v669
        %v702 = vmax.f32 %v573, %v670
        %v703 = vmax.f32 %v574, %v671
        %v704 = vmax.f32 %v575, %v672
        %v705 = vmax.f32 %v576, %v673
        %v706 = vmax.f32 %v577, %v674
        %v707 = vmax.f32 %v578, %v675
        %v708 = vmax.f32 %v579, %v676
        %v709 = vmax.f32 %v580, %v677
        %v710 = vmax.f32 %v581, %v678
        %v711 = vmax.f32 %v582, %v679
        %v712 = vmax.f32 %v583, %v680
        %v713 = vmax.f32 %v584, %v681
        %v714 = vmax.f32 %v585, %v682
        %v715 = vmax.f32 %v586, %v683
        %v716 = vmax.f32 %v587, %v684
        %v717 = vmax.f32 %v588, %v685
        %v718 = vmax.f32 %v589, %v686
        %v719 = vmax.f32 %v590, %v687
        %v720 = vmax.f32 %v591, %v688
        %v721 = vmax.f32 %v592, %v689
        %v722 = vmax.f32 %v593, %v690
        %v723 = vmax.f32 %v594, %v691
        %v724 = vmax.f32 %v595, %v692
        %v725 = vmax.f32 %v460, %v693
        %v726 = vmax.f32 %v461, %v694
        %v727 = vmax.f32 %v462, %v695
        %v728 = vmax.f32 %v463, %v696
        %v729 = vmax.f32 %v464, %v697
        %v730 = vmax.f32 %v465, %v698
        %v731 = vmax.f32 %v466, %v699
        %v732 = vmax.f32 %v467, %v700
        %v733 = vmax.f32 %v468, %v701
        %v734 = vmax.f32 %v469, %v702
        %v735 = vmax.f32 %v470, %v703
        %v736 = vmax.f32 %v471, %v704
        %v737 = vmax.f32 %v472, %v705
        %v738 = vmax.f32 %v473, %v706
        %v739 = vmax.f32 %v474, %v707
        %v740 = vmax.f32 %v475, %v708
        %v741 = vmax.f32 %v476, %v709
        %v742 = vmax.f32 %v477, %v710
        %v743 = vmax.f32 %v478, %v711
        %v744 = vmax.f32 %v479, %v712
        %v745 = vmax.f32 %v480, %v713
        %v746 = vmax.f32 %v481, %v714
        %v747 = vmax.f32 %v482, %v715
        %v748 = vmax.f32 %v483, %v716
        %v749 = vmax.f32 %v484, %v717
        %v750 = vmax.f32 %v485, %v718
        %v751 = vmax.f32 %v486, %v719
        %v752 = vmax.f32 %v487, %v720
        %v753 = vmax.f32 %v488, %v721
        %v754 = vmax.f32 %v489, %v722
        %v755 = vmax.f32 %v490, %v723
        %v756 = vmax.f32 %v491, %v724
        %757 = vst [vmem:[#allocation2] sm:$0xff] -inf
        %758 = vst [vmem:[#allocation2 + $0x8] sm:$0xff] -inf
        %s759 = scalar_lea.vmem [#allocation2], 272
        %760 = vst [vmem:[%s759] sm:$0xff] -inf
        %761 = vst [vmem:[%s759 + $0x8] sm:$0xff] -inf
        %s762 = scalar_lea.vmem [#allocation2], 16
        %763 = vst [vmem:[%s762] sm:$0xff] %v725
        %764 = vst [vmem:[%s762 + $0x8] sm:$0xff] %v726
        %765 = vst [vmem:[%s762 + $0x10] sm:$0xff] %v727
        %766 = vst [vmem:[%s762 + $0x18] sm:$0xff] %v728
        %767 = vst [vmem:[%s762 + $0x20] sm:$0xff] %v729
        %768 = vst [vmem:[%s762 + $0x28] sm:$0xff] %v730
        %769 = vst [vmem:[%s762 + $0x30] sm:$0xff] %v731
        %770 = vst [vmem:[%s762 + $0x38] sm:$0xff] %v732
        %771 = vst [vmem:[%s762 + $0x40] sm:$0xff] %v733
        %772 = vst [vmem:[%s762 + $0x48] sm:$0xff] %v734
        %773 = vst [vmem:[%s762 + $0x50] sm:$0xff] %v735
        %774 = vst [vmem:[%s762 + $0x58] sm:$0xff] %v736
        %775 = vst [vmem:[%s762 + $0x60] sm:$0xff] %v737
        %776 = vst [vmem:[%s762 + $0x68] sm:$0xff] %v738
        %777 = vst [vmem:[%s762 + $0x70] sm:$0xff] %v739
        %778 = vst [vmem:[%s762 + $0x78] sm:$0xff] %v740
        %779 = vst [vmem:[%s762 + $0x80] sm:$0xff] %v741
        %780 = vst [vmem:[%s762 + $0x88] sm:$0xff] %v742
        %781 = vst [vmem:[%s762 + $0x90] sm:$0xff] %v743
        %782 = vst [vmem:[%s762 + $0x98] sm:$0xff] %v744
        %783 = vst [vmem:[%s762 + $0xa0] sm:$0xff] %v745
        %784 = vst [vmem:[%s762 + $0xa8] sm:$0xff] %v746
        %785 = vst [vmem:[%s762 + $0xb0] sm:$0xff] %v747
        %786 = vst [vmem:[%s762 + $0xb8] sm:$0xff] %v748
        %787 = vst [vmem:[%s762 + $0xc0] sm:$0xff] %v749
        %788 = vst [vmem:[%s762 + $0xc8] sm:$0xff] %v750
        %789 = vst [vmem:[%s762 + $0xd0] sm:$0xff] %v751
        %790 = vst [vmem:[%s762 + $0xd8] sm:$0xff] %v752
        %791 = vst [vmem:[%s762 + $0xe0] sm:$0xff] %v753
        %792 = vst [vmem:[%s762 + $0xe8] sm:$0xff] %v754
        %793 = vst [vmem:[%s762 + $0xf0] sm:$0xff] %v755
        %794 = vst [vmem:[%s762 + $0xf8] sm:$0xff] %v756
        %v795 = vld [vmem:[#allocation2] sm:$0xff]
        %v796 = vld [vmem:[#allocation2 + $0x8] sm:$0xff]
        %v797 = vld [vmem:[#allocation2 + $0x10] sm:$0xff]
        %v798 = vld [vmem:[#allocation2 + $0x18] sm:$0xff]
        %v799 = vld [vmem:[#allocation2 + $0x20] sm:$0xff]
        %v800 = vld [vmem:[#allocation2 + $0x28] sm:$0xff]
        %v801 = vld [vmem:[#allocation2 + $0x30] sm:$0xff]
        %v802 = vld [vmem:[#allocation2 + $0x38] sm:$0xff]
        %v803 = vld [vmem:[#allocation2 + $0x40] sm:$0xff]
        %v804 = vld [vmem:[#allocation2 + $0x48] sm:$0xff]
        %v805 = vld [vmem:[#allocation2 + $0x50] sm:$0xff]
        %v806 = vld [vmem:[#allocation2 + $0x58] sm:$0xff]
        %v807 = vld [vmem:[#allocation2 + $0x60] sm:$0xff]
        %v808 = vld [vmem:[#allocation2 + $0x68] sm:$0xff]
        %v809 = vld [vmem:[#allocation2 + $0x70] sm:$0xff]
        %v810 = vld [vmem:[#allocation2 + $0x78] sm:$0xff]
        %v811 = vld [vmem:[#allocation2 + $0x80] sm:$0xff]
        %v812 = vld [vmem:[#allocation2 + $0x88] sm:$0xff]
        %v813 = vld [vmem:[#allocation2 + $0x90] sm:$0xff]
        %v814 = vld [vmem:[#allocation2 + $0x98] sm:$0xff]
        %v815 = vld [vmem:[#allocation2 + $0xa0] sm:$0xff]
        %v816 = vld [vmem:[#allocation2 + $0xa8] sm:$0xff]
        %v817 = vld [vmem:[#allocation2 + $0xb0] sm:$0xff]
        %v818 = vld [vmem:[#allocation2 + $0xb8] sm:$0xff]
        %v819 = vld [vmem:[#allocation2 + $0xc0] sm:$0xff]
        %v820 = vld [vmem:[#allocation2 + $0xc8] sm:$0xff]
        %v821 = vld [vmem:[#allocation2 + $0xd0] sm:$0xff]
        %v822 = vld [vmem:[#allocation2 + $0xd8] sm:$0xff]
        %v823 = vld [vmem:[#allocation2 + $0xe0] sm:$0xff]
        %v824 = vld [vmem:[#allocation2 + $0xe8] sm:$0xff]
        %v825 = vld [vmem:[#allocation2 + $0xf0] sm:$0xff]
        %v826 = vld [vmem:[#allocation2 + $0xf8] sm:$0xff]
        %s827 = scalar_lea.vmem [#allocation2], 32
        %v828 = vld [vmem:[%s827] sm:$0xff]
        %v829 = vld [vmem:[%s827 + $0x8] sm:$0xff]
        %v830 = vld [vmem:[%s827 + $0x10] sm:$0xff]
        %v831 = vld [vmem:[%s827 + $0x18] sm:$0xff]
        %v832 = vld [vmem:[%s827 + $0x20] sm:$0xff]
        %v833 = vld [vmem:[%s827 + $0x28] sm:$0xff]
        %v834 = vld [vmem:[%s827 + $0x30] sm:$0xff]
        %v835 = vld [vmem:[%s827 + $0x38] sm:$0xff]
        %v836 = vld [vmem:[%s827 + $0x40] sm:$0xff]
        %v837 = vld [vmem:[%s827 + $0x48] sm:$0xff]
        %v838 = vld [vmem:[%s827 + $0x50] sm:$0xff]
        %v839 = vld [vmem:[%s827 + $0x58] sm:$0xff]
        %v840 = vld [vmem:[%s827 + $0x60] sm:$0xff]
        %v841 = vld [vmem:[%s827 + $0x68] sm:$0xff]
        %v842 = vld [vmem:[%s827 + $0x70] sm:$0xff]
        %v843 = vld [vmem:[%s827 + $0x78] sm:$0xff]
        %v844 = vld [vmem:[%s827 + $0x80] sm:$0xff]
        %v845 = vld [vmem:[%s827 + $0x88] sm:$0xff]
        %v846 = vld [vmem:[%s827 + $0x90] sm:$0xff]
        %v847 = vld [vmem:[%s827 + $0x98] sm:$0xff]
        %v848 = vld [vmem:[%s827 + $0xa0] sm:$0xff]
        %v849 = vld [vmem:[%s827 + $0xa8] sm:$0xff]
        %v850 = vld [vmem:[%s827 + $0xb0] sm:$0xff]
        %v851 = vld [vmem:[%s827 + $0xb8] sm:$0xff]
        %v852 = vld [vmem:[%s827 + $0xc0] sm:$0xff]
        %v853 = vld [vmem:[%s827 + $0xc8] sm:$0xff]
        %v854 = vld [vmem:[%s827 + $0xd0] sm:$0xff]
        %v855 = vld [vmem:[%s827 + $0xd8] sm:$0xff]
        %v856 = vld [vmem:[%s827 + $0xe0] sm:$0xff]
        %v857 = vld [vmem:[%s827 + $0xe8] sm:$0xff]
        %v858 = vld [vmem:[%s827 + $0xf0] sm:$0xff]
        %v859 = vld [vmem:[%s827 + $0xf8] sm:$0xff]
        %v860 = vmax.f32 %v795, %v828
        %v861 = vmax.f32 %v796, %v829
        %v862 = vmax.f32 %v797, %v830
        %v863 = vmax.f32 %v798, %v831
        %v864 = vmax.f32 %v799, %v832
        %v865 = vmax.f32 %v800, %v833
        %v866 = vmax.f32 %v801, %v834
        %v867 = vmax.f32 %v802, %v835
        %v868 = vmax.f32 %v803, %v836
        %v869 = vmax.f32 %v804, %v837
        %v870 = vmax.f32 %v805, %v838
        %v871 = vmax.f32 %v806, %v839
        %v872 = vmax.f32 %v807, %v840
        %v873 = vmax.f32 %v808, %v841
        %v874 = vmax.f32 %v809, %v842
        %v875 = vmax.f32 %v810, %v843
        %v876 = vmax.f32 %v811, %v844
        %v877 = vmax.f32 %v812, %v845
        %v878 = vmax.f32 %v813, %v846
        %v879 = vmax.f32 %v814, %v847
        %v880 = vmax.f32 %v815, %v848
        %v881 = vmax.f32 %v816, %v849
        %v882 = vmax.f32 %v817, %v850
        %v883 = vmax.f32 %v818, %v851
        %v884 = vmax.f32 %v819, %v852
        %v885 = vmax.f32 %v820, %v853
        %v886 = vmax.f32 %v821, %v854
        %v887 = vmax.f32 %v822, %v855
        %v888 = vmax.f32 %v823, %v856
        %v889 = vmax.f32 %v824, %v857
        %v890 = vmax.f32 %v825, %v858
        %v891 = vmax.f32 %v826, %v859
        %v892 = vmax.f32 %v725, %v860
        %v893 = vmax.f32 %v726, %v861
        %v894 = vmax.f32 %v727, %v862
        %v895 = vmax.f32 %v728, %v863
        %v896 = vmax.f32 %v729, %v864
        %v897 = vmax.f32 %v730, %v865
        %v898 = vmax.f32 %v731, %v866
        %v899 = vmax.f32 %v732, %v867
        %v900 = vmax.f32 %v733, %v868
        %v901 = vmax.f32 %v734, %v869
        %v902 = vmax.f32 %v735, %v870
        %v903 = vmax.f32 %v736, %v871
        %v904 = vmax.f32 %v737, %v872
        %v905 = vmax.f32 %v738, %v873
        %v906 = vmax.f32 %v739, %v874
        %v907 = vmax.f32 %v740, %v875
        %v908 = vmax.f32 %v741, %v876
        %v909 = vmax.f32 %v742, %v877
        %v910 = vmax.f32 %v743, %v878
        %v911 = vmax.f32 %v744, %v879
        %v912 = vmax.f32 %v745, %v880
        %v913 = vmax.f32 %v746, %v881
        %v914 = vmax.f32 %v747, %v882
        %v915 = vmax.f32 %v748, %v883
        %v916 = vmax.f32 %v749, %v884
        %v917 = vmax.f32 %v750, %v885
        %v918 = vmax.f32 %v751, %v886
        %v919 = vmax.f32 %v752, %v887
        %v920 = vmax.f32 %v753, %v888
        %v921 = vmax.f32 %v754, %v889
        %v922 = vmax.f32 %v755, %v890
        %v923 = vmax.f32 %v756, %v891
        %v924 = vpack.c.bf16 %v461, %v460
        %v925 = vpack.c.bf16 %v463, %v462
        %v926 = vpack.c.bf16 %v465, %v464
        %v927 = vpack.c.bf16 %v467, %v466
        %v928 = vpack.c.bf16 %v469, %v468
        %v929 = vpack.c.bf16 %v471, %v470
        %v930 = vpack.c.bf16 %v473, %v472
        %v931 = vpack.c.bf16 %v475, %v474
        %v932 = vpack.c.bf16 %v477, %v476
        %v933 = vpack.c.bf16 %v479, %v478
        %v934 = vpack.c.bf16 %v481, %v480
        %v935 = vpack.c.bf16 %v483, %v482
        %v936 = vpack.c.bf16 %v485, %v484
        %v937 = vpack.c.bf16 %v487, %v486
        %v938 = vpack.c.bf16 %v489, %v488
        %v939 = vpack.c.bf16 %v491, %v490
        %v940 = vpack.c.bf16 %v893, %v892
        %v941 = vpack.c.bf16 %v895, %v894
        %v942 = vpack.c.bf16 %v897, %v896
        %v943 = vpack.c.bf16 %v899, %v898
        %v944 = vpack.c.bf16 %v901, %v900
        %v945 = vpack.c.bf16 %v903, %v902
        %v946 = vpack.c.bf16 %v905, %v904
        %v947 = vpack.c.bf16 %v907, %v906
        %v948 = vpack.c.bf16 %v909, %v908
        %v949 = vpack.c.bf16 %v911, %v910
        %v950 = vpack.c.bf16 %v913, %v912
        %v951 = vpack.c.bf16 %v915, %v914
        %v952 = vpack.c.bf16 %v917, %v916
        %v953 = vpack.c.bf16 %v919, %v918
        %v954 = vpack.c.bf16 %v921, %v920
        %v955 = vpack.c.bf16 %v923, %v922
        %v956 = vld [vmem:[%s1] sm:$0xf]
        %v957 = vld [vmem:[%s1 + $0x4] sm:$0xf]
        %v958 = vld [vmem:[%s1 + $0x8] sm:$0xf]
        %v959 = vld [vmem:[%s1 + $0xc] sm:$0xf]
        %v960 = vld [vmem:[%s1 + $0x10] sm:$0xf]
        %v961 = vld [vmem:[%s1 + $0x14] sm:$0xf]
        %v962 = vld [vmem:[%s1 + $0x18] sm:$0xf]
        %v963 = vld [vmem:[%s1 + $0x1c] sm:$0xf]
        %v964 = vld [vmem:[%s1 + $0x20] sm:$0xf]
        %v965 = vld [vmem:[%s1 + $0x24] sm:$0xf]
        %v966 = vld [vmem:[%s1 + $0x28] sm:$0xf]
        %v967 = vld [vmem:[%s1 + $0x2c] sm:$0xf]
        %v968 = vld [vmem:[%s1 + $0x30] sm:$0xf]
        %v969 = vld [vmem:[%s1 + $0x34] sm:$0xf]
        %v970 = vld [vmem:[%s1 + $0x38] sm:$0xf]
        %v971 = vld [vmem:[%s1 + $0x3c] sm:$0xf]
        %v988 = vunpack.c.l.b16 %v956
        %v989 = vunpack.c.l.b16 %v957
        %v990 = vunpack.c.l.b16 %v958
        %v991 = vunpack.c.l.b16 %v959
        %v992 = vunpack.c.l.b16 %v960
        %v993 = vunpack.c.l.b16 %v961
        %v994 = vunpack.c.l.b16 %v962
        %v995 = vunpack.c.l.b16 %v963
        %v996 = vunpack.c.l.b16 %v964
        %v997 = vunpack.c.l.b16 %v965
        %v998 = vunpack.c.l.b16 %v966
        %v999 = vunpack.c.l.b16 %v967
        %v1000 = vunpack.c.l.b16 %v968
        %v1001 = vunpack.c.l.b16 %v969
        %v1002 = vunpack.c.l.b16 %v970
        %v1003 = vunpack.c.l.b16 %v971
        %v1004 = vpack.c.b16 %v989, %v988
        %v1005 = vpack.c.b16 %v991, %v990
        %v1006 = vpack.c.b16 %v993, %v992
        %v1007 = vpack.c.b16 %v995, %v994
        %v1008 = vpack.c.b16 %v997, %v996
        %v1009 = vpack.c.b16 %v999, %v998
        %v1010 = vpack.c.b16 %v1001, %v1000
        %v1011 = vpack.c.b16 %v1003, %v1002
        %1020 = vmatprep.subr.bf16.mxu0 0
        %1021 = vmatpush1.bf16.msra.mxu0 %v1004
        %1022 = vmatprep.subr.bf16.mxu0 0
        %1023 = vmatpush1.bf16.msra.mxu0 %v1005
        %1024 = vmatprep.subr.bf16.mxu0 0
        %1025 = vmatpush1.bf16.msra.mxu0 %v1006
        %1026 = vmatprep.subr.bf16.mxu0 0
        %1027 = vmatpush1.bf16.msra.mxu0 %v1007
        %1028 = vmatprep.subr.bf16.mxu0 0
        %1029 = vmatpush1.bf16.msra.mxu0 %v1008
        %1030 = vmatprep.subr.bf16.mxu0 0
        %1031 = vmatpush1.bf16.msra.mxu0 %v1009
        %1032 = vmatprep.subr.bf16.mxu0 0
        %1033 = vmatpush1.bf16.msra.mxu0 %v1010
        %1034 = vmatprep.subr.bf16.mxu0 0
        %1035 = vmatpush1.bf16.msra.mxu0 %v1011
        %1036 = vmatprep.subr.bf16.mxu0 0
        %1037 = vmatpush1.bf16.msra.mxu0 0
        %1038 = vmatprep.subr.bf16.mxu0 0
        %1039 = vmatpush1.bf16.msra.mxu0 0
        %1040 = vmatprep.subr.bf16.mxu0 0
        %1041 = vmatpush1.bf16.msra.mxu0 0
        %1042 = vmatprep.subr.bf16.mxu0 0
        %1043 = vmatpush1.bf16.msra.mxu0 0
        %1044 = vmatprep.subr.bf16.mxu0 0
        %1045 = vmatpush1.bf16.msra.mxu0 0
        %1046 = vmatprep.subr.bf16.mxu0 0
        %1047 = vmatpush1.bf16.msra.mxu0 0
        %1048 = vmatprep.subr.bf16.mxu0 0
        %1049 = vmatpush1.bf16.msra.mxu0 0
        %1050 = vmatprep.subr.bf16.mxu0 0
        %1051 = vmatpush1.bf16.msra.mxu0 0
        %1052 = vmatprep.mubr.bf16.mxu0 0
        %1053 = vmatmul.mubr.bf16.gmra.mrb[0].mxu0 %v924
        %v1054 = vpop.f32.mrb[0].mxu0
        %v1055 = vadd.f32 0.0, %v1054
        %v1056 = vpop.f32.mrb[0].mxu0
        %v1057 = vpop.f32.mrb[0].mxu0
        %v1058 = vadd.f32 0.0, %v1057
        %v1059 = vpop.f32.mrb[0].mxu0
        %1060 = vmatprep.mubr.bf16.mxu0 0
        %1061 = vmatmul.mubr.bf16.gmra.mrb[0].mxu0 %v925
        %v1062 = vpop.f32.mrb[0].mxu0
        %v1063 = vadd.f32 0.0, %v1062
        %v1064 = vpop.f32.mrb[0].mxu0
        %v1065 = vpop.f32.mrb[0].mxu0
        %v1066 = vadd.f32 0.0, %v1065
        %v1067 = vpop.f32.mrb[0].mxu0
        %1068 = vmatprep.mubr.bf16.mxu0 0
        %1069 = vmatmul.mubr.bf16.gmra.mrb[0].mxu0 %v926
        %v1070 = vpop.f32.mrb[0].mxu0
        %v1071 = vadd.f32 0.0, %v1070
        %v1072 = vpop.f32.mrb[0].mxu0
        %v1073 = vpop.f32.mrb[0].mxu0
        %v1074 = vadd.f32 0.0, %v1073
        %v1075 = vpop.f32.mrb[0].mxu0
        %1076 = vmatprep.mubr.bf16.mxu0 0
        %1077 = vmatmul.mubr.bf16.gmra.mrb[0].mxu0 %v927
        %v1078 = vpop.f32.mrb[0].mxu0
        %v1079 = vadd.f32 0.0, %v1078
        %v1080 = vpop.f32.mrb[0].mxu0
        %v1081 = vpop.f32.mrb[0].mxu0
        %v1082 = vadd.f32 0.0, %v1081
        %v1083 = vpop.f32.mrb[0].mxu0
        %1084 = vmatprep.mubr.bf16.mxu0 0
        %1085 = vmatmul.mubr.bf16.gmra.mrb[0].mxu0 %v928
        %v1086 = vpop.f32.mrb[0].mxu0
        %v1087 = vadd.f32 0.0, %v1086
        %v1088 = vpop.f32.mrb[0].mxu0
        %v1089 = vpop.f32.mrb[0].mxu0
        %v1090 = vadd.f32 0.0, %v1089
        %v1091 = vpop.f32.mrb[0].mxu0
        %1092 = vmatprep.mubr.bf16.mxu0 0
        %1093 = vmatmul.mubr.bf16.gmra.mrb[0].mxu0 %v929
        %v1094 = vpop.f32.mrb[0].mxu0
        %v1095 = vadd.f32 0.0, %v1094
        %v1096 = vpop.f32.mrb[0].mxu0
        %v1097 = vpop.f32.mrb[0].mxu0
        %v1098 = vadd.f32 0.0, %v1097
        %v1099 = vpop.f32.mrb[0].mxu0
        %1100 = vmatprep.mubr.bf16.mxu0 0
        %1101 = vmatmul.mubr.bf16.gmra.mrb[0].mxu0 %v930
        %v1102 = vpop.f32.mrb[0].mxu0
        %v1103 = vadd.f32 0.0, %v1102
        %v1104 = vpop.f32.mrb[0].mxu0
        %v1105 = vpop.f32.mrb[0].mxu0
        %v1106 = vadd.f32 0.0, %v1105
        %v1107 = vpop.f32.mrb[0].mxu0
        %1108 = vmatprep.mubr.bf16.mxu0 0
        %1109 = vmatmul.mubr.bf16.gmra.mrb[0].mxu0 %v931
        %v1110 = vpop.f32.mrb[0].mxu0
        %v1111 = vadd.f32 0.0, %v1110
        %v1112 = vpop.f32.mrb[0].mxu0
        %v1113 = vpop.f32.mrb[0].mxu0
        %v1114 = vadd.f32 0.0, %v1113
        %v1115 = vpop.f32.mrb[0].mxu0
        %1116 = vmatprep.mubr.bf16.mxu0 0
        %1117 = vmatmul.mubr.bf16.gmra.mrb[0].mxu0 %v932
        %v1118 = vpop.f32.mrb[0].mxu0
        %v1119 = vadd.f32 0.0, %v1118
        %v1120 = vpop.f32.mrb[0].mxu0
        %v1121 = vpop.f32.mrb[0].mxu0
        %v1122 = vadd.f32 0.0, %v1121
        %v1123 = vpop.f32.mrb[0].mxu0
        %1124 = vmatprep.mubr.bf16.mxu0 0
        %1125 = vmatmul.mubr.bf16.gmra.mrb[0].mxu0 %v933
        %v1126 = vpop.f32.mrb[0].mxu0
        %v1127 = vadd.f32 0.0, %v1126
        %v1128 = vpop.f32.mrb[0].mxu0
        %v1129 = vpop.f32.mrb[0].mxu0
        %v1130 = vadd.f32 0.0, %v1129
        %v1131 = vpop.f32.mrb[0].mxu0
        %1132 = vmatprep.mubr.bf16.mxu0 0
        %1133 = vmatmul.mubr.bf16.gmra.mrb[0].mxu0 %v934
        %v1134 = vpop.f32.mrb[0].mxu0
        %v1135 = vadd.f32 0.0, %v1134
        %v1136 = vpop.f32.mrb[0].mxu0
        %v1137 = vpop.f32.mrb[0].mxu0
        %v1138 = vadd.f32 0.0, %v1137
        %v1139 = vpop.f32.mrb[0].mxu0
        %1140 = vmatprep.mubr.bf16.mxu0 0
        %1141 = vmatmul.mubr.bf16.gmra.mrb[0].mxu0 %v935
        %v1142 = vpop.f32.mrb[0].mxu0
        %v1143 = vadd.f32 0.0, %v1142
        %v1144 = vpop.f32.mrb[0].mxu0
        %v1145 = vpop.f32.mrb[0].mxu0
        %v1146 = vadd.f32 0.0, %v1145
        %v1147 = vpop.f32.mrb[0].mxu0
        %1148 = vmatprep.mubr.bf16.mxu0 0
        %1149 = vmatmul.mubr.bf16.gmra.mrb[0].mxu0 %v936
        %v1150 = vpop.f32.mrb[0].mxu0
        %v1151 = vadd.f32 0.0, %v1150
        %v1152 = vpop.f32.mrb[0].mxu0
        %v1153 = vpop.f32.mrb[0].mxu0
        %v1154 = vadd.f32 0.0, %v1153
        %v1155 = vpop.f32.mrb[0].mxu0
        %1156 = vmatprep.mubr.bf16.mxu0 0
        %1157 = vmatmul.mubr.bf16.gmra.mrb[0].mxu0 %v937
        %v1158 = vpop.f32.mrb[0].mxu0
        %v1159 = vadd.f32 0.0, %v1158
        %v1160 = vpop.f32.mrb[0].mxu0
        %v1161 = vpop.f32.mrb[0].mxu0
        %v1162 = vadd.f32 0.0, %v1161
        %v1163 = vpop.f32.mrb[0].mxu0
        %1164 = vmatprep.mubr.bf16.mxu0 0
        %1165 = vmatmul.mubr.bf16.gmra.mrb[0].mxu0 %v938
        %v1166 = vpop.f32.mrb[0].mxu0
        %v1167 = vadd.f32 0.0, %v1166
        %v1168 = vpop.f32.mrb[0].mxu0
        %v1169 = vpop.f32.mrb[0].mxu0
        %v1170 = vadd.f32 0.0, %v1169
        %v1171 = vpop.f32.mrb[0].mxu0
        %1172 = vmatprep.mubr.bf16.mxu0 0
        %1173 = vmatmul.mubr.bf16.gmra.mrb[0].mxu0 %v939
        %v1174 = vpop.f32.mrb[0].mxu0
        %v1175 = vadd.f32 0.0, %v1174
        %v1176 = vpop.f32.mrb[0].mxu0
        %v1177 = vpop.f32.mrb[0].mxu0
        %v1178 = vadd.f32 0.0, %v1177
        %v1179 = vpop.f32.mrb[0].mxu0
        %1180 = vdwg.mxu0
        %v1181 = vld [vmem:[%s2] sm:$0x1]
        %v1183 = vlaneseq
        %v1184 = vshrl.u32 %v1183, 7
        %v1185 = vsub.s32 0, %v1184
        %v1186 = vrot.slane %v1181, %v1185
        %v1188 = vmul.f32 %v1055, %v1186
        %v1189 = vmul.f32 %v1058, %v1186
        %v1190 = vmul.f32 %v1063, %v1186
        %v1191 = vmul.f32 %v1066, %v1186
        %v1192 = vmul.f32 %v1071, %v1186
        %v1193 = vmul.f32 %v1074, %v1186
        %v1194 = vmul.f32 %v1079, %v1186
        %v1195 = vmul.f32 %v1082, %v1186
        %v1196 = vmul.f32 %v1087, %v1186
        %v1197 = vmul.f32 %v1090, %v1186
        %v1198 = vmul.f32 %v1095, %v1186
        %v1199 = vmul.f32 %v1098, %v1186
        %v1200 = vmul.f32 %v1103, %v1186
        %v1201 = vmul.f32 %v1106, %v1186
        %v1202 = vmul.f32 %v1111, %v1186
        %v1203 = vmul.f32 %v1114, %v1186
        %v1204 = vmul.f32 %v1119, %v1186
        %v1205 = vmul.f32 %v1122, %v1186
        %v1206 = vmul.f32 %v1127, %v1186
        %v1207 = vmul.f32 %v1130, %v1186
        %v1208 = vmul.f32 %v1135, %v1186
        %v1209 = vmul.f32 %v1138, %v1186
        %v1210 = vmul.f32 %v1143, %v1186
        %v1211 = vmul.f32 %v1146, %v1186
        %v1212 = vmul.f32 %v1151, %v1186
        %v1213 = vmul.f32 %v1154, %v1186
        %v1214 = vmul.f32 %v1159, %v1186
        %v1215 = vmul.f32 %v1162, %v1186
        %v1216 = vmul.f32 %v1167, %v1186
        %v1217 = vmul.f32 %v1170, %v1186
        %v1218 = vmul.f32 %v1175, %v1186
        %v1219 = vmul.f32 %v1178, %v1186
        %v1220 = vld [vmem:[%s3] sm:$0x1]
        %v1222 = vlaneseq
        %v1223 = vshrl.u32 %v1222, 7
        %v1224 = vsub.s32 0, %v1223
        %v1225 = vrot.slane %v1220, %v1224
        %v1227 = vadd.f32 %v1188, %v1225
        %v1228 = vadd.f32 %v1189, %v1225
        %v1229 = vadd.f32 %v1190, %v1225
        %v1230 = vadd.f32 %v1191, %v1225
        %v1231 = vadd.f32 %v1192, %v1225
        %v1232 = vadd.f32 %v1193, %v1225
        %v1233 = vadd.f32 %v1194, %v1225
        %v1234 = vadd.f32 %v1195, %v1225
        %v1235 = vadd.f32 %v1196, %v1225
        %v1236 = vadd.f32 %v1197, %v1225
        %v1237 = vadd.f32 %v1198, %v1225
        %v1238 = vadd.f32 %v1199, %v1225
        %v1239 = vadd.f32 %v1200, %v1225
        %v1240 = vadd.f32 %v1201, %v1225
        %v1241 = vadd.f32 %v1202, %v1225
        %v1242 = vadd.f32 %v1203, %v1225
        %v1243 = vadd.f32 %v1204, %v1225
        %v1244 = vadd.f32 %v1205, %v1225
        %v1245 = vadd.f32 %v1206, %v1225
        %v1246 = vadd.f32 %v1207, %v1225
        %v1247 = vadd.f32 %v1208, %v1225
        %v1248 = vadd.f32 %v1209, %v1225
        %v1249 = vadd.f32 %v1210, %v1225
        %v1250 = vadd.f32 %v1211, %v1225
        %v1251 = vadd.f32 %v1212, %v1225
        %v1252 = vadd.f32 %v1213, %v1225
        %v1253 = vadd.f32 %v1214, %v1225
        %v1254 = vadd.f32 %v1215, %v1225
        %v1255 = vadd.f32 %v1216, %v1225
        %v1256 = vadd.f32 %v1217, %v1225
        %v1257 = vadd.f32 %v1218, %v1225
        %v1258 = vadd.f32 %v1219, %v1225
        %v1259 = vmax.f32 %v1227, 0.0
        %v1260 = vmax.f32 %v1228, 0.0
        %v1261 = vmax.f32 %v1229, 0.0
        %v1262 = vmax.f32 %v1230, 0.0
        %v1263 = vmax.f32 %v1231, 0.0
        %v1264 = vmax.f32 %v1232, 0.0
        %v1265 = vmax.f32 %v1233, 0.0
        %v1266 = vmax.f32 %v1234, 0.0
        %v1267 = vmax.f32 %v1235, 0.0
        %v1268 = vmax.f32 %v1236, 0.0
        %v1269 = vmax.f32 %v1237, 0.0
        %v1270 = vmax.f32 %v1238, 0.0
        %v1271 = vmax.f32 %v1239, 0.0
        %v1272 = vmax.f32 %v1240, 0.0
        %v1273 = vmax.f32 %v1241, 0.0
        %v1274 = vmax.f32 %v1242, 0.0
        %v1275 = vmax.f32 %v1243, 0.0
        %v1276 = vmax.f32 %v1244, 0.0
        %v1277 = vmax.f32 %v1245, 0.0
        %v1278 = vmax.f32 %v1246, 0.0
        %v1279 = vmax.f32 %v1247, 0.0
        %v1280 = vmax.f32 %v1248, 0.0
        %v1281 = vmax.f32 %v1249, 0.0
        %v1282 = vmax.f32 %v1250, 0.0
        %v1283 = vmax.f32 %v1251, 0.0
        %v1284 = vmax.f32 %v1252, 0.0
        %v1285 = vmax.f32 %v1253, 0.0
        %v1286 = vmax.f32 %v1254, 0.0
        %v1287 = vmax.f32 %v1255, 0.0
        %v1288 = vmax.f32 %v1256, 0.0
        %v1289 = vmax.f32 %v1257, 0.0
        %v1290 = vmax.f32 %v1258, 0.0
        %v1291 = vld [vmem:[%s4] sm:$0xf]
        %v1292 = vld [vmem:[%s4 + $0x4] sm:$0xf]
        %v1293 = vld [vmem:[%s4 + $0x8] sm:$0xf]
        %v1294 = vld [vmem:[%s4 + $0xc] sm:$0xf]
        %v1295 = vld [vmem:[%s4 + $0x10] sm:$0xf]
        %v1296 = vld [vmem:[%s4 + $0x14] sm:$0xf]
        %v1297 = vld [vmem:[%s4 + $0x18] sm:$0xf]
        %v1298 = vld [vmem:[%s4 + $0x1c] sm:$0xf]
        %v1299 = vld [vmem:[%s4 + $0x20] sm:$0xf]
        %v1300 = vld [vmem:[%s4 + $0x24] sm:$0xf]
        %v1301 = vld [vmem:[%s4 + $0x28] sm:$0xf]
        %v1302 = vld [vmem:[%s4 + $0x2c] sm:$0xf]
        %v1303 = vld [vmem:[%s4 + $0x30] sm:$0xf]
        %v1304 = vld [vmem:[%s4 + $0x34] sm:$0xf]
        %v1305 = vld [vmem:[%s4 + $0x38] sm:$0xf]
        %v1306 = vld [vmem:[%s4 + $0x3c] sm:$0xf]
        %v1323 = vunpack.c.l.b16 %v1291
        %v1324 = vunpack.c.l.b16 %v1292
        %v1325 = vunpack.c.l.b16 %v1293
        %v1326 = vunpack.c.l.b16 %v1294
        %v1327 = vunpack.c.l.b16 %v1295
        %v1328 = vunpack.c.l.b16 %v1296
        %v1329 = vunpack.c.l.b16 %v1297
        %v1330 = vunpack.c.l.b16 %v1298
        %v1331 = vunpack.c.l.b16 %v1299
        %v1332 = vunpack.c.l.b16 %v1300
        %v1333 = vunpack.c.l.b16 %v1301
        %v1334 = vunpack.c.l.b16 %v1302
        %v1335 = vunpack.c.l.b16 %v1303
        %v1336 = vunpack.c.l.b16 %v1304
        %v1337 = vunpack.c.l.b16 %v1305
        %v1338 = vunpack.c.l.b16 %v1306
        %v1339 = vpack.c.b16 %v1324, %v1323
        %v1340 = vpack.c.b16 %v1326, %v1325
        %v1341 = vpack.c.b16 %v1328, %v1327
        %v1342 = vpack.c.b16 %v1330, %v1329
        %v1343 = vpack.c.b16 %v1332, %v1331
        %v1344 = vpack.c.b16 %v1334, %v1333
        %v1345 = vpack.c.b16 %v1336, %v1335
        %v1346 = vpack.c.b16 %v1338, %v1337
        %1355 = vmatprep.subr.bf16.mxu0 0
        %1356 = vmatpush1.bf16.msra.mxu0 %v1339
        %1357 = vmatprep.subr.bf16.mxu0 0
        %1358 = vmatpush1.bf16.msra.mxu0 %v1340
        %1359 = vmatprep.subr.bf16.mxu0 0
        %1360 = vmatpush1.bf16.msra.mxu0 %v1341
        %1361 = vmatprep.subr.bf16.mxu0 0
        %1362 = vmatpush1.bf16.msra.mxu0 %v1342
        %1363 = vmatprep.subr.bf16.mxu0 0
        %1364 = vmatpush1.bf16.msra.mxu0 %v1343
        %1365 = vmatprep.subr.bf16.mxu0 0
        %1366 = vmatpush1.bf16.msra.mxu0 %v1344
        %1367 = vmatprep.subr.bf16.mxu0 0
        %1368 = vmatpush1.bf16.msra.mxu0 %v1345
        %1369 = vmatprep.subr.bf16.mxu0 0
        %1370 = vmatpush1.bf16.msra.mxu0 %v1346
        %1371 = vmatprep.subr.bf16.mxu0 0
        %1372 = vmatpush1.bf16.msra.mxu0 0
        %1373 = vmatprep.subr.bf16.mxu0 0
        %1374 = vmatpush1.bf16.msra.mxu0 0
        %1375 = vmatprep.subr.bf16.mxu0 0
        %1376 = vmatpush1.bf16.msra.mxu0 0
        %1377 = vmatprep.subr.bf16.mxu0 0
        %1378 = vmatpush1.bf16.msra.mxu0 0
        %1379 = vmatprep.subr.bf16.mxu0 0
        %1380 = vmatpush1.bf16.msra.mxu0 0
        %1381 = vmatprep.subr.bf16.mxu0 0
        %1382 = vmatpush1.bf16.msra.mxu0 0
        %1383 = vmatprep.subr.bf16.mxu0 0
        %1384 = vmatpush1.bf16.msra.mxu0 0
        %1385 = vmatprep.subr.bf16.mxu0 0
        %1386 = vmatpush1.bf16.msra.mxu0 0
        %1387 = vmatprep.mubr.bf16.mxu0 0
        %1388 = vmatmul.mubr.bf16.gmra.mrb[0].mxu0 %v940
        %v1389 = vpop.f32.mrb[0].mxu0
        %v1390 = vadd.f32 0.0, %v1389
        %v1391 = vpop.f32.mrb[0].mxu0
        %v1392 = vpop.f32.mrb[0].mxu0
        %v1393 = vadd.f32 0.0, %v1392
        %v1394 = vpop.f32.mrb[0].mxu0
        %1395 = vmatprep.mubr.bf16.mxu0 0
        %1396 = vmatmul.mubr.bf16.gmra.mrb[0].mxu0 %v941
        %v1397 = vpop.f32.mrb[0].mxu0
        %v1398 = vadd.f32 0.0, %v1397
        %v1399 = vpop.f32.mrb[0].mxu0
        %v1400 = vpop.f32.mrb[0].mxu0
        %v1401 = vadd.f32 0.0, %v1400
        %v1402 = vpop.f32.mrb[0].mxu0
        %1403 = vmatprep.mubr.bf16.mxu0 0
        %1404 = vmatmul.mubr.bf16.gmra.mrb[0].mxu0 %v942
        %v1405 = vpop.f32.mrb[0].mxu0
        %v1406 = vadd.f32 0.0, %v1405
        %v1407 = vpop.f32.mrb[0].mxu0
        %v1408 = vpop.f32.mrb[0].mxu0
        %v1409 = vadd.f32 0.0, %v1408
        %v1410 = vpop.f32.mrb[0].mxu0
        %1411 = vmatprep.mubr.bf16.mxu0 0
        %1412 = vmatmul.mubr.bf16.gmra.mrb[0].mxu0 %v943
        %v1413 = vpop.f32.mrb[0].mxu0
        %v1414 = vadd.f32 0.0, %v1413
        %v1415 = vpop.f32.mrb[0].mxu0
        %v1416 = vpop.f32.mrb[0].mxu0
        %v1417 = vadd.f32 0.0, %v1416
        %v1418 = vpop.f32.mrb[0].mxu0
        %1419 = vmatprep.mubr.bf16.mxu0 0
        %1420 = vmatmul.mubr.bf16.gmra.mrb[0].mxu0 %v944
        %v1421 = vpop.f32.mrb[0].mxu0
        %v1422 = vadd.f32 0.0, %v1421
        %v1423 = vpop.f32.mrb[0].mxu0
        %v1424 = vpop.f32.mrb[0].mxu0
        %v1425 = vadd.f32 0.0, %v1424
        %v1426 = vpop.f32.mrb[0].mxu0
        %1427 = vmatprep.mubr.bf16.mxu0 0
        %1428 = vmatmul.mubr.bf16.gmra.mrb[0].mxu0 %v945
        %v1429 = vpop.f32.mrb[0].mxu0
        %v1430 = vadd.f32 0.0, %v1429
        %v1431 = vpop.f32.mrb[0].mxu0
        %v1432 = vpop.f32.mrb[0].mxu0
        %v1433 = vadd.f32 0.0, %v1432
        %v1434 = vpop.f32.mrb[0].mxu0
        %1435 = vmatprep.mubr.bf16.mxu0 0
        %1436 = vmatmul.mubr.bf16.gmra.mrb[0].mxu0 %v946
        %v1437 = vpop.f32.mrb[0].mxu0
        %v1438 = vadd.f32 0.0, %v1437
        %v1439 = vpop.f32.mrb[0].mxu0
        %v1440 = vpop.f32.mrb[0].mxu0
        %v1441 = vadd.f32 0.0, %v1440
        %v1442 = vpop.f32.mrb[0].mxu0
        %1443 = vmatprep.mubr.bf16.mxu0 0
        %1444 = vmatmul.mubr.bf16.gmra.mrb[0].mxu0 %v947
        %v1445 = vpop.f32.mrb[0].mxu0
        %v1446 = vadd.f32 0.0, %v1445
        %v1447 = vpop.f32.mrb[0].mxu0
        %v1448 = vpop.f32.mrb[0].mxu0
        %v1449 = vadd.f32 0.0, %v1448
        %v1450 = vpop.f32.mrb[0].mxu0
        %1451 = vmatprep.mubr.bf16.mxu0 0
        %1452 = vmatmul.mubr.bf16.gmra.mrb[0].mxu0 %v948
        %v1453 = vpop.f32.mrb[0].mxu0
        %v1454 = vadd.f32 0.0, %v1453
        %v1455 = vpop.f32.mrb[0].mxu0
        %v1456 = vpop.f32.mrb[0].mxu0
        %v1457 = vadd.f32 0.0, %v1456
        %v1458 = vpop.f32.mrb[0].mxu0
        %1459 = vmatprep.mubr.bf16.mxu0 0
        %1460 = vmatmul.mubr.bf16.gmra.mrb[0].mxu0 %v949
        %v1461 = vpop.f32.mrb[0].mxu0
        %v1462 = vadd.f32 0.0, %v1461
        %v1463 = vpop.f32.mrb[0].mxu0
        %v1464 = vpop.f32.mrb[0].mxu0
        %v1465 = vadd.f32 0.0, %v1464
        %v1466 = vpop.f32.mrb[0].mxu0
        %1467 = vmatprep.mubr.bf16.mxu0 0
        %1468 = vmatmul.mubr.bf16.gmra.mrb[0].mxu0 %v950
        %v1469 = vpop.f32.mrb[0].mxu0
        %v1470 = vadd.f32 0.0, %v1469
        %v1471 = vpop.f32.mrb[0].mxu0
        %v1472 = vpop.f32.mrb[0].mxu0
        %v1473 = vadd.f32 0.0, %v1472
        %v1474 = vpop.f32.mrb[0].mxu0
        %1475 = vmatprep.mubr.bf16.mxu0 0
        %1476 = vmatmul.mubr.bf16.gmra.mrb[0].mxu0 %v951
        %v1477 = vpop.f32.mrb[0].mxu0
        %v1478 = vadd.f32 0.0, %v1477
        %v1479 = vpop.f32.mrb[0].mxu0
        %v1480 = vpop.f32.mrb[0].mxu0
        %v1481 = vadd.f32 0.0, %v1480
        %v1482 = vpop.f32.mrb[0].mxu0
        %1483 = vmatprep.mubr.bf16.mxu0 0
        %1484 = vmatmul.mubr.bf16.gmra.mrb[0].mxu0 %v952
        %v1485 = vpop.f32.mrb[0].mxu0
        %v1486 = vadd.f32 0.0, %v1485
        %v1487 = vpop.f32.mrb[0].mxu0
        %v1488 = vpop.f32.mrb[0].mxu0
        %v1489 = vadd.f32 0.0, %v1488
        %v1490 = vpop.f32.mrb[0].mxu0
        %1491 = vmatprep.mubr.bf16.mxu0 0
        %1492 = vmatmul.mubr.bf16.gmra.mrb[0].mxu0 %v953
        %v1493 = vpop.f32.mrb[0].mxu0
        %v1494 = vadd.f32 0.0, %v1493
        %v1495 = vpop.f32.mrb[0].mxu0
        %v1496 = vpop.f32.mrb[0].mxu0
        %v1497 = vadd.f32 0.0, %v1496
        %v1498 = vpop.f32.mrb[0].mxu0
        %1499 = vmatprep.mubr.bf16.mxu0 0
        %1500 = vmatmul.mubr.bf16.gmra.mrb[0].mxu0 %v954
        %v1501 = vpop.f32.mrb[0].mxu0
        %v1502 = vadd.f32 0.0, %v1501
        %v1503 = vpop.f32.mrb[0].mxu0
        %v1504 = vpop.f32.mrb[0].mxu0
        %v1505 = vadd.f32 0.0, %v1504
        %v1506 = vpop.f32.mrb[0].mxu0
        %1507 = vmatprep.mubr.bf16.mxu0 0
        %1508 = vmatmul.mubr.bf16.gmra.mrb[0].mxu0 %v955
        %v1509 = vpop.f32.mrb[0].mxu0
        %v1510 = vadd.f32 0.0, %v1509
        %v1511 = vpop.f32.mrb[0].mxu0
        %v1512 = vpop.f32.mrb[0].mxu0
        %v1513 = vadd.f32 0.0, %v1512
        %v1514 = vpop.f32.mrb[0].mxu0
        %1515 = vdwg.mxu0
        %v1516 = vld [vmem:[%s5] sm:$0x1]
        %v1518 = vlaneseq
        %v1519 = vshrl.u32 %v1518, 7
        %v1520 = vsub.s32 0, %v1519
        %v1521 = vrot.slane %v1516, %v1520
        %v1523 = vmul.f32 %v1390, %v1521
        %v1524 = vmul.f32 %v1393, %v1521
        %v1525 = vmul.f32 %v1398, %v1521
        %v1526 = vmul.f32 %v1401, %v1521
        %v1527 = vmul.f32 %v1406, %v1521
        %v1528 = vmul.f32 %v1409, %v1521
        %v1529 = vmul.f32 %v1414, %v1521
        %v1530 = vmul.f32 %v1417, %v1521
        %v1531 = vmul.f32 %v1422, %v1521
        %v1532 = vmul.f32 %v1425, %v1521
        %v1533 = vmul.f32 %v1430, %v1521
        %v1534 = vmul.f32 %v1433, %v1521
        %v1535 = vmul.f32 %v1438, %v1521
        %v1536 = vmul.f32 %v1441, %v1521
        %v1537 = vmul.f32 %v1446, %v1521
        %v1538 = vmul.f32 %v1449, %v1521
        %v1539 = vmul.f32 %v1454, %v1521
        %v1540 = vmul.f32 %v1457, %v1521
        %v1541 = vmul.f32 %v1462, %v1521
        %v1542 = vmul.f32 %v1465, %v1521
        %v1543 = vmul.f32 %v1470, %v1521
        %v1544 = vmul.f32 %v1473, %v1521
        %v1545 = vmul.f32 %v1478, %v1521
        %v1546 = vmul.f32 %v1481, %v1521
        %v1547 = vmul.f32 %v1486, %v1521
        %v1548 = vmul.f32 %v1489, %v1521
        %v1549 = vmul.f32 %v1494, %v1521
        %v1550 = vmul.f32 %v1497, %v1521
        %v1551 = vmul.f32 %v1502, %v1521
        %v1552 = vmul.f32 %v1505, %v1521
        %v1553 = vmul.f32 %v1510, %v1521
        %v1554 = vmul.f32 %v1513, %v1521
        %v1555 = vld [vmem:[%s6] sm:$0x1]
        %v1557 = vlaneseq
        %v1558 = vshrl.u32 %v1557, 7
        %v1559 = vsub.s32 0, %v1558
        %v1560 = vrot.slane %v1555, %v1559
        %v1562 = vadd.f32 %v1523, %v1560
        %v1563 = vadd.f32 %v1524, %v1560
        %v1564 = vadd.f32 %v1525, %v1560
        %v1565 = vadd.f32 %v1526, %v1560
        %v1566 = vadd.f32 %v1527, %v1560
        %v1567 = vadd.f32 %v1528, %v1560
        %v1568 = vadd.f32 %v1529, %v1560
        %v1569 = vadd.f32 %v1530, %v1560
        %v1570 = vadd.f32 %v1531, %v1560
        %v1571 = vadd.f32 %v1532, %v1560
        %v1572 = vadd.f32 %v1533, %v1560
        %v1573 = vadd.f32 %v1534, %v1560
        %v1574 = vadd.f32 %v1535, %v1560
        %v1575 = vadd.f32 %v1536, %v1560
        %v1576 = vadd.f32 %v1537, %v1560
        %v1577 = vadd.f32 %v1538, %v1560
        %v1578 = vadd.f32 %v1539, %v1560
        %v1579 = vadd.f32 %v1540, %v1560
        %v1580 = vadd.f32 %v1541, %v1560
        %v1581 = vadd.f32 %v1542, %v1560
        %v1582 = vadd.f32 %v1543, %v1560
        %v1583 = vadd.f32 %v1544, %v1560
        %v1584 = vadd.f32 %v1545, %v1560
        %v1585 = vadd.f32 %v1546, %v1560
        %v1586 = vadd.f32 %v1547, %v1560
        %v1587 = vadd.f32 %v1548, %v1560
        %v1588 = vadd.f32 %v1549, %v1560
        %v1589 = vadd.f32 %v1550, %v1560
        %v1590 = vadd.f32 %v1551, %v1560
        %v1591 = vadd.f32 %v1552, %v1560
        %v1592 = vadd.f32 %v1553, %v1560
        %v1593 = vadd.f32 %v1554, %v1560
        %v1594 = vmax.f32 %v1562, 0.0
        %v1595 = vmax.f32 %v1563, 0.0
        %v1596 = vmax.f32 %v1564, 0.0
        %v1597 = vmax.f32 %v1565, 0.0
        %v1598 = vmax.f32 %v1566, 0.0
        %v1599 = vmax.f32 %v1567, 0.0
        %v1600 = vmax.f32 %v1568, 0.0
        %v1601 = vmax.f32 %v1569, 0.0
        %v1602 = vmax.f32 %v1570, 0.0
        %v1603 = vmax.f32 %v1571, 0.0
        %v1604 = vmax.f32 %v1572, 0.0
        %v1605 = vmax.f32 %v1573, 0.0
        %v1606 = vmax.f32 %v1574, 0.0
        %v1607 = vmax.f32 %v1575, 0.0
        %v1608 = vmax.f32 %v1576, 0.0
        %v1609 = vmax.f32 %v1577, 0.0
        %v1610 = vmax.f32 %v1578, 0.0
        %v1611 = vmax.f32 %v1579, 0.0
        %v1612 = vmax.f32 %v1580, 0.0
        %v1613 = vmax.f32 %v1581, 0.0
        %v1614 = vmax.f32 %v1582, 0.0
        %v1615 = vmax.f32 %v1583, 0.0
        %v1616 = vmax.f32 %v1584, 0.0
        %v1617 = vmax.f32 %v1585, 0.0
        %v1618 = vmax.f32 %v1586, 0.0
        %v1619 = vmax.f32 %v1587, 0.0
        %v1620 = vmax.f32 %v1588, 0.0
        %v1621 = vmax.f32 %v1589, 0.0
        %v1622 = vmax.f32 %v1590, 0.0
        %v1623 = vmax.f32 %v1591, 0.0
        %v1624 = vmax.f32 %v1592, 0.0
        %v1625 = vmax.f32 %v1593, 0.0
        %v1626 = vld [vmem:[%s7] sm:$0xf]
        %v1627 = vld [vmem:[%s7 + $0x4] sm:$0xf]
        %v1628 = vld [vmem:[%s7 + $0x8] sm:$0xf]
        %v1629 = vld [vmem:[%s7 + $0xc] sm:$0xf]
        %v1630 = vld [vmem:[%s7 + $0x10] sm:$0xf]
        %v1631 = vld [vmem:[%s7 + $0x14] sm:$0xf]
        %v1632 = vld [vmem:[%s7 + $0x18] sm:$0xf]
        %v1633 = vld [vmem:[%s7 + $0x1c] sm:$0xf]
        %v1634 = vld [vmem:[%s7 + $0x20] sm:$0xf]
        %v1635 = vld [vmem:[%s7 + $0x24] sm:$0xf]
        %v1636 = vld [vmem:[%s7 + $0x28] sm:$0xf]
        %v1637 = vld [vmem:[%s7 + $0x2c] sm:$0xf]
        %v1638 = vld [vmem:[%s7 + $0x30] sm:$0xf]
        %v1639 = vld [vmem:[%s7 + $0x34] sm:$0xf]
        %v1640 = vld [vmem:[%s7 + $0x38] sm:$0xf]
        %v1641 = vld [vmem:[%s7 + $0x3c] sm:$0xf]
        %v1658 = vunpack.c.l.b16 %v1626
        %v1659 = vunpack.c.l.b16 %v1627
        %v1660 = vunpack.c.l.b16 %v1628
        %v1661 = vunpack.c.l.b16 %v1629
        %v1662 = vunpack.c.l.b16 %v1630
        %v1663 = vunpack.c.l.b16 %v1631
        %v1664 = vunpack.c.l.b16 %v1632
        %v1665 = vunpack.c.l.b16 %v1633
        %v1666 = vunpack.c.l.b16 %v1634
        %v1667 = vunpack.c.l.b16 %v1635
        %v1668 = vunpack.c.l.b16 %v1636
        %v1669 = vunpack.c.l.b16 %v1637
        %v1670 = vunpack.c.l.b16 %v1638
        %v1671 = vunpack.c.l.b16 %v1639
        %v1672 = vunpack.c.l.b16 %v1640
        %v1673 = vunpack.c.l.b16 %v1641
        %v1674 = vpack.c.b16 %v1659, %v1658
        %v1675 = vpack.c.b16 %v1661, %v1660
        %v1676 = vpack.c.b16 %v1663, %v1662
        %v1677 = vpack.c.b16 %v1665, %v1664
        %v1678 = vpack.c.b16 %v1667, %v1666
        %v1679 = vpack.c.b16 %v1669, %v1668
        %v1680 = vpack.c.b16 %v1671, %v1670
        %v1681 = vpack.c.b16 %v1673, %v1672
        %1690 = vmatprep.subr.bf16.mxu0 0
        %1691 = vmatpush1.bf16.msra.mxu0 %v1674
        %1692 = vmatprep.subr.bf16.mxu0 0
        %1693 = vmatpush1.bf16.msra.mxu0 %v1675
        %1694 = vmatprep.subr.bf16.mxu0 0
        %1695 = vmatpush1.bf16.msra.mxu0 %v1676
        %1696 = vmatprep.subr.bf16.mxu0 0
        %1697 = vmatpush1.bf16.msra.mxu0 %v1677
        %1698 = vmatprep.subr.bf16.mxu0 0
        %1699 = vmatpush1.bf16.msra.mxu0 %v1678
        %1700 = vmatprep.subr.bf16.mxu0 0
        %1701 = vmatpush1.bf16.msra.mxu0 %v1679
        %1702 = vmatprep.subr.bf16.mxu0 0
        %1703 = vmatpush1.bf16.msra.mxu0 %v1680
        %1704 = vmatprep.subr.bf16.mxu0 0
        %1705 = vmatpush1.bf16.msra.mxu0 %v1681
        %1706 = vmatprep.subr.bf16.mxu0 0
        %1707 = vmatpush1.bf16.msra.mxu0 0
        %1708 = vmatprep.subr.bf16.mxu0 0
        %1709 = vmatpush1.bf16.msra.mxu0 0
        %1710 = vmatprep.subr.bf16.mxu0 0
        %1711 = vmatpush1.bf16.msra.mxu0 0
        %1712 = vmatprep.subr.bf16.mxu0 0
        %1713 = vmatpush1.bf16.msra.mxu0 0
        %1714 = vmatprep.subr.bf16.mxu0 0
        %1715 = vmatpush1.bf16.msra.mxu0 0
        %1716 = vmatprep.subr.bf16.mxu0 0
        %1717 = vmatpush1.bf16.msra.mxu0 0
        %1718 = vmatprep.subr.bf16.mxu0 0
        %1719 = vmatpush1.bf16.msra.mxu0 0
        %1720 = vmatprep.subr.bf16.mxu0 0
        %1721 = vmatpush1.bf16.msra.mxu0 0
        %1722 = vmatprep.mubr.bf16.mxu0 0
        %1723 = vmatmul.mubr.bf16.gmra.mrb[0].mxu0 %v924
        %v1724 = vpop.f32.mrb[0].mxu0
        %v1725 = vadd.f32 0.0, %v1724
        %v1726 = vpop.f32.mrb[0].mxu0
        %v1727 = vpop.f32.mrb[0].mxu0
        %v1728 = vadd.f32 0.0, %v1727
        %v1729 = vpop.f32.mrb[0].mxu0
        %1730 = vmatprep.mubr.bf16.mxu0 0
        %1731 = vmatmul.mubr.bf16.gmra.mrb[0].mxu0 %v925
        %v1732 = vpop.f32.mrb[0].mxu0
        %v1733 = vadd.f32 0.0, %v1732
        %v1734 = vpop.f32.mrb[0].mxu0
        %v1735 = vpop.f32.mrb[0].mxu0
        %v1736 = vadd.f32 0.0, %v1735
        %v1737 = vpop.f32.mrb[0].mxu0
        %1738 = vmatprep.mubr.bf16.mxu0 0
        %1739 = vmatmul.mubr.bf16.gmra.mrb[0].mxu0 %v926
        %v1740 = vpop.f32.mrb[0].mxu0
        %v1741 = vadd.f32 0.0, %v1740
        %v1742 = vpop.f32.mrb[0].mxu0
        %v1743 = vpop.f32.mrb[0].mxu0
        %v1744 = vadd.f32 0.0, %v1743
        %v1745 = vpop.f32.mrb[0].mxu0
        %1746 = vmatprep.mubr.bf16.mxu0 0
        %1747 = vmatmul.mubr.bf16.gmra.mrb[0].mxu0 %v927
        %v1748 = vpop.f32.mrb[0].mxu0
        %v1749 = vadd.f32 0.0, %v1748
        %v1750 = vpop.f32.mrb[0].mxu0
        %v1751 = vpop.f32.mrb[0].mxu0
        %v1752 = vadd.f32 0.0, %v1751
        %v1753 = vpop.f32.mrb[0].mxu0
        %1754 = vmatprep.mubr.bf16.mxu0 0
        %1755 = vmatmul.mubr.bf16.gmra.mrb[0].mxu0 %v928
        %v1756 = vpop.f32.mrb[0].mxu0
        %v1757 = vadd.f32 0.0, %v1756
        %v1758 = vpop.f32.mrb[0].mxu0
        %v1759 = vpop.f32.mrb[0].mxu0
        %v1760 = vadd.f32 0.0, %v1759
        %v1761 = vpop.f32.mrb[0].mxu0
        %1762 = vmatprep.mubr.bf16.mxu0 0
        %1763 = vmatmul.mubr.bf16.gmra.mrb[0].mxu0 %v929
        %v1764 = vpop.f32.mrb[0].mxu0
        %v1765 = vadd.f32 0.0, %v1764
        %v1766 = vpop.f32.mrb[0].mxu0
        %v1767 = vpop.f32.mrb[0].mxu0
        %v1768 = vadd.f32 0.0, %v1767
        %v1769 = vpop.f32.mrb[0].mxu0
        %1770 = vmatprep.mubr.bf16.mxu0 0
        %1771 = vmatmul.mubr.bf16.gmra.mrb[0].mxu0 %v930
        %v1772 = vpop.f32.mrb[0].mxu0
        %v1773 = vadd.f32 0.0, %v1772
        %v1774 = vpop.f32.mrb[0].mxu0
        %v1775 = vpop.f32.mrb[0].mxu0
        %v1776 = vadd.f32 0.0, %v1775
        %v1777 = vpop.f32.mrb[0].mxu0
        %1778 = vmatprep.mubr.bf16.mxu0 0
        %1779 = vmatmul.mubr.bf16.gmra.mrb[0].mxu0 %v931
        %v1780 = vpop.f32.mrb[0].mxu0
        %v1781 = vadd.f32 0.0, %v1780
        %v1782 = vpop.f32.mrb[0].mxu0
        %v1783 = vpop.f32.mrb[0].mxu0
        %v1784 = vadd.f32 0.0, %v1783
        %v1785 = vpop.f32.mrb[0].mxu0
        %1786 = vmatprep.mubr.bf16.mxu0 0
        %1787 = vmatmul.mubr.bf16.gmra.mrb[0].mxu0 %v932
        %v1788 = vpop.f32.mrb[0].mxu0
        %v1789 = vadd.f32 0.0, %v1788
        %v1790 = vpop.f32.mrb[0].mxu0
        %v1791 = vpop.f32.mrb[0].mxu0
        %v1792 = vadd.f32 0.0, %v1791
        %v1793 = vpop.f32.mrb[0].mxu0
        %1794 = vmatprep.mubr.bf16.mxu0 0
        %1795 = vmatmul.mubr.bf16.gmra.mrb[0].mxu0 %v933
        %v1796 = vpop.f32.mrb[0].mxu0
        %v1797 = vadd.f32 0.0, %v1796
        %v1798 = vpop.f32.mrb[0].mxu0
        %v1799 = vpop.f32.mrb[0].mxu0
        %v1800 = vadd.f32 0.0, %v1799
        %v1801 = vpop.f32.mrb[0].mxu0
        %1802 = vmatprep.mubr.bf16.mxu0 0
        %1803 = vmatmul.mubr.bf16.gmra.mrb[0].mxu0 %v934
        %v1804 = vpop.f32.mrb[0].mxu0
        %v1805 = vadd.f32 0.0, %v1804
        %v1806 = vpop.f32.mrb[0].mxu0
        %v1807 = vpop.f32.mrb[0].mxu0
        %v1808 = vadd.f32 0.0, %v1807
        %v1809 = vpop.f32.mrb[0].mxu0
        %1810 = vmatprep.mubr.bf16.mxu0 0
        %1811 = vmatmul.mubr.bf16.gmra.mrb[0].mxu0 %v935
        %v1812 = vpop.f32.mrb[0].mxu0
        %v1813 = vadd.f32 0.0, %v1812
        %v1814 = vpop.f32.mrb[0].mxu0
        %v1815 = vpop.f32.mrb[0].mxu0
        %v1816 = vadd.f32 0.0, %v1815
        %v1817 = vpop.f32.mrb[0].mxu0
        %1818 = vmatprep.mubr.bf16.mxu0 0
        %1819 = vmatmul.mubr.bf16.gmra.mrb[0].mxu0 %v936
        %v1820 = vpop.f32.mrb[0].mxu0
        %v1821 = vadd.f32 0.0, %v1820
        %v1822 = vpop.f32.mrb[0].mxu0
        %v1823 = vpop.f32.mrb[0].mxu0
        %v1824 = vadd.f32 0.0, %v1823
        %v1825 = vpop.f32.mrb[0].mxu0
        %1826 = vmatprep.mubr.bf16.mxu0 0
        %1827 = vmatmul.mubr.bf16.gmra.mrb[0].mxu0 %v937
        %v1828 = vpop.f32.mrb[0].mxu0
        %v1829 = vadd.f32 0.0, %v1828
        %v1830 = vpop.f32.mrb[0].mxu0
        %v1831 = vpop.f32.mrb[0].mxu0
        %v1832 = vadd.f32 0.0, %v1831
        %v1833 = vpop.f32.mrb[0].mxu0
        %1834 = vmatprep.mubr.bf16.mxu0 0
        %1835 = vmatmul.mubr.bf16.gmra.mrb[0].mxu0 %v938
        %v1836 = vpop.f32.mrb[0].mxu0
        %v1837 = vadd.f32 0.0, %v1836
        %v1838 = vpop.f32.mrb[0].mxu0
        %v1839 = vpop.f32.mrb[0].mxu0
        %v1840 = vadd.f32 0.0, %v1839
        %v1841 = vpop.f32.mrb[0].mxu0
        %1842 = vmatprep.mubr.bf16.mxu0 0
        %1843 = vmatmul.mubr.bf16.gmra.mrb[0].mxu0 %v939
        %v1844 = vpop.f32.mrb[0].mxu0
        %v1845 = vadd.f32 0.0, %v1844
        %v1846 = vpop.f32.mrb[0].mxu0
        %v1847 = vpop.f32.mrb[0].mxu0
        %v1848 = vadd.f32 0.0, %v1847
        %v1849 = vpop.f32.mrb[0].mxu0
        %1850 = vdwg.mxu0
        %v1851 = vld [vmem:[%s8] sm:$0x1]
        %v1853 = vlaneseq
        %v1854 = vshrl.u32 %v1853, 7
        %v1855 = vsub.s32 0, %v1854
        %v1856 = vrot.slane %v1851, %v1855
        %v1858 = vmul.f32 %v1725, %v1856
        %v1859 = vmul.f32 %v1728, %v1856
        %v1860 = vmul.f32 %v1733, %v1856
        %v1861 = vmul.f32 %v1736, %v1856
        %v1862 = vmul.f32 %v1741, %v1856
        %v1863 = vmul.f32 %v1744, %v1856
        %v1864 = vmul.f32 %v1749, %v1856
        %v1865 = vmul.f32 %v1752, %v1856
        %v1866 = vmul.f32 %v1757, %v1856
        %v1867 = vmul.f32 %v1760, %v1856
        %v1868 = vmul.f32 %v1765, %v1856
        %v1869 = vmul.f32 %v1768, %v1856
        %v1870 = vmul.f32 %v1773, %v1856
        %v1871 = vmul.f32 %v1776, %v1856
        %v1872 = vmul.f32 %v1781, %v1856
        %v1873 = vmul.f32 %v1784, %v1856
        %v1874 = vmul.f32 %v1789, %v1856
        %v1875 = vmul.f32 %v1792, %v1856
        %v1876 = vmul.f32 %v1797, %v1856
        %v1877 = vmul.f32 %v1800, %v1856
        %v1878 = vmul.f32 %v1805, %v1856
        %v1879 = vmul.f32 %v1808, %v1856
        %v1880 = vmul.f32 %v1813, %v1856
        %v1881 = vmul.f32 %v1816, %v1856
        %v1882 = vmul.f32 %v1821, %v1856
        %v1883 = vmul.f32 %v1824, %v1856
        %v1884 = vmul.f32 %v1829, %v1856
        %v1885 = vmul.f32 %v1832, %v1856
        %v1886 = vmul.f32 %v1837, %v1856
        %v1887 = vmul.f32 %v1840, %v1856
        %v1888 = vmul.f32 %v1845, %v1856
        %v1889 = vmul.f32 %v1848, %v1856
        %v1890 = vld [vmem:[%s9] sm:$0x1]
        %v1892 = vlaneseq
        %v1893 = vshrl.u32 %v1892, 7
        %v1894 = vsub.s32 0, %v1893
        %v1895 = vrot.slane %v1890, %v1894
        %v1897 = vadd.f32 %v1858, %v1895
        %v1898 = vadd.f32 %v1859, %v1895
        %v1899 = vadd.f32 %v1860, %v1895
        %v1900 = vadd.f32 %v1861, %v1895
        %v1901 = vadd.f32 %v1862, %v1895
        %v1902 = vadd.f32 %v1863, %v1895
        %v1903 = vadd.f32 %v1864, %v1895
        %v1904 = vadd.f32 %v1865, %v1895
        %v1905 = vadd.f32 %v1866, %v1895
        %v1906 = vadd.f32 %v1867, %v1895
        %v1907 = vadd.f32 %v1868, %v1895
        %v1908 = vadd.f32 %v1869, %v1895
        %v1909 = vadd.f32 %v1870, %v1895
        %v1910 = vadd.f32 %v1871, %v1895
        %v1911 = vadd.f32 %v1872, %v1895
        %v1912 = vadd.f32 %v1873, %v1895
        %v1913 = vadd.f32 %v1874, %v1895
        %v1914 = vadd.f32 %v1875, %v1895
        %v1915 = vadd.f32 %v1876, %v1895
        %v1916 = vadd.f32 %v1877, %v1895
        %v1917 = vadd.f32 %v1878, %v1895
        %v1918 = vadd.f32 %v1879, %v1895
        %v1919 = vadd.f32 %v1880, %v1895
        %v1920 = vadd.f32 %v1881, %v1895
        %v1921 = vadd.f32 %v1882, %v1895
        %v1922 = vadd.f32 %v1883, %v1895
        %v1923 = vadd.f32 %v1884, %v1895
        %v1924 = vadd.f32 %v1885, %v1895
        %v1925 = vadd.f32 %v1886, %v1895
        %v1926 = vadd.f32 %v1887, %v1895
        %v1927 = vadd.f32 %v1888, %v1895
        %v1928 = vadd.f32 %v1889, %v1895
        %v1929 = vmax.f32 %v1897, 0.0
        %v1930 = vmax.f32 %v1898, 0.0
        %v1931 = vmax.f32 %v1899, 0.0
        %v1932 = vmax.f32 %v1900, 0.0
        %v1933 = vmax.f32 %v1901, 0.0
        %v1934 = vmax.f32 %v1902, 0.0
        %v1935 = vmax.f32 %v1903, 0.0
        %v1936 = vmax.f32 %v1904, 0.0
        %v1937 = vmax.f32 %v1905, 0.0
        %v1938 = vmax.f32 %v1906, 0.0
        %v1939 = vmax.f32 %v1907, 0.0
        %v1940 = vmax.f32 %v1908, 0.0
        %v1941 = vmax.f32 %v1909, 0.0
        %v1942 = vmax.f32 %v1910, 0.0
        %v1943 = vmax.f32 %v1911, 0.0
        %v1944 = vmax.f32 %v1912, 0.0
        %v1945 = vmax.f32 %v1913, 0.0
        %v1946 = vmax.f32 %v1914, 0.0
        %v1947 = vmax.f32 %v1915, 0.0
        %v1948 = vmax.f32 %v1916, 0.0
        %v1949 = vmax.f32 %v1917, 0.0
        %v1950 = vmax.f32 %v1918, 0.0
        %v1951 = vmax.f32 %v1919, 0.0
        %v1952 = vmax.f32 %v1920, 0.0
        %v1953 = vmax.f32 %v1921, 0.0
        %v1954 = vmax.f32 %v1922, 0.0
        %v1955 = vmax.f32 %v1923, 0.0
        %v1956 = vmax.f32 %v1924, 0.0
        %v1957 = vmax.f32 %v1925, 0.0
        %v1958 = vmax.f32 %v1926, 0.0
        %v1959 = vmax.f32 %v1927, 0.0
        %v1960 = vmax.f32 %v1928, 0.0
        %vm1961 = vcmask 195584
        %1962 = vst.msk [vmem:[#allocation3] sm:$0xff] %vm1961, 0.0
        %1963 = vst.msk [vmem:[#allocation3 + $0x8] sm:$0xff] %vm1961, 0.0
        %s1964 = scalar_lea.vmem [#allocation3], 272
        %1965 = vst.msk [vmem:[%s1964] sm:$0xff] %vm1961, 0.0
        %1966 = vst.msk [vmem:[%s1964 + $0x8] sm:$0xff] %vm1961, 0.0
        %s1967 = scalar_lea.vmem [#allocation3], 16
        %1968 = vst.msk [vmem:[%s1967] sm:$0xff] %vm1961, %v1929
        %1969 = vst.msk [vmem:[%s1967 + $0x8] sm:$0xff] %vm1961, %v1930
        %1970 = vst.msk [vmem:[%s1967 + $0x10] sm:$0xff] %vm1961, %v1931
        %1971 = vst.msk [vmem:[%s1967 + $0x18] sm:$0xff] %vm1961, %v1932
        %1972 = vst.msk [vmem:[%s1967 + $0x20] sm:$0xff] %vm1961, %v1933
        %1973 = vst.msk [vmem:[%s1967 + $0x28] sm:$0xff] %vm1961, %v1934
        %1974 = vst.msk [vmem:[%s1967 + $0x30] sm:$0xff] %vm1961, %v1935
        %1975 = vst.msk [vmem:[%s1967 + $0x38] sm:$0xff] %vm1961, %v1936
        %1976 = vst.msk [vmem:[%s1967 + $0x40] sm:$0xff] %vm1961, %v1937
        %1977 = vst.msk [vmem:[%s1967 + $0x48] sm:$0xff] %vm1961, %v1938
        %1978 = vst.msk [vmem:[%s1967 + $0x50] sm:$0xff] %vm1961, %v1939
        %1979 = vst.msk [vmem:[%s1967 + $0x58] sm:$0xff] %vm1961, %v1940
        %1980 = vst.msk [vmem:[%s1967 + $0x60] sm:$0xff] %vm1961, %v1941
        %1981 = vst.msk [vmem:[%s1967 + $0x68] sm:$0xff] %vm1961, %v1942
        %1982 = vst.msk [vmem:[%s1967 + $0x70] sm:$0xff] %vm1961, %v1943
        %1983 = vst.msk [vmem:[%s1967 + $0x78] sm:$0xff] %vm1961, %v1944
        %1984 = vst.msk [vmem:[%s1967 + $0x80] sm:$0xff] %vm1961, %v1945
        %1985 = vst.msk [vmem:[%s1967 + $0x88] sm:$0xff] %vm1961, %v1946
        %1986 = vst.msk [vmem:[%s1967 + $0x90] sm:$0xff] %vm1961, %v1947
        %1987 = vst.msk [vmem:[%s1967 + $0x98] sm:$0xff] %vm1961, %v1948
        %1988 = vst.msk [vmem:[%s1967 + $0xa0] sm:$0xff] %vm1961, %v1949
        %1989 = vst.msk [vmem:[%s1967 + $0xa8] sm:$0xff] %vm1961, %v1950
        %1990 = vst.msk [vmem:[%s1967 + $0xb0] sm:$0xff] %vm1961, %v1951
        %1991 = vst.msk [vmem:[%s1967 + $0xb8] sm:$0xff] %vm1961, %v1952
        %1992 = vst.msk [vmem:[%s1967 + $0xc0] sm:$0xff] %vm1961, %v1953
        %1993 = vst.msk [vmem:[%s1967 + $0xc8] sm:$0xff] %vm1961, %v1954
        %1994 = vst.msk [vmem:[%s1967 + $0xd0] sm:$0xff] %vm1961, %v1955
        %1995 = vst.msk [vmem:[%s1967 + $0xd8] sm:$0xff] %vm1961, %v1956
        %1996 = vst.msk [vmem:[%s1967 + $0xe0] sm:$0xff] %vm1961, %v1957
        %1997 = vst.msk [vmem:[%s1967 + $0xe8] sm:$0xff] %vm1961, %v1958
        %1998 = vst.msk [vmem:[%s1967 + $0xf0] sm:$0xff] %vm1961, %v1959
        %1999 = vst.msk [vmem:[%s1967 + $0xf8] sm:$0xff] %vm1961, %v1960
        %v2000 = vld [vmem:[#allocation3] sm:$0xff]
        %v2001 = vld [vmem:[#allocation3 + $0x8] sm:$0xff]
        %v2002 = vld [vmem:[#allocation3 + $0x10] sm:$0xff]
        %v2003 = vld [vmem:[#allocation3 + $0x18] sm:$0xff]
        %v2004 = vld [vmem:[#allocation3 + $0x20] sm:$0xff]
        %v2005 = vld [vmem:[#allocation3 + $0x28] sm:$0xff]
        %v2006 = vld [vmem:[#allocation3 + $0x30] sm:$0xff]
        %v2007 = vld [vmem:[#allocation3 + $0x38] sm:$0xff]
        %v2008 = vld [vmem:[#allocation3 + $0x40] sm:$0xff]
        %v2009 = vld [vmem:[#allocation3 + $0x48] sm:$0xff]
        %v2010 = vld [vmem:[#allocation3 + $0x50] sm:$0xff]
        %v2011 = vld [vmem:[#allocation3 + $0x58] sm:$0xff]
        %v2012 = vld [vmem:[#allocation3 + $0x60] sm:$0xff]
        %v2013 = vld [vmem:[#allocation3 + $0x68] sm:$0xff]
        %v2014 = vld [vmem:[#allocation3 + $0x70] sm:$0xff]
        %v2015 = vld [vmem:[#allocation3 + $0x78] sm:$0xff]
        %v2016 = vld [vmem:[#allocation3 + $0x80] sm:$0xff]
        %v2017 = vld [vmem:[#allocation3 + $0x88] sm:$0xff]
        %v2018 = vld [vmem:[#allocation3 + $0x90] sm:$0xff]
        %v2019 = vld [vmem:[#allocation3 + $0x98] sm:$0xff]
        %v2020 = vld [vmem:[#allocation3 + $0xa0] sm:$0xff]
        %v2021 = vld [vmem:[#allocation3 + $0xa8] sm:$0xff]
        %v2022 = vld [vmem:[#allocation3 + $0xb0] sm:$0xff]
        %v2023 = vld [vmem:[#allocation3 + $0xb8] sm:$0xff]
        %v2024 = vld [vmem:[#allocation3 + $0xc0] sm:$0xff]
        %v2025 = vld [vmem:[#allocation3 + $0xc8] sm:$0xff]
        %v2026 = vld [vmem:[#allocation3 + $0xd0] sm:$0xff]
        %v2027 = vld [vmem:[#allocation3 + $0xd8] sm:$0xff]
        %v2028 = vld [vmem:[#allocation3 + $0xe0] sm:$0xff]
        %v2029 = vld [vmem:[#allocation3 + $0xe8] sm:$0xff]
        %v2030 = vld [vmem:[#allocation3 + $0xf0] sm:$0xff]
        %v2031 = vld [vmem:[#allocation3 + $0xf8] sm:$0xff]
        %v2032 = vrot.slane %v2000, 7
        %v2033 = vrot.slane %v2001, 7
        %v2034 = vrot.slane %v2002, 7
        %v2035 = vrot.slane %v2003, 7
        %v2036 = vrot.slane %v2004, 7
        %v2037 = vrot.slane %v2005, 7
        %v2038 = vrot.slane %v2006, 7
        %v2039 = vrot.slane %v2007, 7
        %v2040 = vrot.slane %v2008, 7
        %v2041 = vrot.slane %v2009, 7
        %v2042 = vrot.slane %v2010, 7
        %v2043 = vrot.slane %v2011, 7
        %v2044 = vrot.slane %v2012, 7
        %v2045 = vrot.slane %v2013, 7
        %v2046 = vrot.slane %v2014, 7
        %v2047 = vrot.slane %v2015, 7
        %v2048 = vrot.slane %v2016, 7
        %v2049 = vrot.slane %v2017, 7
        %v2050 = vrot.slane %v2018, 7
        %v2051 = vrot.slane %v2019, 7
        %v2052 = vrot.slane %v2020, 7
        %v2053 = vrot.slane %v2021, 7
        %v2054 = vrot.slane %v2022, 7
        %v2055 = vrot.slane %v2023, 7
        %v2056 = vrot.slane %v2024, 7
        %v2057 = vrot.slane %v2025, 7
        %v2058 = vrot.slane %v2026, 7
        %v2059 = vrot.slane %v2027, 7
        %v2060 = vrot.slane %v2028, 7
        %v2061 = vrot.slane %v2029, 7
        %v2062 = vrot.slane %v2030, 7
        %v2063 = vrot.slane %v2031, 7
        %v2064 = vsel %vm531, %v2062, %v2063
        %v2065 = vsel %vm531, %v2061, %v2062
        %v2066 = vsel %vm531, %v2060, %v2061
        %v2067 = vsel %vm531, %v2059, %v2060
        %v2068 = vsel %vm531, %v2058, %v2059
        %v2069 = vsel %vm531, %v2057, %v2058
        %v2070 = vsel %vm531, %v2056, %v2057
        %v2071 = vsel %vm531, %v2055, %v2056
        %v2072 = vsel %vm531, %v2054, %v2055
        %v2073 = vsel %vm531, %v2053, %v2054
        %v2074 = vsel %vm531, %v2052, %v2053
        %v2075 = vsel %vm531, %v2051, %v2052
        %v2076 = vsel %vm531, %v2050, %v2051
        %v2077 = vsel %vm531, %v2049, %v2050
        %v2078 = vsel %vm531, %v2048, %v2049
        %v2079 = vsel %vm531, %v2047, %v2048
        %v2080 = vsel %vm531, %v2046, %v2047
        %v2081 = vsel %vm531, %v2045, %v2046
        %v2082 = vsel %vm531, %v2044, %v2045
        %v2083 = vsel %vm531, %v2043, %v2044
        %v2084 = vsel %vm531, %v2042, %v2043
        %v2085 = vsel %vm531, %v2041, %v2042
        %v2086 = vsel %vm531, %v2040, %v2041
        %v2087 = vsel %vm531, %v2039, %v2040
        %v2088 = vsel %vm531, %v2038, %v2039
        %v2089 = vsel %vm531, %v2037, %v2038
        %v2090 = vsel %vm531, %v2036, %v2037
        %v2091 = vsel %vm531, %v2035, %v2036
        %v2092 = vsel %vm531, %v2034, %v2035
        %v2093 = vsel %vm531, %v2033, %v2034
        %v2094 = vsel %vm531, %v2032, %v2033
        %v2095 = vsel %vm531, %v2063, %v2032
        %v2096 = vsel %vm495, 0.0, %v2095
        %v2097 = vsel %vm496, 0.0, %v2094
        %v2098 = vsel %vm495, 0.0, %v2093
        %v2099 = vsel %vm496, 0.0, %v2092
        %v2100 = vsel %vm495, 0.0, %v2091
        %v2101 = vsel %vm496, 0.0, %v2090
        %v2102 = vsel %vm495, 0.0, %v2089
        %v2103 = vsel %vm496, 0.0, %v2088
        %v2104 = vsel %vm495, 0.0, %v2087
        %v2105 = vsel %vm496, 0.0, %v2086
        %v2106 = vsel %vm495, 0.0, %v2085
        %v2107 = vsel %vm496, 0.0, %v2084
        %v2108 = vsel %vm495, 0.0, %v2083
        %v2109 = vsel %vm496, 0.0, %v2082
        %v2110 = vsel %vm495, 0.0, %v2081
        %v2111 = vsel %vm496, 0.0, %v2080
        %v2112 = vsel %vm495, 0.0, %v2079
        %v2113 = vsel %vm496, 0.0, %v2078
        %v2114 = vsel %vm495, 0.0, %v2077
        %v2115 = vsel %vm496, 0.0, %v2076
        %v2116 = vsel %vm495, 0.0, %v2075
        %v2117 = vsel %vm496, 0.0, %v2074
        %v2118 = vsel %vm495, 0.0, %v2073
        %v2119 = vsel %vm496, 0.0, %v2072
        %v2120 = vsel %vm495, 0.0, %v2071
        %v2121 = vsel %vm496, 0.0, %v2070
        %v2122 = vsel %vm495, 0.0, %v2069
        %v2123 = vsel %vm496, 0.0, %v2068
        %v2124 = vsel %vm495, 0.0, %v2067
        %v2125 = vsel %vm496, 0.0, %v2066
        %v2126 = vsel %vm495, 0.0, %v2065
        %v2127 = vsel %vm496, 0.0, %v2064
        %v2128 = vrot.slane %v2000, 1
        %v2129 = vrot.slane %v2001, 1
        %v2130 = vrot.slane %v2002, 1
        %v2131 = vrot.slane %v2003, 1
        %v2132 = vrot.slane %v2004, 1
        %v2133 = vrot.slane %v2005, 1
        %v2134 = vrot.slane %v2006, 1
        %v2135 = vrot.slane %v2007, 1
        %v2136 = vrot.slane %v2008, 1
        %v2137 = vrot.slane %v2009, 1
        %v2138 = vrot.slane %v2010, 1
        %v2139 = vrot.slane %v2011, 1
        %v2140 = vrot.slane %v2012, 1
        %v2141 = vrot.slane %v2013, 1
        %v2142 = vrot.slane %v2014, 1
        %v2143 = vrot.slane %v2015, 1
        %v2144 = vrot.slane %v2016, 1
        %v2145 = vrot.slane %v2017, 1
        %v2146 = vrot.slane %v2018, 1
        %v2147 = vrot.slane %v2019, 1
        %v2148 = vrot.slane %v2020, 1
        %v2149 = vrot.slane %v2021, 1
        %v2150 = vrot.slane %v2022, 1
        %v2151 = vrot.slane %v2023, 1
        %v2152 = vrot.slane %v2024, 1
        %v2153 = vrot.slane %v2025, 1
        %v2154 = vrot.slane %v2026, 1
        %v2155 = vrot.slane %v2027, 1
        %v2156 = vrot.slane %v2028, 1
        %v2157 = vrot.slane %v2029, 1
        %v2158 = vrot.slane %v2030, 1
        %v2159 = vrot.slane %v2031, 1
        %v2160 = vsel %vm628, %v2158, %v2159
        %v2161 = vsel %vm628, %v2157, %v2158
        %v2162 = vsel %vm628, %v2156, %v2157
        %v2163 = vsel %vm628, %v2155, %v2156
        %v2164 = vsel %vm628, %v2154, %v2155
        %v2165 = vsel %vm628, %v2153, %v2154
        %v2166 = vsel %vm628, %v2152, %v2153
        %v2167 = vsel %vm628, %v2151, %v2152
        %v2168 = vsel %vm628, %v2150, %v2151
        %v2169 = vsel %vm628, %v2149, %v2150
        %v2170 = vsel %vm628, %v2148, %v2149
        %v2171 = vsel %vm628, %v2147, %v2148
        %v2172 = vsel %vm628, %v2146, %v2147
        %v2173 = vsel %vm628, %v2145, %v2146
        %v2174 = vsel %vm628, %v2144, %v2145
        %v2175 = vsel %vm628, %v2143, %v2144
        %v2176 = vsel %vm628, %v2142, %v2143
        %v2177 = vsel %vm628, %v2141, %v2142
        %v2178 = vsel %vm628, %v2140, %v2141
        %v2179 = vsel %vm628, %v2139, %v2140
        %v2180 = vsel %vm628, %v2138, %v2139
        %v2181 = vsel %vm628, %v2137, %v2138
        %v2182 = vsel %vm628, %v2136, %v2137
        %v2183 = vsel %vm628, %v2135, %v2136
        %v2184 = vsel %vm628, %v2134, %v2135
        %v2185 = vsel %vm628, %v2133, %v2134
        %v2186 = vsel %vm628, %v2132, %v2133
        %v2187 = vsel %vm628, %v2131, %v2132
        %v2188 = vsel %vm628, %v2130, %v2131
        %v2189 = vsel %vm628, %v2129, %v2130
        %v2190 = vsel %vm628, %v2128, %v2129
        %v2191 = vsel %vm628, %v2159, %v2128
        %v2192 = vsel %vm497, 0.0, %v2190
        %v2193 = vsel %vm498, 0.0, %v2189
        %v2194 = vsel %vm497, 0.0, %v2188
        %v2195 = vsel %vm498, 0.0, %v2187
        %v2196 = vsel %vm497, 0.0, %v2186
        %v2197 = vsel %vm498, 0.0, %v2185
        %v2198 = vsel %vm497, 0.0, %v2184
        %v2199 = vsel %vm498, 0.0, %v2183
        %v2200 = vsel %vm497, 0.0, %v2182
        %v2201 = vsel %vm498, 0.0, %v2181
        %v2202 = vsel %vm497, 0.0, %v2180
        %v2203 = vsel %vm498, 0.0, %v2179
        %v2204 = vsel %vm497, 0.0, %v2178
        %v2205 = vsel %vm498, 0.0, %v2177
        %v2206 = vsel %vm497, 0.0, %v2176
        %v2207 = vsel %vm498, 0.0, %v2175
        %v2208 = vsel %vm497, 0.0, %v2174
        %v2209 = vsel %vm498, 0.0, %v2173
        %v2210 = vsel %vm497, 0.0, %v2172
        %v2211 = vsel %vm498, 0.0, %v2171
        %v2212 = vsel %vm497, 0.0, %v2170
        %v2213 = vsel %vm498, 0.0, %v2169
        %v2214 = vsel %vm497, 0.0, %v2168
        %v2215 = vsel %vm498, 0.0, %v2167
        %v2216 = vsel %vm497, 0.0, %v2166
        %v2217 = vsel %vm498, 0.0, %v2165
        %v2218 = vsel %vm497, 0.0, %v2164
        %v2219 = vsel %vm498, 0.0, %v2163
        %v2220 = vsel %vm497, 0.0, %v2162
        %v2221 = vsel %vm498, 0.0, %v2161
        %v2222 = vsel %vm497, 0.0, %v2160
        %v2223 = vsel %vm498, 0.0, %v2191
        %v2224 = vpack.c.bf16 %v2097, %v2096
        %v2225 = vpack.c.bf16 %v2099, %v2098
        %v2226 = vpack.c.bf16 %v2101, %v2100
        %v2227 = vpack.c.bf16 %v2103, %v2102
        %v2228 = vpack.c.bf16 %v2105, %v2104
        %v2229 = vpack.c.bf16 %v2107, %v2106
        %v2230 = vpack.c.bf16 %v2109, %v2108
        %v2231 = vpack.c.bf16 %v2111, %v2110
        %v2232 = vpack.c.bf16 %v2113, %v2112
        %v2233 = vpack.c.bf16 %v2115, %v2114
        %v2234 = vpack.c.bf16 %v2117, %v2116
        %v2235 = vpack.c.bf16 %v2119, %v2118
        %v2236 = vpack.c.bf16 %v2121, %v2120
        %v2237 = vpack.c.bf16 %v2123, %v2122
        %v2238 = vpack.c.bf16 %v2125, %v2124
        %v2239 = vpack.c.bf16 %v2127, %v2126
        %v2240 = vld [vmem:[%s10] sm:$0xf]
        %v2241 = vld [vmem:[%s10 + $0x4] sm:$0xf]
        %v2242 = vld [vmem:[%s10 + $0x8] sm:$0xf]
        %v2243 = vpack.c.bf16 %v2001, %v2000
        %v2244 = vpack.c.bf16 %v2003, %v2002
        %v2245 = vpack.c.bf16 %v2005, %v2004
        %v2246 = vpack.c.bf16 %v2007, %v2006
        %v2247 = vpack.c.bf16 %v2009, %v2008
        %v2248 = vpack.c.bf16 %v2011, %v2010
        %v2249 = vpack.c.bf16 %v2013, %v2012
        %v2250 = vpack.c.bf16 %v2015, %v2014
        %v2251 = vpack.c.bf16 %v2017, %v2016
        %v2252 = vpack.c.bf16 %v2019, %v2018
        %v2253 = vpack.c.bf16 %v2021, %v2020
        %v2254 = vpack.c.bf16 %v2023, %v2022
        %v2255 = vpack.c.bf16 %v2025, %v2024
        %v2256 = vpack.c.bf16 %v2027, %v2026
        %v2257 = vpack.c.bf16 %v2029, %v2028
        %v2258 = vpack.c.bf16 %v2031, %v2030
        %s2259 = scalar_lea.vmem %s10, 12
        %v2260 = vld [vmem:[%s2259] sm:$0xf]
        %v2261 = vld [vmem:[%s2259 + $0x4] sm:$0xf]
        %v2262 = vld [vmem:[%s2259 + $0x8] sm:$0xf]
        %v2266 = vunpack.c.l.b16 %v2260
        %v2267 = vunpack.c.l.b16 %v2261
        %v2268 = vunpack.c.l.b16 %v2262
        %v2269 = vpack.c.b16 %v2267, %v2266
        %v2270 = vpack.c.b16 %v2268, %v2268
        %v2273 = vsel %vm1961, %v2243, 0
        %v2276 = vsel %vm1961, %v2244, 0
        %v2279 = vsel %vm1961, %v2245, 0
        %v2282 = vsel %vm1961, %v2246, 0
        %v2285 = vsel %vm1961, %v2247, 0
        %v2288 = vsel %vm1961, %v2248, 0
        %v2291 = vsel %vm1961, %v2249, 0
        %v2294 = vsel %vm1961, %v2250, 0
        %v2297 = vsel %vm1961, %v2251, 0
        %v2300 = vsel %vm1961, %v2252, 0
        %v2303 = vsel %vm1961, %v2253, 0
        %v2306 = vsel %vm1961, %v2254, 0
        %v2309 = vsel %vm1961, %v2255, 0
        %v2312 = vsel %vm1961, %v2256, 0
        %v2315 = vsel %vm1961, %v2257, 0
        %v2318 = vsel %vm1961, %v2258, 0
        %vm2320 = vcmask 1043456
        %v2322 = vsel %vm2320, %v2270, 0
        %2324 = vmatprep.subr.bf16.mxu0 0
        %2325 = vmatpush1.bf16.msra.mxu0 %v2269
        %2326 = vmatprep.subr.bf16.mxu0 0
        %2327 = vmatpush1.bf16.msra.mxu0 %v2322
        %2328 = vmatprep.subr.bf16.mxu0 0
        %2329 = vmatpush1.bf16.msra.mxu0 0
        %2330 = vmatprep.subr.bf16.mxu0 0
        %2331 = vmatpush1.bf16.msra.mxu0 0
        %2332 = vmatprep.subr.bf16.mxu0 0
        %2333 = vmatpush1.bf16.msra.mxu0 0
        %2334 = vmatprep.subr.bf16.mxu0 0
        %2335 = vmatpush1.bf16.msra.mxu0 0
        %2336 = vmatprep.subr.bf16.mxu0 0
        %2337 = vmatpush1.bf16.msra.mxu0 0
        %2338 = vmatprep.subr.bf16.mxu0 0
        %2339 = vmatpush1.bf16.msra.mxu0 0
        %2340 = vmatprep.subr.bf16.mxu0 0
        %2341 = vmatpush1.bf16.msra.mxu0 0
        %2342 = vmatprep.subr.bf16.mxu0 0
        %2343 = vmatpush1.bf16.msra.mxu0 0
        %2344 = vmatprep.subr.bf16.mxu0 0
        %2345 = vmatpush1.bf16.msra.mxu0 0
        %2346 = vmatprep.subr.bf16.mxu0 0
        %2347 = vmatpush1.bf16.msra.mxu0 0
        %2348 = vmatprep.subr.bf16.mxu0 0
        %2349 = vmatpush1.bf16.msra.mxu0 0
        %2350 = vmatprep.subr.bf16.mxu0 0
        %2351 = vmatpush1.bf16.msra.mxu0 0
        %2352 = vmatprep.subr.bf16.mxu0 0
        %2353 = vmatpush1.bf16.msra.mxu0 0
        %2354 = vmatprep.subr.bf16.mxu0 0
        %2355 = vmatpush1.bf16.msra.mxu0 0
        %2356 = vmatprep.mubr.bf16.mxu0 0
        %2357 = vmatmul.mubr.bf16.gmra.mrb[0].mxu0 %v2273
        %v2358 = vpop.f32.mrb[0].mxu0
        %v2359 = vadd.f32 0.0, %v2358
        %v2360 = vpop.f32.mrb[0].mxu0
        %v2361 = vpop.f32.mrb[0].mxu0
        %v2362 = vadd.f32 0.0, %v2361
        %v2363 = vpop.f32.mrb[0].mxu0
        %2364 = vmatprep.mubr.bf16.mxu0 0
        %2365 = vmatmul.mubr.bf16.gmra.mrb[0].mxu0 %v2276
        %v2366 = vpop.f32.mrb[0].mxu0
        %v2367 = vadd.f32 0.0, %v2366
        %v2368 = vpop.f32.mrb[0].mxu0
        %v2369 = vpop.f32.mrb[0].mxu0
        %v2370 = vadd.f32 0.0, %v2369
        %v2371 = vpop.f32.mrb[0].mxu0
        %2372 = vmatprep.mubr.bf16.mxu0 0
        %2373 = vmatmul.mubr.bf16.gmra.mrb[0].mxu0 %v2279
        %v2374 = vpop.f32.mrb[0].mxu0
        %v2375 = vadd.f32 0.0, %v2374
        %v2376 = vpop.f32.mrb[0].mxu0
        %v2377 = vpop.f32.mrb[0].mxu0
        %v2378 = vadd.f32 0.0, %v2377
        %v2379 = vpop.f32.mrb[0].mxu0
        %2380 = vmatprep.mubr.bf16.mxu0 0
        %2381 = vmatmul.mubr.bf16.gmra.mrb[0].mxu0 %v2282
        %v2382 = vpop.f32.mrb[0].mxu0
        %v2383 = vadd.f32 0.0, %v2382
        %v2384 = vpop.f32.mrb[0].mxu0
        %v2385 = vpop.f32.mrb[0].mxu0
        %v2386 = vadd.f32 0.0, %v2385
        %v2387 = vpop.f32.mrb[0].mxu0
        %2388 = vmatprep.mubr.bf16.mxu0 0
        %2389 = vmatmul.mubr.bf16.gmra.mrb[0].mxu0 %v2285
        %v2390 = vpop.f32.mrb[0].mxu0
        %v2391 = vadd.f32 0.0, %v2390
        %v2392 = vpop.f32.mrb[0].mxu0
        %v2393 = vpop.f32.mrb[0].mxu0
        %v2394 = vadd.f32 0.0, %v2393
        %v2395 = vpop.f32.mrb[0].mxu0
        %2396 = vmatprep.mubr.bf16.mxu0 0
        %2397 = vmatmul.mubr.bf16.gmra.mrb[0].mxu0 %v2288
        %v2398 = vpop.f32.mrb[0].mxu0
        %v2399 = vadd.f32 0.0, %v2398
        %v2400 = vpop.f32.mrb[0].mxu0
        %v2401 = vpop.f32.mrb[0].mxu0
        %v2402 = vadd.f32 0.0, %v2401
        %v2403 = vpop.f32.mrb[0].mxu0
        %2404 = vmatprep.mubr.bf16.mxu0 0
        %2405 = vmatmul.mubr.bf16.gmra.mrb[0].mxu0 %v2291
        %v2406 = vpop.f32.mrb[0].mxu0
        %v2407 = vadd.f32 0.0, %v2406
        %v2408 = vpop.f32.mrb[0].mxu0
        %v2409 = vpop.f32.mrb[0].mxu0
        %v2410 = vadd.f32 0.0, %v2409
        %v2411 = vpop.f32.mrb[0].mxu0
        %2412 = vmatprep.mubr.bf16.mxu0 0
        %2413 = vmatmul.mubr.bf16.gmra.mrb[0].mxu0 %v2294
        %v2414 = vpop.f32.mrb[0].mxu0
        %v2415 = vadd.f32 0.0, %v2414
        %v2416 = vpop.f32.mrb[0].mxu0
        %v2417 = vpop.f32.mrb[0].mxu0
        %v2418 = vadd.f32 0.0, %v2417
        %v2419 = vpop.f32.mrb[0].mxu0
        %2420 = vmatprep.mubr.bf16.mxu0 0
        %2421 = vmatmul.mubr.bf16.gmra.mrb[0].mxu0 %v2297
        %v2422 = vpop.f32.mrb[0].mxu0
        %v2423 = vadd.f32 0.0, %v2422
        %v2424 = vpop.f32.mrb[0].mxu0
        %v2425 = vpop.f32.mrb[0].mxu0
        %v2426 = vadd.f32 0.0, %v2425
        %v2427 = vpop.f32.mrb[0].mxu0
        %2428 = vmatprep.mubr.bf16.mxu0 0
        %2429 = vmatmul.mubr.bf16.gmra.mrb[0].mxu0 %v2300
        %v2430 = vpop.f32.mrb[0].mxu0
        %v2431 = vadd.f32 0.0, %v2430
        %v2432 = vpop.f32.mrb[0].mxu0
        %v2433 = vpop.f32.mrb[0].mxu0
        %v2434 = vadd.f32 0.0, %v2433
        %v2435 = vpop.f32.mrb[0].mxu0
        %2436 = vmatprep.mubr.bf16.mxu0 0
        %2437 = vmatmul.mubr.bf16.gmra.mrb[0].mxu0 %v2303
        %v2438 = vpop.f32.mrb[0].mxu0
        %v2439 = vadd.f32 0.0, %v2438
        %v2440 = vpop.f32.mrb[0].mxu0
        %v2441 = vpop.f32.mrb[0].mxu0
        %v2442 = vadd.f32 0.0, %v2441
        %v2443 = vpop.f32.mrb[0].mxu0
        %2444 = vmatprep.mubr.bf16.mxu0 0
        %2445 = vmatmul.mubr.bf16.gmra.mrb[0].mxu0 %v2306
        %v2446 = vpop.f32.mrb[0].mxu0
        %v2447 = vadd.f32 0.0, %v2446
        %v2448 = vpop.f32.mrb[0].mxu0
        %v2449 = vpop.f32.mrb[0].mxu0
        %v2450 = vadd.f32 0.0, %v2449
        %v2451 = vpop.f32.mrb[0].mxu0
        %2452 = vmatprep.mubr.bf16.mxu0 0
        %2453 = vmatmul.mubr.bf16.gmra.mrb[0].mxu0 %v2309
        %v2454 = vpop.f32.mrb[0].mxu0
        %v2455 = vadd.f32 0.0, %v2454
        %v2456 = vpop.f32.mrb[0].mxu0
        %v2457 = vpop.f32.mrb[0].mxu0
        %v2458 = vadd.f32 0.0, %v2457
        %v2459 = vpop.f32.mrb[0].mxu0
        %2460 = vmatprep.mubr.bf16.mxu0 0
        %2461 = vmatmul.mubr.bf16.gmra.mrb[0].mxu0 %v2312
        %v2462 = vpop.f32.mrb[0].mxu0
        %v2463 = vadd.f32 0.0, %v2462
        %v2464 = vpop.f32.mrb[0].mxu0
        %v2465 = vpop.f32.mrb[0].mxu0
        %v2466 = vadd.f32 0.0, %v2465
        %v2467 = vpop.f32.mrb[0].mxu0
        %2468 = vmatprep.mubr.bf16.mxu0 0
        %2469 = vmatmul.mubr.bf16.gmra.mrb[0].mxu0 %v2315
        %v2470 = vpop.f32.mrb[0].mxu0
        %v2471 = vadd.f32 0.0, %v2470
        %v2472 = vpop.f32.mrb[0].mxu0
        %v2473 = vpop.f32.mrb[0].mxu0
        %v2474 = vadd.f32 0.0, %v2473
        %v2475 = vpop.f32.mrb[0].mxu0
        %2476 = vmatprep.mubr.bf16.mxu0 0
        %2477 = vmatmul.mubr.bf16.gmra.mrb[0].mxu0 %v2318
        %v2478 = vpop.f32.mrb[0].mxu0
        %v2479 = vadd.f32 0.0, %v2478
        %v2480 = vpop.f32.mrb[0].mxu0
        %v2481 = vpop.f32.mrb[0].mxu0
        %v2482 = vadd.f32 0.0, %v2481
        %v2483 = vpop.f32.mrb[0].mxu0
        %2484 = vdwg.mxu0
        %v2488 = vunpack.c.l.b16 %v2240
        %v2489 = vunpack.c.l.b16 %v2241
        %v2490 = vunpack.c.l.b16 %v2242
        %v2491 = vpack.c.b16 %v2489, %v2488
        %v2492 = vpack.c.b16 %v2490, %v2490
        %v2495 = vsel %vm1961, %v2224, 0
        %v2498 = vsel %vm1961, %v2225, 0
        %v2501 = vsel %vm1961, %v2226, 0
        %v2504 = vsel %vm1961, %v2227, 0
        %v2507 = vsel %vm1961, %v2228, 0
        %v2510 = vsel %vm1961, %v2229, 0
        %v2513 = vsel %vm1961, %v2230, 0
        %v2516 = vsel %vm1961, %v2231, 0
        %v2519 = vsel %vm1961, %v2232, 0
        %v2522 = vsel %vm1961, %v2233, 0
        %v2525 = vsel %vm1961, %v2234, 0
        %v2528 = vsel %vm1961, %v2235, 0
        %v2531 = vsel %vm1961, %v2236, 0
        %v2534 = vsel %vm1961, %v2237, 0
        %v2537 = vsel %vm1961, %v2238, 0
        %v2540 = vsel %vm1961, %v2239, 0
        %v2543 = vsel %vm2320, %v2492, 0
        %2545 = vmatprep.subr.bf16.mxu0 0
        %2546 = vmatpush1.bf16.msra.mxu0 %v2491
        %2547 = vmatprep.subr.bf16.mxu0 0
        %2548 = vmatpush1.bf16.msra.mxu0 %v2543
        %2549 = vmatprep.subr.bf16.mxu0 0
        %2550 = vmatpush1.bf16.msra.mxu0 0
        %2551 = vmatprep.subr.bf16.mxu0 0
        %2552 = vmatpush1.bf16.msra.mxu0 0
        %2553 = vmatprep.subr.bf16.mxu0 0
        %2554 = vmatpush1.bf16.msra.mxu0 0
        %2555 = vmatprep.subr.bf16.mxu0 0
        %2556 = vmatpush1.bf16.msra.mxu0 0
        %2557 = vmatprep.subr.bf16.mxu0 0
        %2558 = vmatpush1.bf16.msra.mxu0 0
        %2559 = vmatprep.subr.bf16.mxu0 0
        %2560 = vmatpush1.bf16.msra.mxu0 0
        %2561 = vmatprep.subr.bf16.mxu0 0
        %2562 = vmatpush1.bf16.msra.mxu0 0
        %2563 = vmatprep.subr.bf16.mxu0 0
        %2564 = vmatpush1.bf16.msra.mxu0 0
        %2565 = vmatprep.subr.bf16.mxu0 0
        %2566 = vmatpush1.bf16.msra.mxu0 0
        %2567 = vmatprep.subr.bf16.mxu0 0
        %2568 = vmatpush1.bf16.msra.mxu0 0
        %2569 = vmatprep.subr.bf16.mxu0 0
        %2570 = vmatpush1.bf16.msra.mxu0 0
        %2571 = vmatprep.subr.bf16.mxu0 0
        %2572 = vmatpush1.bf16.msra.mxu0 0
        %2573 = vmatprep.subr.bf16.mxu0 0
        %2574 = vmatpush1.bf16.msra.mxu0 0
        %2575 = vmatprep.subr.bf16.mxu0 0
        %2576 = vmatpush1.bf16.msra.mxu0 0
        %2577 = vmatprep.mubr.bf16.mxu0 0
        %2578 = vmatmul.mubr.bf16.gmra.mrb[0].mxu0 %v2495
        %v2579 = vpop.f32.mrb[0].mxu0
        %v2580 = vadd.f32 %v2359, %v2579
        %v2581 = vpop.f32.mrb[0].mxu0
        %v2582 = vpop.f32.mrb[0].mxu0
        %v2583 = vadd.f32 %v2362, %v2582
        %v2584 = vpop.f32.mrb[0].mxu0
        %2585 = vmatprep.mubr.bf16.mxu0 0
        %2586 = vmatmul.mubr.bf16.gmra.mrb[0].mxu0 %v2498
        %v2587 = vpop.f32.mrb[0].mxu0
        %v2588 = vadd.f32 %v2367, %v2587
        %v2589 = vpop.f32.mrb[0].mxu0
        %v2590 = vpop.f32.mrb[0].mxu0
        %v2591 = vadd.f32 %v2370, %v2590
        %v2592 = vpop.f32.mrb[0].mxu0
        %2593 = vmatprep.mubr.bf16.mxu0 0
        %2594 = vmatmul.mubr.bf16.gmra.mrb[0].mxu0 %v2501
        %v2595 = vpop.f32.mrb[0].mxu0
        %v2596 = vadd.f32 %v2375, %v2595
        %v2597 = vpop.f32.mrb[0].mxu0
        %v2598 = vpop.f32.mrb[0].mxu0
        %v2599 = vadd.f32 %v2378, %v2598
        %v2600 = vpop.f32.mrb[0].mxu0
        %2601 = vmatprep.mubr.bf16.mxu0 0
        %2602 = vmatmul.mubr.bf16.gmra.mrb[0].mxu0 %v2504
        %v2603 = vpop.f32.mrb[0].mxu0
        %v2604 = vadd.f32 %v2383, %v2603
        %v2605 = vpop.f32.mrb[0].mxu0
        %v2606 = vpop.f32.mrb[0].mxu0
        %v2607 = vadd.f32 %v2386, %v2606
        %v2608 = vpop.f32.mrb[0].mxu0
        %2609 = vmatprep.mubr.bf16.mxu0 0
        %2610 = vmatmul.mubr.bf16.gmra.mrb[0].mxu0 %v2507
        %v2611 = vpop.f32.mrb[0].mxu0
        %v2612 = vadd.f32 %v2391, %v2611
        %v2613 = vpop.f32.mrb[0].mxu0
        %v2614 = vpop.f32.mrb[0].mxu0
        %v2615 = vadd.f32 %v2394, %v2614
        %v2616 = vpop.f32.mrb[0].mxu0
        %2617 = vmatprep.mubr.bf16.mxu0 0
        %2618 = vmatmul.mubr.bf16.gmra.mrb[0].mxu0 %v2510
        %v2619 = vpop.f32.mrb[0].mxu0
        %v2620 = vadd.f32 %v2399, %v2619
        %v2621 = vpop.f32.mrb[0].mxu0
        %v2622 = vpop.f32.mrb[0].mxu0
        %v2623 = vadd.f32 %v2402, %v2622
        %v2624 = vpop.f32.mrb[0].mxu0
        %2625 = vmatprep.mubr.bf16.mxu0 0
        %2626 = vmatmul.mubr.bf16.gmra.mrb[0].mxu0 %v2513
        %v2627 = vpop.f32.mrb[0].mxu0
        %v2628 = vadd.f32 %v2407, %v2627
        %v2629 = vpop.f32.mrb[0].mxu0
        %v2630 = vpop.f32.mrb[0].mxu0
        %v2631 = vadd.f32 %v2410, %v2630
        %v2632 = vpop.f32.mrb[0].mxu0
        %2633 = vmatprep.mubr.bf16.mxu0 0
        %2634 = vmatmul.mubr.bf16.gmra.mrb[0].mxu0 %v2516
        %v2635 = vpop.f32.mrb[0].mxu0
        %v2636 = vadd.f32 %v2415, %v2635
        %v2637 = vpop.f32.mrb[0].mxu0
        %v2638 = vpop.f32.mrb[0].mxu0
        %v2639 = vadd.f32 %v2418, %v2638
        %v2640 = vpop.f32.mrb[0].mxu0
        %2641 = vmatprep.mubr.bf16.mxu0 0
        %2642 = vmatmul.mubr.bf16.gmra.mrb[0].mxu0 %v2519
        %v2643 = vpop.f32.mrb[0].mxu0
        %v2644 = vadd.f32 %v2423, %v2643
        %v2645 = vpop.f32.mrb[0].mxu0
        %v2646 = vpop.f32.mrb[0].mxu0
        %v2647 = vadd.f32 %v2426, %v2646
        %v2648 = vpop.f32.mrb[0].mxu0
        %2649 = vmatprep.mubr.bf16.mxu0 0
        %2650 = vmatmul.mubr.bf16.gmra.mrb[0].mxu0 %v2522
        %v2651 = vpop.f32.mrb[0].mxu0
        %v2652 = vadd.f32 %v2431, %v2651
        %v2653 = vpop.f32.mrb[0].mxu0
        %v2654 = vpop.f32.mrb[0].mxu0
        %v2655 = vadd.f32 %v2434, %v2654
        %v2656 = vpop.f32.mrb[0].mxu0
        %2657 = vmatprep.mubr.bf16.mxu0 0
        %2658 = vmatmul.mubr.bf16.gmra.mrb[0].mxu0 %v2525
        %v2659 = vpop.f32.mrb[0].mxu0
        %v2660 = vadd.f32 %v2439, %v2659
        %v2661 = vpop.f32.mrb[0].mxu0
        %v2662 = vpop.f32.mrb[0].mxu0
        %v2663 = vadd.f32 %v2442, %v2662
        %v2664 = vpop.f32.mrb[0].mxu0
        %2665 = vmatprep.mubr.bf16.mxu0 0
        %2666 = vmatmul.mubr.bf16.gmra.mrb[0].mxu0 %v2528
        %v2667 = vpop.f32.mrb[0].mxu0
        %v2668 = vadd.f32 %v2447, %v2667
        %v2669 = vpop.f32.mrb[0].mxu0
        %v2670 = vpop.f32.mrb[0].mxu0
        %v2671 = vadd.f32 %v2450, %v2670
        %v2672 = vpop.f32.mrb[0].mxu0
        %2673 = vmatprep.mubr.bf16.mxu0 0
        %2674 = vmatmul.mubr.bf16.gmra.mrb[0].mxu0 %v2531
        %v2675 = vpop.f32.mrb[0].mxu0
        %v2676 = vadd.f32 %v2455, %v2675
        %v2677 = vpop.f32.mrb[0].mxu0
        %v2678 = vpop.f32.mrb[0].mxu0
        %v2679 = vadd.f32 %v2458, %v2678
        %v2680 = vpop.f32.mrb[0].mxu0
        %2681 = vmatprep.mubr.bf16.mxu0 0
        %2682 = vmatmul.mubr.bf16.gmra.mrb[0].mxu0 %v2534
        %v2683 = vpop.f32.mrb[0].mxu0
        %v2684 = vadd.f32 %v2463, %v2683
        %v2685 = vpop.f32.mrb[0].mxu0
        %v2686 = vpop.f32.mrb[0].mxu0
        %v2687 = vadd.f32 %v2466, %v2686
        %v2688 = vpop.f32.mrb[0].mxu0
        %2689 = vmatprep.mubr.bf16.mxu0 0
        %2690 = vmatmul.mubr.bf16.gmra.mrb[0].mxu0 %v2537
        %v2691 = vpop.f32.mrb[0].mxu0
        %v2692 = vadd.f32 %v2471, %v2691
        %v2693 = vpop.f32.mrb[0].mxu0
        %v2694 = vpop.f32.mrb[0].mxu0
        %v2695 = vadd.f32 %v2474, %v2694
        %v2696 = vpop.f32.mrb[0].mxu0
        %2697 = vmatprep.mubr.bf16.mxu0 0
        %2698 = vmatmul.mubr.bf16.gmra.mrb[0].mxu0 %v2540
        %v2699 = vpop.f32.mrb[0].mxu0
        %v2700 = vadd.f32 %v2479, %v2699
        %v2701 = vpop.f32.mrb[0].mxu0
        %v2702 = vpop.f32.mrb[0].mxu0
        %v2703 = vadd.f32 %v2482, %v2702
        %v2704 = vpop.f32.mrb[0].mxu0
        %2705 = vdwg.mxu0
        %v2706 = vpack.c.bf16 %v2193, %v2192
        %v2707 = vpack.c.bf16 %v2195, %v2194
        %v2708 = vpack.c.bf16 %v2197, %v2196
        %v2709 = vpack.c.bf16 %v2199, %v2198
        %v2710 = vpack.c.bf16 %v2201, %v2200
        %v2711 = vpack.c.bf16 %v2203, %v2202
        %v2712 = vpack.c.bf16 %v2205, %v2204
        %v2713 = vpack.c.bf16 %v2207, %v2206
        %v2714 = vpack.c.bf16 %v2209, %v2208
        %v2715 = vpack.c.bf16 %v2211, %v2210
        %v2716 = vpack.c.bf16 %v2213, %v2212
        %v2717 = vpack.c.bf16 %v2215, %v2214
        %v2718 = vpack.c.bf16 %v2217, %v2216
        %v2719 = vpack.c.bf16 %v2219, %v2218
        %v2720 = vpack.c.bf16 %v2221, %v2220
        %v2721 = vpack.c.bf16 %v2223, %v2222
        %s2722 = scalar_lea.vmem %s10, 24
        %v2723 = vld [vmem:[%s2722] sm:$0xf]
        %v2724 = vld [vmem:[%s2722 + $0x4] sm:$0xf]
        %v2725 = vld [vmem:[%s2722 + $0x8] sm:$0xf]
        %v2729 = vunpack.c.l.b16 %v2723
        %v2730 = vunpack.c.l.b16 %v2724
        %v2731 = vunpack.c.l.b16 %v2725
        %v2732 = vpack.c.b16 %v2730, %v2729
        %v2733 = vpack.c.b16 %v2731, %v2731
        %v2736 = vsel %vm1961, %v2706, 0
        %v2739 = vsel %vm1961, %v2707, 0
        %v2742 = vsel %vm1961, %v2708, 0
        %v2745 = vsel %vm1961, %v2709, 0
        %v2748 = vsel %vm1961, %v2710, 0
        %v2751 = vsel %vm1961, %v2711, 0
        %v2754 = vsel %vm1961, %v2712, 0
        %v2757 = vsel %vm1961, %v2713, 0
        %v2760 = vsel %vm1961, %v2714, 0
        %v2763 = vsel %vm1961, %v2715, 0
        %v2766 = vsel %vm1961, %v2716, 0
        %v2769 = vsel %vm1961, %v2717, 0
        %v2772 = vsel %vm1961, %v2718, 0
        %v2775 = vsel %vm1961, %v2719, 0
        %v2778 = vsel %vm1961, %v2720, 0
        %v2781 = vsel %vm1961, %v2721, 0
        %v2784 = vsel %vm2320, %v2733, 0
        %2786 = vmatprep.subr.bf16.mxu0 0
        %2787 = vmatpush1.bf16.msra.mxu0 %v2732
        %2788 = vmatprep.subr.bf16.mxu0 0
        %2789 = vmatpush1.bf16.msra.mxu0 %v2784
        %2790 = vmatprep.subr.bf16.mxu0 0
        %2791 = vmatpush1.bf16.msra.mxu0 0
        %2792 = vmatprep.subr.bf16.mxu0 0
        %2793 = vmatpush1.bf16.msra.mxu0 0
        %2794 = vmatprep.subr.bf16.mxu0 0
        %2795 = vmatpush1.bf16.msra.mxu0 0
        %2796 = vmatprep.subr.bf16.mxu0 0
        %2797 = vmatpush1.bf16.msra.mxu0 0
        %2798 = vmatprep.subr.bf16.mxu0 0
        %2799 = vmatpush1.bf16.msra.mxu0 0
        %2800 = vmatprep.subr.bf16.mxu0 0
        %2801 = vmatpush1.bf16.msra.mxu0 0
        %2802 = vmatprep.subr.bf16.mxu0 0
        %2803 = vmatpush1.bf16.msra.mxu0 0
        %2804 = vmatprep.subr.bf16.mxu0 0
        %2805 = vmatpush1.bf16.msra.mxu0 0
        %2806 = vmatprep.subr.bf16.mxu0 0
        %2807 = vmatpush1.bf16.msra.mxu0 0
        %2808 = vmatprep.subr.bf16.mxu0 0
        %2809 = vmatpush1.bf16.msra.mxu0 0
        %2810 = vmatprep.subr.bf16.mxu0 0
        %2811 = vmatpush1.bf16.msra.mxu0 0
        %2812 = vmatprep.subr.bf16.mxu0 0
        %2813 = vmatpush1.bf16.msra.mxu0 0
        %2814 = vmatprep.subr.bf16.mxu0 0
        %2815 = vmatpush1.bf16.msra.mxu0 0
        %2816 = vmatprep.subr.bf16.mxu0 0
        %2817 = vmatpush1.bf16.msra.mxu0 0
        %2818 = vmatprep.mubr.bf16.mxu0 0
        %2819 = vmatmul.mubr.bf16.gmra.mrb[0].mxu0 %v2736
        %v2820 = vpop.f32.mrb[0].mxu0
        %v2821 = vadd.f32 0.0, %v2820
        %v2822 = vpop.f32.mrb[0].mxu0
        %v2823 = vpop.f32.mrb[0].mxu0
        %v2824 = vadd.f32 0.0, %v2823
        %v2825 = vpop.f32.mrb[0].mxu0
        %2826 = vmatprep.mubr.bf16.mxu0 0
        %2827 = vmatmul.mubr.bf16.gmra.mrb[0].mxu0 %v2739
        %v2828 = vpop.f32.mrb[0].mxu0
        %v2829 = vadd.f32 0.0, %v2828
        %v2830 = vpop.f32.mrb[0].mxu0
        %v2831 = vpop.f32.mrb[0].mxu0
        %v2832 = vadd.f32 0.0, %v2831
        %v2833 = vpop.f32.mrb[0].mxu0
        %2834 = vmatprep.mubr.bf16.mxu0 0
        %2835 = vmatmul.mubr.bf16.gmra.mrb[0].mxu0 %v2742
        %v2836 = vpop.f32.mrb[0].mxu0
        %v2837 = vadd.f32 0.0, %v2836
        %v2838 = vpop.f32.mrb[0].mxu0
        %v2839 = vpop.f32.mrb[0].mxu0
        %v2840 = vadd.f32 0.0, %v2839
        %v2841 = vpop.f32.mrb[0].mxu0
        %2842 = vmatprep.mubr.bf16.mxu0 0
        %2843 = vmatmul.mubr.bf16.gmra.mrb[0].mxu0 %v2745
        %v2844 = vpop.f32.mrb[0].mxu0
        %v2845 = vadd.f32 0.0, %v2844
        %v2846 = vpop.f32.mrb[0].mxu0
        %v2847 = vpop.f32.mrb[0].mxu0
        %v2848 = vadd.f32 0.0, %v2847
        %v2849 = vpop.f32.mrb[0].mxu0
        %2850 = vmatprep.mubr.bf16.mxu0 0
        %2851 = vmatmul.mubr.bf16.gmra.mrb[0].mxu0 %v2748
        %v2852 = vpop.f32.mrb[0].mxu0
        %v2853 = vadd.f32 0.0, %v2852
        %v2854 = vpop.f32.mrb[0].mxu0
        %v2855 = vpop.f32.mrb[0].mxu0
        %v2856 = vadd.f32 0.0, %v2855
        %v2857 = vpop.f32.mrb[0].mxu0
        %2858 = vmatprep.mubr.bf16.mxu0 0
        %2859 = vmatmul.mubr.bf16.gmra.mrb[0].mxu0 %v2751
        %v2860 = vpop.f32.mrb[0].mxu0
        %v2861 = vadd.f32 0.0, %v2860
        %v2862 = vpop.f32.mrb[0].mxu0
        %v2863 = vpop.f32.mrb[0].mxu0
        %v2864 = vadd.f32 0.0, %v2863
        %v2865 = vpop.f32.mrb[0].mxu0
        %2866 = vmatprep.mubr.bf16.mxu0 0
        %2867 = vmatmul.mubr.bf16.gmra.mrb[0].mxu0 %v2754
        %v2868 = vpop.f32.mrb[0].mxu0
        %v2869 = vadd.f32 0.0, %v2868
        %v2870 = vpop.f32.mrb[0].mxu0
        %v2871 = vpop.f32.mrb[0].mxu0
        %v2872 = vadd.f32 0.0, %v2871
        %v2873 = vpop.f32.mrb[0].mxu0
        %2874 = vmatprep.mubr.bf16.mxu0 0
        %2875 = vmatmul.mubr.bf16.gmra.mrb[0].mxu0 %v2757
        %v2876 = vpop.f32.mrb[0].mxu0
        %v2877 = vadd.f32 0.0, %v2876
        %v2878 = vpop.f32.mrb[0].mxu0
        %v2879 = vpop.f32.mrb[0].mxu0
        %v2880 = vadd.f32 0.0, %v2879
        %v2881 = vpop.f32.mrb[0].mxu0
        %2882 = vmatprep.mubr.bf16.mxu0 0
        %2883 = vmatmul.mubr.bf16.gmra.mrb[0].mxu0 %v2760
        %v2884 = vpop.f32.mrb[0].mxu0
        %v2885 = vadd.f32 0.0, %v2884
        %v2886 = vpop.f32.mrb[0].mxu0
        %v2887 = vpop.f32.mrb[0].mxu0
        %v2888 = vadd.f32 0.0, %v2887
        %v2889 = vpop.f32.mrb[0].mxu0
        %2890 = vmatprep.mubr.bf16.mxu0 0
        %2891 = vmatmul.mubr.bf16.gmra.mrb[0].mxu0 %v2763
        %v2892 = vpop.f32.mrb[0].mxu0
        %v2893 = vadd.f32 0.0, %v2892
        %v2894 = vpop.f32.mrb[0].mxu0
        %v2895 = vpop.f32.mrb[0].mxu0
        %v2896 = vadd.f32 0.0, %v2895
        %v2897 = vpop.f32.mrb[0].mxu0
        %2898 = vmatprep.mubr.bf16.mxu0 0
        %2899 = vmatmul.mubr.bf16.gmra.mrb[0].mxu0 %v2766
        %v2900 = vpop.f32.mrb[0].mxu0
        %v2901 = vadd.f32 0.0, %v2900
        %v2902 = vpop.f32.mrb[0].mxu0
        %v2903 = vpop.f32.mrb[0].mxu0
        %v2904 = vadd.f32 0.0, %v2903
        %v2905 = vpop.f32.mrb[0].mxu0
        %2906 = vmatprep.mubr.bf16.mxu0 0
        %2907 = vmatmul.mubr.bf16.gmra.mrb[0].mxu0 %v2769
        %v2908 = vpop.f32.mrb[0].mxu0
        %v2909 = vadd.f32 0.0, %v2908
        %v2910 = vpop.f32.mrb[0].mxu0
        %v2911 = vpop.f32.mrb[0].mxu0
        %v2912 = vadd.f32 0.0, %v2911
        %v2913 = vpop.f32.mrb[0].mxu0
        %2914 = vmatprep.mubr.bf16.mxu0 0
        %2915 = vmatmul.mubr.bf16.gmra.mrb[0].mxu0 %v2772
        %v2916 = vpop.f32.mrb[0].mxu0
        %v2917 = vadd.f32 0.0, %v2916
        %v2918 = vpop.f32.mrb[0].mxu0
        %v2919 = vpop.f32.mrb[0].mxu0
        %v2920 = vadd.f32 0.0, %v2919
        %v2921 = vpop.f32.mrb[0].mxu0
        %2922 = vmatprep.mubr.bf16.mxu0 0
        %2923 = vmatmul.mubr.bf16.gmra.mrb[0].mxu0 %v2775
        %v2924 = vpop.f32.mrb[0].mxu0
        %v2925 = vadd.f32 0.0, %v2924
        %v2926 = vpop.f32.mrb[0].mxu0
        %v2927 = vpop.f32.mrb[0].mxu0
        %v2928 = vadd.f32 0.0, %v2927
        %v2929 = vpop.f32.mrb[0].mxu0
        %2930 = vmatprep.mubr.bf16.mxu0 0
        %2931 = vmatmul.mubr.bf16.gmra.mrb[0].mxu0 %v2778
        %v2932 = vpop.f32.mrb[0].mxu0
        %v2933 = vadd.f32 0.0, %v2932
        %v2934 = vpop.f32.mrb[0].mxu0
        %v2935 = vpop.f32.mrb[0].mxu0
        %v2936 = vadd.f32 0.0, %v2935
        %v2937 = vpop.f32.mrb[0].mxu0
        %2938 = vmatprep.mubr.bf16.mxu0 0
        %2939 = vmatmul.mubr.bf16.gmra.mrb[0].mxu0 %v2781
        %v2940 = vpop.f32.mrb[0].mxu0
        %v2941 = vadd.f32 0.0, %v2940
        %v2942 = vpop.f32.mrb[0].mxu0
        %v2943 = vpop.f32.mrb[0].mxu0
        %v2944 = vadd.f32 0.0, %v2943
        %v2945 = vpop.f32.mrb[0].mxu0
        %2946 = vdwg.mxu0
        %v2947 = vadd.f32 %v2580, %v2821
        %v2948 = vadd.f32 %v2583, %v2824
        %v2949 = vadd.f32 %v2588, %v2829
        %v2950 = vadd.f32 %v2591, %v2832
        %v2951 = vadd.f32 %v2596, %v2837
        %v2952 = vadd.f32 %v2599, %v2840
        %v2953 = vadd.f32 %v2604, %v2845
        %v2954 = vadd.f32 %v2607, %v2848
        %v2955 = vadd.f32 %v2612, %v2853
        %v2956 = vadd.f32 %v2615, %v2856
        %v2957 = vadd.f32 %v2620, %v2861
        %v2958 = vadd.f32 %v2623, %v2864
        %v2959 = vadd.f32 %v2628, %v2869
        %v2960 = vadd.f32 %v2631, %v2872
        %v2961 = vadd.f32 %v2636, %v2877
        %v2962 = vadd.f32 %v2639, %v2880
        %v2963 = vadd.f32 %v2644, %v2885
        %v2964 = vadd.f32 %v2647, %v2888
        %v2965 = vadd.f32 %v2652, %v2893
        %v2966 = vadd.f32 %v2655, %v2896
        %v2967 = vadd.f32 %v2660, %v2901
        %v2968 = vadd.f32 %v2663, %v2904
        %v2969 = vadd.f32 %v2668, %v2909
        %v2970 = vadd.f32 %v2671, %v2912
        %v2971 = vadd.f32 %v2676, %v2917
        %v2972 = vadd.f32 %v2679, %v2920
        %v2973 = vadd.f32 %v2684, %v2925
        %v2974 = vadd.f32 %v2687, %v2928
        %v2975 = vadd.f32 %v2692, %v2933
        %v2976 = vadd.f32 %v2695, %v2936
        %v2977 = vadd.f32 %v2700, %v2941
        %v2978 = vadd.f32 %v2703, %v2944
        %v2979 = vld [vmem:[%s1967] sm:$0xff]
        %v2980 = vld [vmem:[%s1967 + $0x8] sm:$0xff]
        %v2981 = vld [vmem:[%s1967 + $0x10] sm:$0xff]
        %v2982 = vld [vmem:[%s1967 + $0x18] sm:$0xff]
        %v2983 = vld [vmem:[%s1967 + $0x20] sm:$0xff]
        %v2984 = vld [vmem:[%s1967 + $0x28] sm:$0xff]
        %v2985 = vld [vmem:[%s1967 + $0x30] sm:$0xff]
        %v2986 = vld [vmem:[%s1967 + $0x38] sm:$0xff]
        %v2987 = vld [vmem:[%s1967 + $0x40] sm:$0xff]
        %v2988 = vld [vmem:[%s1967 + $0x48] sm:$0xff]
        %v2989 = vld [vmem:[%s1967 + $0x50] sm:$0xff]
        %v2990 = vld [vmem:[%s1967 + $0x58] sm:$0xff]
        %v2991 = vld [vmem:[%s1967 + $0x60] sm:$0xff]
        %v2992 = vld [vmem:[%s1967 + $0x68] sm:$0xff]
        %v2993 = vld [vmem:[%s1967 + $0x70] sm:$0xff]
        %v2994 = vld [vmem:[%s1967 + $0x78] sm:$0xff]
        %v2995 = vld [vmem:[%s1967 + $0x80] sm:$0xff]
        %v2996 = vld [vmem:[%s1967 + $0x88] sm:$0xff]
        %v2997 = vld [vmem:[%s1967 + $0x90] sm:$0xff]
        %v2998 = vld [vmem:[%s1967 + $0x98] sm:$0xff]
        %v2999 = vld [vmem:[%s1967 + $0xa0] sm:$0xff]
        %v3000 = vld [vmem:[%s1967 + $0xa8] sm:$0xff]
        %v3001 = vld [vmem:[%s1967 + $0xb0] sm:$0xff]
        %v3002 = vld [vmem:[%s1967 + $0xb8] sm:$0xff]
        %v3003 = vld [vmem:[%s1967 + $0xc0] sm:$0xff]
        %v3004 = vld [vmem:[%s1967 + $0xc8] sm:$0xff]
        %v3005 = vld [vmem:[%s1967 + $0xd0] sm:$0xff]
        %v3006 = vld [vmem:[%s1967 + $0xd8] sm:$0xff]
        %v3007 = vld [vmem:[%s1967 + $0xe0] sm:$0xff]
        %v3008 = vld [vmem:[%s1967 + $0xe8] sm:$0xff]
        %v3009 = vld [vmem:[%s1967 + $0xf0] sm:$0xff]
        %v3010 = vld [vmem:[%s1967 + $0xf8] sm:$0xff]
        %v3011 = vrot.slane %v2979, 7
        %v3012 = vrot.slane %v2980, 7
        %v3013 = vrot.slane %v2981, 7
        %v3014 = vrot.slane %v2982, 7
        %v3015 = vrot.slane %v2983, 7
        %v3016 = vrot.slane %v2984, 7
        %v3017 = vrot.slane %v2985, 7
        %v3018 = vrot.slane %v2986, 7
        %v3019 = vrot.slane %v2987, 7
        %v3020 = vrot.slane %v2988, 7
        %v3021 = vrot.slane %v2989, 7
        %v3022 = vrot.slane %v2990, 7
        %v3023 = vrot.slane %v2991, 7
        %v3024 = vrot.slane %v2992, 7
        %v3025 = vrot.slane %v2993, 7
        %v3026 = vrot.slane %v2994, 7
        %v3027 = vrot.slane %v2995, 7
        %v3028 = vrot.slane %v2996, 7
        %v3029 = vrot.slane %v2997, 7
        %v3030 = vrot.slane %v2998, 7
        %v3031 = vrot.slane %v2999, 7
        %v3032 = vrot.slane %v3000, 7
        %v3033 = vrot.slane %v3001, 7
        %v3034 = vrot.slane %v3002, 7
        %v3035 = vrot.slane %v3003, 7
        %v3036 = vrot.slane %v3004, 7
        %v3037 = vrot.slane %v3005, 7
        %v3038 = vrot.slane %v3006, 7
        %v3039 = vrot.slane %v3007, 7
        %v3040 = vrot.slane %v3008, 7
        %v3041 = vrot.slane %v3009, 7
        %v3042 = vrot.slane %v3010, 7
        %v3043 = vsel %vm531, %v3041, %v3042
        %v3044 = vsel %vm531, %v3040, %v3041
        %v3045 = vsel %vm531, %v3039, %v3040
        %v3046 = vsel %vm531, %v3038, %v3039
        %v3047 = vsel %vm531, %v3037, %v3038
        %v3048 = vsel %vm531, %v3036, %v3037
        %v3049 = vsel %vm531, %v3035, %v3036
        %v3050 = vsel %vm531, %v3034, %v3035
        %v3051 = vsel %vm531, %v3033, %v3034
        %v3052 = vsel %vm531, %v3032, %v3033
        %v3053 = vsel %vm531, %v3031, %v3032
        %v3054 = vsel %vm531, %v3030, %v3031
        %v3055 = vsel %vm531, %v3029, %v3030
        %v3056 = vsel %vm531, %v3028, %v3029
        %v3057 = vsel %vm531, %v3027, %v3028
        %v3058 = vsel %vm531, %v3026, %v3027
        %v3059 = vsel %vm531, %v3025, %v3026
        %v3060 = vsel %vm531, %v3024, %v3025
        %v3061 = vsel %vm531, %v3023, %v3024
        %v3062 = vsel %vm531, %v3022, %v3023
        %v3063 = vsel %vm531, %v3021, %v3022
        %v3064 = vsel %vm531, %v3020, %v3021
        %v3065 = vsel %vm531, %v3019, %v3020
        %v3066 = vsel %vm531, %v3018, %v3019
        %v3067 = vsel %vm531, %v3017, %v3018
        %v3068 = vsel %vm531, %v3016, %v3017
        %v3069 = vsel %vm531, %v3015, %v3016
        %v3070 = vsel %vm531, %v3014, %v3015
        %v3071 = vsel %vm531, %v3013, %v3014
        %v3072 = vsel %vm531, %v3012, %v3013
        %v3073 = vsel %vm531, %v3011, %v3012
        %v3074 = vsel %vm531, %v3042, %v3011
        %v3075 = vsel %vm495, 0.0, %v3074
        %v3076 = vsel %vm496, 0.0, %v3073
        %v3077 = vsel %vm495, 0.0, %v3072
        %v3078 = vsel %vm496, 0.0, %v3071
        %v3079 = vsel %vm495, 0.0, %v3070
        %v3080 = vsel %vm496, 0.0, %v3069
        %v3081 = vsel %vm495, 0.0, %v3068
        %v3082 = vsel %vm496, 0.0, %v3067
        %v3083 = vsel %vm495, 0.0, %v3066
        %v3084 = vsel %vm496, 0.0, %v3065
        %v3085 = vsel %vm495, 0.0, %v3064
        %v3086 = vsel %vm496, 0.0, %v3063
        %v3087 = vsel %vm495, 0.0, %v3062
        %v3088 = vsel %vm496, 0.0, %v3061
        %v3089 = vsel %vm495, 0.0, %v3060
        %v3090 = vsel %vm496, 0.0, %v3059
        %v3091 = vsel %vm495, 0.0, %v3058
        %v3092 = vsel %vm496, 0.0, %v3057
        %v3093 = vsel %vm495, 0.0, %v3056
        %v3094 = vsel %vm496, 0.0, %v3055
        %v3095 = vsel %vm495, 0.0, %v3054
        %v3096 = vsel %vm496, 0.0, %v3053
        %v3097 = vsel %vm495, 0.0, %v3052
        %v3098 = vsel %vm496, 0.0, %v3051
        %v3099 = vsel %vm495, 0.0, %v3050
        %v3100 = vsel %vm496, 0.0, %v3049
        %v3101 = vsel %vm495, 0.0, %v3048
        %v3102 = vsel %vm496, 0.0, %v3047
        %v3103 = vsel %vm495, 0.0, %v3046
        %v3104 = vsel %vm496, 0.0, %v3045
        %v3105 = vsel %vm495, 0.0, %v3044
        %v3106 = vsel %vm496, 0.0, %v3043
        %v3107 = vrot.slane %v2979, 1
        %v3108 = vrot.slane %v2980, 1
        %v3109 = vrot.slane %v2981, 1
        %v3110 = vrot.slane %v2982, 1
        %v3111 = vrot.slane %v2983, 1
        %v3112 = vrot.slane %v2984, 1
        %v3113 = vrot.slane %v2985, 1
        %v3114 = vrot.slane %v2986, 1
        %v3115 = vrot.slane %v2987, 1
        %v3116 = vrot.slane %v2988, 1
        %v3117 = vrot.slane %v2989, 1
        %v3118 = vrot.slane %v2990, 1
        %v3119 = vrot.slane %v2991, 1
        %v3120 = vrot.slane %v2992, 1
        %v3121 = vrot.slane %v2993, 1
        %v3122 = vrot.slane %v2994, 1
        %v3123 = vrot.slane %v2995, 1
        %v3124 = vrot.slane %v2996, 1
        %v3125 = vrot.slane %v2997, 1
        %v3126 = vrot.slane %v2998, 1
        %v3127 = vrot.slane %v2999, 1
        %v3128 = vrot.slane %v3000, 1
        %v3129 = vrot.slane %v3001, 1
        %v3130 = vrot.slane %v3002, 1
        %v3131 = vrot.slane %v3003, 1
        %v3132 = vrot.slane %v3004, 1
        %v3133 = vrot.slane %v3005, 1
        %v3134 = vrot.slane %v3006, 1
        %v3135 = vrot.slane %v3007, 1
        %v3136 = vrot.slane %v3008, 1
        %v3137 = vrot.slane %v3009, 1
        %v3138 = vrot.slane %v3010, 1
        %v3139 = vsel %vm628, %v3137, %v3138
        %v3140 = vsel %vm628, %v3136, %v3137
        %v3141 = vsel %vm628, %v3135, %v3136
        %v3142 = vsel %vm628, %v3134, %v3135
        %v3143 = vsel %vm628, %v3133, %v3134
        %v3144 = vsel %vm628, %v3132, %v3133
        %v3145 = vsel %vm628, %v3131, %v3132
        %v3146 = vsel %vm628, %v3130, %v3131
        %v3147 = vsel %vm628, %v3129, %v3130
        %v3148 = vsel %vm628, %v3128, %v3129
        %v3149 = vsel %vm628, %v3127, %v3128
        %v3150 = vsel %vm628, %v3126, %v3127
        %v3151 = vsel %vm628, %v3125, %v3126
        %v3152 = vsel %vm628, %v3124, %v3125
        %v3153 = vsel %vm628, %v3123, %v3124
        %v3154 = vsel %vm628, %v3122, %v3123
        %v3155 = vsel %vm628, %v3121, %v3122
        %v3156 = vsel %vm628, %v3120, %v3121
        %v3157 = vsel %vm628, %v3119, %v3120
        %v3158 = vsel %vm628, %v3118, %v3119
        %v3159 = vsel %vm628, %v3117, %v3118
        %v3160 = vsel %vm628, %v3116, %v3117
        %v3161 = vsel %vm628, %v3115, %v3116
        %v3162 = vsel %vm628, %v3114, %v3115
        %v3163 = vsel %vm628, %v3113, %v3114
        %v3164 = vsel %vm628, %v3112, %v3113
        %v3165 = vsel %vm628, %v3111, %v3112
        %v3166 = vsel %vm628, %v3110, %v3111
        %v3167 = vsel %vm628, %v3109, %v3110
        %v3168 = vsel %vm628, %v3108, %v3109
        %v3169 = vsel %vm628, %v3107, %v3108
        %v3170 = vsel %vm628, %v3138, %v3107
        %v3171 = vsel %vm497, 0.0, %v3169
        %v3172 = vsel %vm498, 0.0, %v3168
        %v3173 = vsel %vm497, 0.0, %v3167
        %v3174 = vsel %vm498, 0.0, %v3166
        %v3175 = vsel %vm497, 0.0, %v3165
        %v3176 = vsel %vm498, 0.0, %v3164
        %v3177 = vsel %vm497, 0.0, %v3163
        %v3178 = vsel %vm498, 0.0, %v3162
        %v3179 = vsel %vm497, 0.0, %v3161
        %v3180 = vsel %vm498, 0.0, %v3160
        %v3181 = vsel %vm497, 0.0, %v3159
        %v3182 = vsel %vm498, 0.0, %v3158
        %v3183 = vsel %vm497, 0.0, %v3157
        %v3184 = vsel %vm498, 0.0, %v3156
        %v3185 = vsel %vm497, 0.0, %v3155
        %v3186 = vsel %vm498, 0.0, %v3154
        %v3187 = vsel %vm497, 0.0, %v3153
        %v3188 = vsel %vm498, 0.0, %v3152
        %v3189 = vsel %vm497, 0.0, %v3151
        %v3190 = vsel %vm498, 0.0, %v3150
        %v3191 = vsel %vm497, 0.0, %v3149
        %v3192 = vsel %vm498, 0.0, %v3148
        %v3193 = vsel %vm497, 0.0, %v3147
        %v3194 = vsel %vm498, 0.0, %v3146
        %v3195 = vsel %vm497, 0.0, %v3145
        %v3196 = vsel %vm498, 0.0, %v3144
        %v3197 = vsel %vm497, 0.0, %v3143
        %v3198 = vsel %vm498, 0.0, %v3142
        %v3199 = vsel %vm497, 0.0, %v3141
        %v3200 = vsel %vm498, 0.0, %v3140
        %v3201 = vsel %vm497, 0.0, %v3139
        %v3202 = vsel %vm498, 0.0, %v3170
        %v3203 = vpack.c.bf16 %v3076, %v3075
        %v3204 = vpack.c.bf16 %v3078, %v3077
        %v3205 = vpack.c.bf16 %v3080, %v3079
        %v3206 = vpack.c.bf16 %v3082, %v3081
        %v3207 = vpack.c.bf16 %v3084, %v3083
        %v3208 = vpack.c.bf16 %v3086, %v3085
        %v3209 = vpack.c.bf16 %v3088, %v3087
        %v3210 = vpack.c.bf16 %v3090, %v3089
        %v3211 = vpack.c.bf16 %v3092, %v3091
        %v3212 = vpack.c.bf16 %v3094, %v3093
        %v3213 = vpack.c.bf16 %v3096, %v3095
        %v3214 = vpack.c.bf16 %v3098, %v3097
        %v3215 = vpack.c.bf16 %v3100, %v3099
        %v3216 = vpack.c.bf16 %v3102, %v3101
        %v3217 = vpack.c.bf16 %v3104, %v3103
        %v3218 = vpack.c.bf16 %v3106, %v3105
        %s3219 = scalar_lea.vmem %s10, 36
        %v3220 = vld [vmem:[%s3219] sm:$0xf]
        %v3221 = vld [vmem:[%s3219 + $0x4] sm:$0xf]
        %v3222 = vld [vmem:[%s3219 + $0x8] sm:$0xf]
        %v3226 = vunpack.c.l.b16 %v3220
        %v3227 = vunpack.c.l.b16 %v3221
        %v3228 = vunpack.c.l.b16 %v3222
        %v3229 = vpack.c.b16 %v3227, %v3226
        %v3230 = vpack.c.b16 %v3228, %v3228
        %v3233 = vsel %vm1961, %v3203, 0
        %v3236 = vsel %vm1961, %v3204, 0
        %v3239 = vsel %vm1961, %v3205, 0
        %v3242 = vsel %vm1961, %v3206, 0
        %v3245 = vsel %vm1961, %v3207, 0
        %v3248 = vsel %vm1961, %v3208, 0
        %v3251 = vsel %vm1961, %v3209, 0
        %v3254 = vsel %vm1961, %v3210, 0
        %v3257 = vsel %vm1961, %v3211, 0
        %v3260 = vsel %vm1961, %v3212, 0
        %v3263 = vsel %vm1961, %v3213, 0
        %v3266 = vsel %vm1961, %v3214, 0
        %v3269 = vsel %vm1961, %v3215, 0
        %v3272 = vsel %vm1961, %v3216, 0
        %v3275 = vsel %vm1961, %v3217, 0
        %v3278 = vsel %vm1961, %v3218, 0
        %v3281 = vsel %vm2320, %v3230, 0
        %3283 = vmatprep.subr.bf16.mxu0 0
        %3284 = vmatpush1.bf16.msra.mxu0 %v3229
        %3285 = vmatprep.subr.bf16.mxu0 0
        %3286 = vmatpush1.bf16.msra.mxu0 %v3281
        %3287 = vmatprep.subr.bf16.mxu0 0
        %3288 = vmatpush1.bf16.msra.mxu0 0
        %3289 = vmatprep.subr.bf16.mxu0 0
        %3290 = vmatpush1.bf16.msra.mxu0 0
        %3291 = vmatprep.subr.bf16.mxu0 0
        %3292 = vmatpush1.bf16.msra.mxu0 0
        %3293 = vmatprep.subr.bf16.mxu0 0
        %3294 = vmatpush1.bf16.msra.mxu0 0
        %3295 = vmatprep.subr.bf16.mxu0 0
        %3296 = vmatpush1.bf16.msra.mxu0 0
        %3297 = vmatprep.subr.bf16.mxu0 0
        %3298 = vmatpush1.bf16.msra.mxu0 0
        %3299 = vmatprep.subr.bf16.mxu0 0
        %3300 = vmatpush1.bf16.msra.mxu0 0
        %3301 = vmatprep.subr.bf16.mxu0 0
        %3302 = vmatpush1.bf16.msra.mxu0 0
        %3303 = vmatprep.subr.bf16.mxu0 0
        %3304 = vmatpush1.bf16.msra.mxu0 0
        %3305 = vmatprep.subr.bf16.mxu0 0
        %3306 = vmatpush1.bf16.msra.mxu0 0
        %3307 = vmatprep.subr.bf16.mxu0 0
        %3308 = vmatpush1.bf16.msra.mxu0 0
        %3309 = vmatprep.subr.bf16.mxu0 0
        %3310 = vmatpush1.bf16.msra.mxu0 0
        %3311 = vmatprep.subr.bf16.mxu0 0
        %3312 = vmatpush1.bf16.msra.mxu0 0
        %3313 = vmatprep.subr.bf16.mxu0 0
        %3314 = vmatpush1.bf16.msra.mxu0 0
        %3315 = vmatprep.mubr.bf16.mxu0 0
        %3316 = vmatmul.mubr.bf16.gmra.mrb[0].mxu0 %v3233
        %v3317 = vpop.f32.mrb[0].mxu0
        %v3318 = vadd.f32 0.0, %v3317
        %v3319 = vpop.f32.mrb[0].mxu0
        %v3320 = vpop.f32.mrb[0].mxu0
        %v3321 = vadd.f32 0.0, %v3320
        %v3322 = vpop.f32.mrb[0].mxu0
        %3323 = vmatprep.mubr.bf16.mxu0 0
        %3324 = vmatmul.mubr.bf16.gmra.mrb[0].mxu0 %v3236
        %v3325 = vpop.f32.mrb[0].mxu0
        %v3326 = vadd.f32 0.0, %v3325
        %v3327 = vpop.f32.mrb[0].mxu0
        %v3328 = vpop.f32.mrb[0].mxu0
        %v3329 = vadd.f32 0.0, %v3328
        %v3330 = vpop.f32.mrb[0].mxu0
        %3331 = vmatprep.mubr.bf16.mxu0 0
        %3332 = vmatmul.mubr.bf16.gmra.mrb[0].mxu0 %v3239
        %v3333 = vpop.f32.mrb[0].mxu0
        %v3334 = vadd.f32 0.0, %v3333
        %v3335 = vpop.f32.mrb[0].mxu0
        %v3336 = vpop.f32.mrb[0].mxu0
        %v3337 = vadd.f32 0.0, %v3336
        %v3338 = vpop.f32.mrb[0].mxu0
        %3339 = vmatprep.mubr.bf16.mxu0 0
        %3340 = vmatmul.mubr.bf16.gmra.mrb[0].mxu0 %v3242
        %v3341 = vpop.f32.mrb[0].mxu0
        %v3342 = vadd.f32 0.0, %v3341
        %v3343 = vpop.f32.mrb[0].mxu0
        %v3344 = vpop.f32.mrb[0].mxu0
        %v3345 = vadd.f32 0.0, %v3344
        %v3346 = vpop.f32.mrb[0].mxu0
        %3347 = vmatprep.mubr.bf16.mxu0 0
        %3348 = vmatmul.mubr.bf16.gmra.mrb[0].mxu0 %v3245
        %v3349 = vpop.f32.mrb[0].mxu0
        %v3350 = vadd.f32 0.0, %v3349
        %v3351 = vpop.f32.mrb[0].mxu0
        %v3352 = vpop.f32.mrb[0].mxu0
        %v3353 = vadd.f32 0.0, %v3352
        %v3354 = vpop.f32.mrb[0].mxu0
        %3355 = vmatprep.mubr.bf16.mxu0 0
        %3356 = vmatmul.mubr.bf16.gmra.mrb[0].mxu0 %v3248
        %v3357 = vpop.f32.mrb[0].mxu0
        %v3358 = vadd.f32 0.0, %v3357
        %v3359 = vpop.f32.mrb[0].mxu0
        %v3360 = vpop.f32.mrb[0].mxu0
        %v3361 = vadd.f32 0.0, %v3360
        %v3362 = vpop.f32.mrb[0].mxu0
        %3363 = vmatprep.mubr.bf16.mxu0 0
        %3364 = vmatmul.mubr.bf16.gmra.mrb[0].mxu0 %v3251
        %v3365 = vpop.f32.mrb[0].mxu0
        %v3366 = vadd.f32 0.0, %v3365
        %v3367 = vpop.f32.mrb[0].mxu0
        %v3368 = vpop.f32.mrb[0].mxu0
        %v3369 = vadd.f32 0.0, %v3368
        %v3370 = vpop.f32.mrb[0].mxu0
        %3371 = vmatprep.mubr.bf16.mxu0 0
        %3372 = vmatmul.mubr.bf16.gmra.mrb[0].mxu0 %v3254
        %v3373 = vpop.f32.mrb[0].mxu0
        %v3374 = vadd.f32 0.0, %v3373
        %v3375 = vpop.f32.mrb[0].mxu0
        %v3376 = vpop.f32.mrb[0].mxu0
        %v3377 = vadd.f32 0.0, %v3376
        %v3378 = vpop.f32.mrb[0].mxu0
        %3379 = vmatprep.mubr.bf16.mxu0 0
        %3380 = vmatmul.mubr.bf16.gmra.mrb[0].mxu0 %v3257
        %v3381 = vpop.f32.mrb[0].mxu0
        %v3382 = vadd.f32 0.0, %v3381
        %v3383 = vpop.f32.mrb[0].mxu0
        %v3384 = vpop.f32.mrb[0].mxu0
        %v3385 = vadd.f32 0.0, %v3384
        %v3386 = vpop.f32.mrb[0].mxu0
        %3387 = vmatprep.mubr.bf16.mxu0 0
        %3388 = vmatmul.mubr.bf16.gmra.mrb[0].mxu0 %v3260
        %v3389 = vpop.f32.mrb[0].mxu0
        %v3390 = vadd.f32 0.0, %v3389
        %v3391 = vpop.f32.mrb[0].mxu0
        %v3392 = vpop.f32.mrb[0].mxu0
        %v3393 = vadd.f32 0.0, %v3392
        %v3394 = vpop.f32.mrb[0].mxu0
        %3395 = vmatprep.mubr.bf16.mxu0 0
        %3396 = vmatmul.mubr.bf16.gmra.mrb[0].mxu0 %v3263
        %v3397 = vpop.f32.mrb[0].mxu0
        %v3398 = vadd.f32 0.0, %v3397
        %v3399 = vpop.f32.mrb[0].mxu0
        %v3400 = vpop.f32.mrb[0].mxu0
        %v3401 = vadd.f32 0.0, %v3400
        %v3402 = vpop.f32.mrb[0].mxu0
        %3403 = vmatprep.mubr.bf16.mxu0 0
        %3404 = vmatmul.mubr.bf16.gmra.mrb[0].mxu0 %v3266
        %v3405 = vpop.f32.mrb[0].mxu0
        %v3406 = vadd.f32 0.0, %v3405
        %v3407 = vpop.f32.mrb[0].mxu0
        %v3408 = vpop.f32.mrb[0].mxu0
        %v3409 = vadd.f32 0.0, %v3408
        %v3410 = vpop.f32.mrb[0].mxu0
        %3411 = vmatprep.mubr.bf16.mxu0 0
        %3412 = vmatmul.mubr.bf16.gmra.mrb[0].mxu0 %v3269
        %v3413 = vpop.f32.mrb[0].mxu0
        %v3414 = vadd.f32 0.0, %v3413
        %v3415 = vpop.f32.mrb[0].mxu0
        %v3416 = vpop.f32.mrb[0].mxu0
        %v3417 = vadd.f32 0.0, %v3416
        %v3418 = vpop.f32.mrb[0].mxu0
        %3419 = vmatprep.mubr.bf16.mxu0 0
        %3420 = vmatmul.mubr.bf16.gmra.mrb[0].mxu0 %v3272
        %v3421 = vpop.f32.mrb[0].mxu0
        %v3422 = vadd.f32 0.0, %v3421
        %v3423 = vpop.f32.mrb[0].mxu0
        %v3424 = vpop.f32.mrb[0].mxu0
        %v3425 = vadd.f32 0.0, %v3424
        %v3426 = vpop.f32.mrb[0].mxu0
        %3427 = vmatprep.mubr.bf16.mxu0 0
        %3428 = vmatmul.mubr.bf16.gmra.mrb[0].mxu0 %v3275
        %v3429 = vpop.f32.mrb[0].mxu0
        %v3430 = vadd.f32 0.0, %v3429
        %v3431 = vpop.f32.mrb[0].mxu0
        %v3432 = vpop.f32.mrb[0].mxu0
        %v3433 = vadd.f32 0.0, %v3432
        %v3434 = vpop.f32.mrb[0].mxu0
        %3435 = vmatprep.mubr.bf16.mxu0 0
        %3436 = vmatmul.mubr.bf16.gmra.mrb[0].mxu0 %v3278
        %v3437 = vpop.f32.mrb[0].mxu0
        %v3438 = vadd.f32 0.0, %v3437
        %v3439 = vpop.f32.mrb[0].mxu0
        %v3440 = vpop.f32.mrb[0].mxu0
        %v3441 = vadd.f32 0.0, %v3440
        %v3442 = vpop.f32.mrb[0].mxu0
        %3443 = vdwg.mxu0
        %v3444 = vadd.f32 %v2947, %v3318
        %v3445 = vadd.f32 %v2948, %v3321
        %v3446 = vadd.f32 %v2949, %v3326
        %v3447 = vadd.f32 %v2950, %v3329
        %v3448 = vadd.f32 %v2951, %v3334
        %v3449 = vadd.f32 %v2952, %v3337
        %v3450 = vadd.f32 %v2953, %v3342
        %v3451 = vadd.f32 %v2954, %v3345
        %v3452 = vadd.f32 %v2955, %v3350
        %v3453 = vadd.f32 %v2956, %v3353
        %v3454 = vadd.f32 %v2957, %v3358
        %v3455 = vadd.f32 %v2958, %v3361
        %v3456 = vadd.f32 %v2959, %v3366
        %v3457 = vadd.f32 %v2960, %v3369
        %v3458 = vadd.f32 %v2961, %v3374
        %v3459 = vadd.f32 %v2962, %v3377
        %v3460 = vadd.f32 %v2963, %v3382
        %v3461 = vadd.f32 %v2964, %v3385
        %v3462 = vadd.f32 %v2965, %v3390
        %v3463 = vadd.f32 %v2966, %v3393
        %v3464 = vadd.f32 %v2967, %v3398
        %v3465 = vadd.f32 %v2968, %v3401
        %v3466 = vadd.f32 %v2969, %v3406
        %v3467 = vadd.f32 %v2970, %v3409
        %v3468 = vadd.f32 %v2971, %v3414
        %v3469 = vadd.f32 %v2972, %v3417
        %v3470 = vadd.f32 %v2973, %v3422
        %v3471 = vadd.f32 %v2974, %v3425
        %v3472 = vadd.f32 %v2975, %v3430
        %v3473 = vadd.f32 %v2976, %v3433
        %v3474 = vadd.f32 %v2977, %v3438
        %v3475 = vadd.f32 %v2978, %v3441
        %v3476 = vpack.c.bf16 %v2980, %v2979
        %v3477 = vpack.c.bf16 %v2982, %v2981
        %v3478 = vpack.c.bf16 %v2984, %v2983
        %v3479 = vpack.c.bf16 %v2986, %v2985
        %v3480 = vpack.c.bf16 %v2988, %v2987
        %v3481 = vpack.c.bf16 %v2990, %v2989
        %v3482 = vpack.c.bf16 %v2992, %v2991
        %v3483 = vpack.c.bf16 %v2994, %v2993
        %v3484 = vpack.c.bf16 %v2996, %v2995
        %v3485 = vpack.c.bf16 %v2998, %v2997
        %v3486 = vpack.c.bf16 %v3000, %v2999
        %v3487 = vpack.c.bf16 %v3002, %v3001
        %v3488 = vpack.c.bf16 %v3004, %v3003
        %v3489 = vpack.c.bf16 %v3006, %v3005
        %v3490 = vpack.c.bf16 %v3008, %v3007
        %v3491 = vpack.c.bf16 %v3010, %v3009
        %s3492 = scalar_lea.vmem %s10, 48
        %v3493 = vld [vmem:[%s3492] sm:$0xf]
        %v3494 = vld [vmem:[%s3492 + $0x4] sm:$0xf]
        %v3495 = vld [vmem:[%s3492 + $0x8] sm:$0xf]
        %v3499 = vunpack.c.l.b16 %v3493
        %v3500 = vunpack.c.l.b16 %v3494
        %v3501 = vunpack.c.l.b16 %v3495
        %v3502 = vpack.c.b16 %v3500, %v3499
        %v3503 = vpack.c.b16 %v3501, %v3501
        %v3506 = vsel %vm1961, %v3476, 0
        %v3509 = vsel %vm1961, %v3477, 0
        %v3512 = vsel %vm1961, %v3478, 0
        %v3515 = vsel %vm1961, %v3479, 0
        %v3518 = vsel %vm1961, %v3480, 0
        %v3521 = vsel %vm1961, %v3481, 0
        %v3524 = vsel %vm1961, %v3482, 0
        %v3527 = vsel %vm1961, %v3483, 0
        %v3530 = vsel %vm1961, %v3484, 0
        %v3533 = vsel %vm1961, %v3485, 0
        %v3536 = vsel %vm1961, %v3486, 0
        %v3539 = vsel %vm1961, %v3487, 0
        %v3542 = vsel %vm1961, %v3488, 0
        %v3545 = vsel %vm1961, %v3489, 0
        %v3548 = vsel %vm1961, %v3490, 0
        %v3551 = vsel %vm1961, %v3491, 0
        %v3554 = vsel %vm2320, %v3503, 0
        %3556 = vmatprep.subr.bf16.mxu0 0
        %3557 = vmatpush1.bf16.msra.mxu0 %v3502
        %3558 = vmatprep.subr.bf16.mxu0 0
        %3559 = vmatpush1.bf16.msra.mxu0 %v3554
        %3560 = vmatprep.subr.bf16.mxu0 0
        %3561 = vmatpush1.bf16.msra.mxu0 0
        %3562 = vmatprep.subr.bf16.mxu0 0
        %3563 = vmatpush1.bf16.msra.mxu0 0
        %3564 = vmatprep.subr.bf16.mxu0 0
        %3565 = vmatpush1.bf16.msra.mxu0 0
        %3566 = vmatprep.subr.bf16.mxu0 0
        %3567 = vmatpush1.bf16.msra.mxu0 0
        %3568 = vmatprep.subr.bf16.mxu0 0
        %3569 = vmatpush1.bf16.msra.mxu0 0
        %3570 = vmatprep.subr.bf16.mxu0 0
        %3571 = vmatpush1.bf16.msra.mxu0 0
        %3572 = vmatprep.subr.bf16.mxu0 0
        %3573 = vmatpush1.bf16.msra.mxu0 0
        %3574 = vmatprep.subr.bf16.mxu0 0
        %3575 = vmatpush1.bf16.msra.mxu0 0
        %3576 = vmatprep.subr.bf16.mxu0 0
        %3577 = vmatpush1.bf16.msra.mxu0 0
        %3578 = vmatprep.subr.bf16.mxu0 0
        %3579 = vmatpush1.bf16.msra.mxu0 0
        %3580 = vmatprep.subr.bf16.mxu0 0
        %3581 = vmatpush1.bf16.msra.mxu0 0
        %3582 = vmatprep.subr.bf16.mxu0 0
        %3583 = vmatpush1.bf16.msra.mxu0 0
        %3584 = vmatprep.subr.bf16.mxu0 0
        %3585 = vmatpush1.bf16.msra.mxu0 0
        %3586 = vmatprep.subr.bf16.mxu0 0
        %3587 = vmatpush1.bf16.msra.mxu0 0
        %3588 = vmatprep.mubr.bf16.mxu0 0
        %3589 = vmatmul.mubr.bf16.gmra.mrb[0].mxu0 %v3506
        %v3590 = vpop.f32.mrb[0].mxu0
        %v3591 = vadd.f32 0.0, %v3590
        %v3592 = vpop.f32.mrb[0].mxu0
        %v3593 = vpop.f32.mrb[0].mxu0
        %v3594 = vadd.f32 0.0, %v3593
        %v3595 = vpop.f32.mrb[0].mxu0
        %3596 = vmatprep.mubr.bf16.mxu0 0
        %3597 = vmatmul.mubr.bf16.gmra.mrb[0].mxu0 %v3509
        %v3598 = vpop.f32.mrb[0].mxu0
        %v3599 = vadd.f32 0.0, %v3598
        %v3600 = vpop.f32.mrb[0].mxu0
        %v3601 = vpop.f32.mrb[0].mxu0
        %v3602 = vadd.f32 0.0, %v3601
        %v3603 = vpop.f32.mrb[0].mxu0
        %3604 = vmatprep.mubr.bf16.mxu0 0
        %3605 = vmatmul.mubr.bf16.gmra.mrb[0].mxu0 %v3512
        %v3606 = vpop.f32.mrb[0].mxu0
        %v3607 = vadd.f32 0.0, %v3606
        %v3608 = vpop.f32.mrb[0].mxu0
        %v3609 = vpop.f32.mrb[0].mxu0
        %v3610 = vadd.f32 0.0, %v3609
        %v3611 = vpop.f32.mrb[0].mxu0
        %3612 = vmatprep.mubr.bf16.mxu0 0
        %3613 = vmatmul.mubr.bf16.gmra.mrb[0].mxu0 %v3515
        %v3614 = vpop.f32.mrb[0].mxu0
        %v3615 = vadd.f32 0.0, %v3614
        %v3616 = vpop.f32.mrb[0].mxu0
        %v3617 = vpop.f32.mrb[0].mxu0
        %v3618 = vadd.f32 0.0, %v3617
        %v3619 = vpop.f32.mrb[0].mxu0
        %3620 = vmatprep.mubr.bf16.mxu0 0
        %3621 = vmatmul.mubr.bf16.gmra.mrb[0].mxu0 %v3518
        %v3622 = vpop.f32.mrb[0].mxu0
        %v3623 = vadd.f32 0.0, %v3622
        %v3624 = vpop.f32.mrb[0].mxu0
        %v3625 = vpop.f32.mrb[0].mxu0
        %v3626 = vadd.f32 0.0, %v3625
        %v3627 = vpop.f32.mrb[0].mxu0
        %3628 = vmatprep.mubr.bf16.mxu0 0
        %3629 = vmatmul.mubr.bf16.gmra.mrb[0].mxu0 %v3521
        %v3630 = vpop.f32.mrb[0].mxu0
        %v3631 = vadd.f32 0.0, %v3630
        %v3632 = vpop.f32.mrb[0].mxu0
        %v3633 = vpop.f32.mrb[0].mxu0
        %v3634 = vadd.f32 0.0, %v3633
        %v3635 = vpop.f32.mrb[0].mxu0
        %3636 = vmatprep.mubr.bf16.mxu0 0
        %3637 = vmatmul.mubr.bf16.gmra.mrb[0].mxu0 %v3524
        %v3638 = vpop.f32.mrb[0].mxu0
        %v3639 = vadd.f32 0.0, %v3638
        %v3640 = vpop.f32.mrb[0].mxu0
        %v3641 = vpop.f32.mrb[0].mxu0
        %v3642 = vadd.f32 0.0, %v3641
        %v3643 = vpop.f32.mrb[0].mxu0
        %3644 = vmatprep.mubr.bf16.mxu0 0
        %3645 = vmatmul.mubr.bf16.gmra.mrb[0].mxu0 %v3527
        %v3646 = vpop.f32.mrb[0].mxu0
        %v3647 = vadd.f32 0.0, %v3646
        %v3648 = vpop.f32.mrb[0].mxu0
        %v3649 = vpop.f32.mrb[0].mxu0
        %v3650 = vadd.f32 0.0, %v3649
        %v3651 = vpop.f32.mrb[0].mxu0
        %3652 = vmatprep.mubr.bf16.mxu0 0
        %3653 = vmatmul.mubr.bf16.gmra.mrb[0].mxu0 %v3530
        %v3654 = vpop.f32.mrb[0].mxu0
        %v3655 = vadd.f32 0.0, %v3654
        %v3656 = vpop.f32.mrb[0].mxu0
        %v3657 = vpop.f32.mrb[0].mxu0
        %v3658 = vadd.f32 0.0, %v3657
        %v3659 = vpop.f32.mrb[0].mxu0
        %3660 = vmatprep.mubr.bf16.mxu0 0
        %3661 = vmatmul.mubr.bf16.gmra.mrb[0].mxu0 %v3533
        %v3662 = vpop.f32.mrb[0].mxu0
        %v3663 = vadd.f32 0.0, %v3662
        %v3664 = vpop.f32.mrb[0].mxu0
        %v3665 = vpop.f32.mrb[0].mxu0
        %v3666 = vadd.f32 0.0, %v3665
        %v3667 = vpop.f32.mrb[0].mxu0
        %3668 = vmatprep.mubr.bf16.mxu0 0
        %3669 = vmatmul.mubr.bf16.gmra.mrb[0].mxu0 %v3536
        %v3670 = vpop.f32.mrb[0].mxu0
        %v3671 = vadd.f32 0.0, %v3670
        %v3672 = vpop.f32.mrb[0].mxu0
        %v3673 = vpop.f32.mrb[0].mxu0
        %v3674 = vadd.f32 0.0, %v3673
        %v3675 = vpop.f32.mrb[0].mxu0
        %3676 = vmatprep.mubr.bf16.mxu0 0
        %3677 = vmatmul.mubr.bf16.gmra.mrb[0].mxu0 %v3539
        %v3678 = vpop.f32.mrb[0].mxu0
        %v3679 = vadd.f32 0.0, %v3678
        %v3680 = vpop.f32.mrb[0].mxu0
        %v3681 = vpop.f32.mrb[0].mxu0
        %v3682 = vadd.f32 0.0, %v3681
        %v3683 = vpop.f32.mrb[0].mxu0
        %3684 = vmatprep.mubr.bf16.mxu0 0
        %3685 = vmatmul.mubr.bf16.gmra.mrb[0].mxu0 %v3542
        %v3686 = vpop.f32.mrb[0].mxu0
        %v3687 = vadd.f32 0.0, %v3686
        %v3688 = vpop.f32.mrb[0].mxu0
        %v3689 = vpop.f32.mrb[0].mxu0
        %v3690 = vadd.f32 0.0, %v3689
        %v3691 = vpop.f32.mrb[0].mxu0
        %3692 = vmatprep.mubr.bf16.mxu0 0
        %3693 = vmatmul.mubr.bf16.gmra.mrb[0].mxu0 %v3545
        %v3694 = vpop.f32.mrb[0].mxu0
        %v3695 = vadd.f32 0.0, %v3694
        %v3696 = vpop.f32.mrb[0].mxu0
        %v3697 = vpop.f32.mrb[0].mxu0
        %v3698 = vadd.f32 0.0, %v3697
        %v3699 = vpop.f32.mrb[0].mxu0
        %3700 = vmatprep.mubr.bf16.mxu0 0
        %3701 = vmatmul.mubr.bf16.gmra.mrb[0].mxu0 %v3548
        %v3702 = vpop.f32.mrb[0].mxu0
        %v3703 = vadd.f32 0.0, %v3702
        %v3704 = vpop.f32.mrb[0].mxu0
        %v3705 = vpop.f32.mrb[0].mxu0
        %v3706 = vadd.f32 0.0, %v3705
        %v3707 = vpop.f32.mrb[0].mxu0
        %3708 = vmatprep.mubr.bf16.mxu0 0
        %3709 = vmatmul.mubr.bf16.gmra.mrb[0].mxu0 %v3551
        %v3710 = vpop.f32.mrb[0].mxu0
        %v3711 = vadd.f32 0.0, %v3710
        %v3712 = vpop.f32.mrb[0].mxu0
        %v3713 = vpop.f32.mrb[0].mxu0
        %v3714 = vadd.f32 0.0, %v3713
        %v3715 = vpop.f32.mrb[0].mxu0
        %3716 = vdwg.mxu0
        %v3717 = vadd.f32 %v3444, %v3591
        %v3718 = vadd.f32 %v3445, %v3594
        %v3719 = vadd.f32 %v3446, %v3599
        %v3720 = vadd.f32 %v3447, %v3602
        %v3721 = vadd.f32 %v3448, %v3607
        %v3722 = vadd.f32 %v3449, %v3610
        %v3723 = vadd.f32 %v3450, %v3615
        %v3724 = vadd.f32 %v3451, %v3618
        %v3725 = vadd.f32 %v3452, %v3623
        %v3726 = vadd.f32 %v3453, %v3626
        %v3727 = vadd.f32 %v3454, %v3631
        %v3728 = vadd.f32 %v3455, %v3634
        %v3729 = vadd.f32 %v3456, %v3639
        %v3730 = vadd.f32 %v3457, %v3642
        %v3731 = vadd.f32 %v3458, %v3647
        %v3732 = vadd.f32 %v3459, %v3650
        %v3733 = vadd.f32 %v3460, %v3655
        %v3734 = vadd.f32 %v3461, %v3658
        %v3735 = vadd.f32 %v3462, %v3663
        %v3736 = vadd.f32 %v3463, %v3666
        %v3737 = vadd.f32 %v3464, %v3671
        %v3738 = vadd.f32 %v3465, %v3674
        %v3739 = vadd.f32 %v3466, %v3679
        %v3740 = vadd.f32 %v3467, %v3682
        %v3741 = vadd.f32 %v3468, %v3687
        %v3742 = vadd.f32 %v3469, %v3690
        %v3743 = vadd.f32 %v3470, %v3695
        %v3744 = vadd.f32 %v3471, %v3698
        %v3745 = vadd.f32 %v3472, %v3703
        %v3746 = vadd.f32 %v3473, %v3706
        %v3747 = vadd.f32 %v3474, %v3711
        %v3748 = vadd.f32 %v3475, %v3714
        %v3749 = vpack.c.bf16 %v3172, %v3171
        %v3750 = vpack.c.bf16 %v3174, %v3173
        %v3751 = vpack.c.bf16 %v3176, %v3175
        %v3752 = vpack.c.bf16 %v3178, %v3177
        %v3753 = vpack.c.bf16 %v3180, %v3179
        %v3754 = vpack.c.bf16 %v3182, %v3181
        %v3755 = vpack.c.bf16 %v3184, %v3183
        %v3756 = vpack.c.bf16 %v3186, %v3185
        %v3757 = vpack.c.bf16 %v3188, %v3187
        %v3758 = vpack.c.bf16 %v3190, %v3189
        %v3759 = vpack.c.bf16 %v3192, %v3191
        %v3760 = vpack.c.bf16 %v3194, %v3193
        %v3761 = vpack.c.bf16 %v3196, %v3195
        %v3762 = vpack.c.bf16 %v3198, %v3197
        %v3763 = vpack.c.bf16 %v3200, %v3199
        %v3764 = vpack.c.bf16 %v3202, %v3201
        %s3765 = scalar_lea.vmem %s10, 60
        %v3766 = vld [vmem:[%s3765] sm:$0xf]
        %v3767 = vld [vmem:[%s3765 + $0x4] sm:$0xf]
        %v3768 = vld [vmem:[%s3765 + $0x8] sm:$0xf]
        %v3772 = vunpack.c.l.b16 %v3766
        %v3773 = vunpack.c.l.b16 %v3767
        %v3774 = vunpack.c.l.b16 %v3768
        %v3775 = vpack.c.b16 %v3773, %v3772
        %v3776 = vpack.c.b16 %v3774, %v3774
        %v3779 = vsel %vm1961, %v3749, 0
        %v3782 = vsel %vm1961, %v3750, 0
        %v3785 = vsel %vm1961, %v3751, 0
        %v3788 = vsel %vm1961, %v3752, 0
        %v3791 = vsel %vm1961, %v3753, 0
        %v3794 = vsel %vm1961, %v3754, 0
        %v3797 = vsel %vm1961, %v3755, 0
        %v3800 = vsel %vm1961, %v3756, 0
        %v3803 = vsel %vm1961, %v3757, 0
        %v3806 = vsel %vm1961, %v3758, 0
        %v3809 = vsel %vm1961, %v3759, 0
        %v3812 = vsel %vm1961, %v3760, 0
        %v3815 = vsel %vm1961, %v3761, 0
        %v3818 = vsel %vm1961, %v3762, 0
        %v3821 = vsel %vm1961, %v3763, 0
        %v3824 = vsel %vm1961, %v3764, 0
        %v3827 = vsel %vm2320, %v3776, 0
        %3829 = vmatprep.subr.bf16.mxu0 0
        %3830 = vmatpush1.bf16.msra.mxu0 %v3775
        %3831 = vmatprep.subr.bf16.mxu0 0
        %3832 = vmatpush1.bf16.msra.mxu0 %v3827
        %3833 = vmatprep.subr.bf16.mxu0 0
        %3834 = vmatpush1.bf16.msra.mxu0 0
        %3835 = vmatprep.subr.bf16.mxu0 0
        %3836 = vmatpush1.bf16.msra.mxu0 0
        %3837 = vmatprep.subr.bf16.mxu0 0
        %3838 = vmatpush1.bf16.msra.mxu0 0
        %3839 = vmatprep.subr.bf16.mxu0 0
        %3840 = vmatpush1.bf16.msra.mxu0 0
        %3841 = vmatprep.subr.bf16.mxu0 0
        %3842 = vmatpush1.bf16.msra.mxu0 0
        %3843 = vmatprep.subr.bf16.mxu0 0
        %3844 = vmatpush1.bf16.msra.mxu0 0
        %3845 = vmatprep.subr.bf16.mxu0 0
        %3846 = vmatpush1.bf16.msra.mxu0 0
        %3847 = vmatprep.subr.bf16.mxu0 0
        %3848 = vmatpush1.bf16.msra.mxu0 0
        %3849 = vmatprep.subr.bf16.mxu0 0
        %3850 = vmatpush1.bf16.msra.mxu0 0
        %3851 = vmatprep.subr.bf16.mxu0 0
        %3852 = vmatpush1.bf16.msra.mxu0 0
        %3853 = vmatprep.subr.bf16.mxu0 0
        %3854 = vmatpush1.bf16.msra.mxu0 0
        %3855 = vmatprep.subr.bf16.mxu0 0
        %3856 = vmatpush1.bf16.msra.mxu0 0
        %3857 = vmatprep.subr.bf16.mxu0 0
        %3858 = vmatpush1.bf16.msra.mxu0 0
        %3859 = vmatprep.subr.bf16.mxu0 0
        %3860 = vmatpush1.bf16.msra.mxu0 0
        %3861 = vmatprep.mubr.bf16.mxu0 0
        %3862 = vmatmul.mubr.bf16.gmra.mrb[0].mxu0 %v3779
        %v3863 = vpop.f32.mrb[0].mxu0
        %v3864 = vadd.f32 0.0, %v3863
        %v3865 = vpop.f32.mrb[0].mxu0
        %v3866 = vpop.f32.mrb[0].mxu0
        %v3867 = vadd.f32 0.0, %v3866
        %v3868 = vpop.f32.mrb[0].mxu0
        %3869 = vmatprep.mubr.bf16.mxu0 0
        %3870 = vmatmul.mubr.bf16.gmra.mrb[0].mxu0 %v3782
        %v3871 = vpop.f32.mrb[0].mxu0
        %v3872 = vadd.f32 0.0, %v3871
        %v3873 = vpop.f32.mrb[0].mxu0
        %v3874 = vpop.f32.mrb[0].mxu0
        %v3875 = vadd.f32 0.0, %v3874
        %v3876 = vpop.f32.mrb[0].mxu0
        %3877 = vmatprep.mubr.bf16.mxu0 0
        %3878 = vmatmul.mubr.bf16.gmra.mrb[0].mxu0 %v3785
        %v3879 = vpop.f32.mrb[0].mxu0
        %v3880 = vadd.f32 0.0, %v3879
        %v3881 = vpop.f32.mrb[0].mxu0
        %v3882 = vpop.f32.mrb[0].mxu0
        %v3883 = vadd.f32 0.0, %v3882
        %v3884 = vpop.f32.mrb[0].mxu0
        %3885 = vmatprep.mubr.bf16.mxu0 0
        %3886 = vmatmul.mubr.bf16.gmra.mrb[0].mxu0 %v3788
        %v3887 = vpop.f32.mrb[0].mxu0
        %v3888 = vadd.f32 0.0, %v3887
        %v3889 = vpop.f32.mrb[0].mxu0
        %v3890 = vpop.f32.mrb[0].mxu0
        %v3891 = vadd.f32 0.0, %v3890
        %v3892 = vpop.f32.mrb[0].mxu0
        %3893 = vmatprep.mubr.bf16.mxu0 0
        %3894 = vmatmul.mubr.bf16.gmra.mrb[0].mxu0 %v3791
        %v3895 = vpop.f32.mrb[0].mxu0
        %v3896 = vadd.f32 0.0, %v3895
        %v3897 = vpop.f32.mrb[0].mxu0
        %v3898 = vpop.f32.mrb[0].mxu0
        %v3899 = vadd.f32 0.0, %v3898
        %v3900 = vpop.f32.mrb[0].mxu0
        %3901 = vmatprep.mubr.bf16.mxu0 0
        %3902 = vmatmul.mubr.bf16.gmra.mrb[0].mxu0 %v3794
        %v3903 = vpop.f32.mrb[0].mxu0
        %v3904 = vadd.f32 0.0, %v3903
        %v3905 = vpop.f32.mrb[0].mxu0
        %v3906 = vpop.f32.mrb[0].mxu0
        %v3907 = vadd.f32 0.0, %v3906
        %v3908 = vpop.f32.mrb[0].mxu0
        %3909 = vmatprep.mubr.bf16.mxu0 0
        %3910 = vmatmul.mubr.bf16.gmra.mrb[0].mxu0 %v3797
        %v3911 = vpop.f32.mrb[0].mxu0
        %v3912 = vadd.f32 0.0, %v3911
        %v3913 = vpop.f32.mrb[0].mxu0
        %v3914 = vpop.f32.mrb[0].mxu0
        %v3915 = vadd.f32 0.0, %v3914
        %v3916 = vpop.f32.mrb[0].mxu0
        %3917 = vmatprep.mubr.bf16.mxu0 0
        %3918 = vmatmul.mubr.bf16.gmra.mrb[0].mxu0 %v3800
        %v3919 = vpop.f32.mrb[0].mxu0
        %v3920 = vadd.f32 0.0, %v3919
        %v3921 = vpop.f32.mrb[0].mxu0
        %v3922 = vpop.f32.mrb[0].mxu0
        %v3923 = vadd.f32 0.0, %v3922
        %v3924 = vpop.f32.mrb[0].mxu0
        %3925 = vmatprep.mubr.bf16.mxu0 0
        %3926 = vmatmul.mubr.bf16.gmra.mrb[0].mxu0 %v3803
        %v3927 = vpop.f32.mrb[0].mxu0
        %v3928 = vadd.f32 0.0, %v3927
        %v3929 = vpop.f32.mrb[0].mxu0
        %v3930 = vpop.f32.mrb[0].mxu0
        %v3931 = vadd.f32 0.0, %v3930
        %v3932 = vpop.f32.mrb[0].mxu0
        %3933 = vmatprep.mubr.bf16.mxu0 0
        %3934 = vmatmul.mubr.bf16.gmra.mrb[0].mxu0 %v3806
        %v3935 = vpop.f32.mrb[0].mxu0
        %v3936 = vadd.f32 0.0, %v3935
        %v3937 = vpop.f32.mrb[0].mxu0
        %v3938 = vpop.f32.mrb[0].mxu0
        %v3939 = vadd.f32 0.0, %v3938
        %v3940 = vpop.f32.mrb[0].mxu0
        %3941 = vmatprep.mubr.bf16.mxu0 0
        %3942 = vmatmul.mubr.bf16.gmra.mrb[0].mxu0 %v3809
        %v3943 = vpop.f32.mrb[0].mxu0
        %v3944 = vadd.f32 0.0, %v3943
        %v3945 = vpop.f32.mrb[0].mxu0
        %v3946 = vpop.f32.mrb[0].mxu0
        %v3947 = vadd.f32 0.0, %v3946
        %v3948 = vpop.f32.mrb[0].mxu0
        %3949 = vmatprep.mubr.bf16.mxu0 0
        %3950 = vmatmul.mubr.bf16.gmra.mrb[0].mxu0 %v3812
        %v3951 = vpop.f32.mrb[0].mxu0
        %v3952 = vadd.f32 0.0, %v3951
        %v3953 = vpop.f32.mrb[0].mxu0
        %v3954 = vpop.f32.mrb[0].mxu0
        %v3955 = vadd.f32 0.0, %v3954
        %v3956 = vpop.f32.mrb[0].mxu0
        %3957 = vmatprep.mubr.bf16.mxu0 0
        %3958 = vmatmul.mubr.bf16.gmra.mrb[0].mxu0 %v3815
        %v3959 = vpop.f32.mrb[0].mxu0
        %v3960 = vadd.f32 0.0, %v3959
        %v3961 = vpop.f32.mrb[0].mxu0
        %v3962 = vpop.f32.mrb[0].mxu0
        %v3963 = vadd.f32 0.0, %v3962
        %v3964 = vpop.f32.mrb[0].mxu0
        %3965 = vmatprep.mubr.bf16.mxu0 0
        %3966 = vmatmul.mubr.bf16.gmra.mrb[0].mxu0 %v3818
        %v3967 = vpop.f32.mrb[0].mxu0
        %v3968 = vadd.f32 0.0, %v3967
        %v3969 = vpop.f32.mrb[0].mxu0
        %v3970 = vpop.f32.mrb[0].mxu0
        %v3971 = vadd.f32 0.0, %v3970
        %v3972 = vpop.f32.mrb[0].mxu0
        %3973 = vmatprep.mubr.bf16.mxu0 0
        %3974 = vmatmul.mubr.bf16.gmra.mrb[0].mxu0 %v3821
        %v3975 = vpop.f32.mrb[0].mxu0
        %v3976 = vadd.f32 0.0, %v3975
        %v3977 = vpop.f32.mrb[0].mxu0
        %v3978 = vpop.f32.mrb[0].mxu0
        %v3979 = vadd.f32 0.0, %v3978
        %v3980 = vpop.f32.mrb[0].mxu0
        %3981 = vmatprep.mubr.bf16.mxu0 0
        %3982 = vmatmul.mubr.bf16.gmra.mrb[0].mxu0 %v3824
        %v3983 = vpop.f32.mrb[0].mxu0
        %v3984 = vadd.f32 0.0, %v3983
        %v3985 = vpop.f32.mrb[0].mxu0
        %v3986 = vpop.f32.mrb[0].mxu0
        %v3987 = vadd.f32 0.0, %v3986
        %v3988 = vpop.f32.mrb[0].mxu0
        %3989 = vdwg.mxu0
        %v3990 = vadd.f32 %v3717, %v3864
        %v3991 = vadd.f32 %v3718, %v3867
        %v3992 = vadd.f32 %v3719, %v3872
        %v3993 = vadd.f32 %v3720, %v3875
        %v3994 = vadd.f32 %v3721, %v3880
        %v3995 = vadd.f32 %v3722, %v3883
        %v3996 = vadd.f32 %v3723, %v3888
        %v3997 = vadd.f32 %v3724, %v3891
        %v3998 = vadd.f32 %v3725, %v3896
        %v3999 = vadd.f32 %v3726, %v3899
        %v4000 = vadd.f32 %v3727, %v3904
        %v4001 = vadd.f32 %v3728, %v3907
        %v4002 = vadd.f32 %v3729, %v3912
        %v4003 = vadd.f32 %v3730, %v3915
        %v4004 = vadd.f32 %v3731, %v3920
        %v4005 = vadd.f32 %v3732, %v3923
        %v4006 = vadd.f32 %v3733, %v3928
        %v4007 = vadd.f32 %v3734, %v3931
        %v4008 = vadd.f32 %v3735, %v3936
        %v4009 = vadd.f32 %v3736, %v3939
        %v4010 = vadd.f32 %v3737, %v3944
        %v4011 = vadd.f32 %v3738, %v3947
        %v4012 = vadd.f32 %v3739, %v3952
        %v4013 = vadd.f32 %v3740, %v3955
        %v4014 = vadd.f32 %v3741, %v3960
        %v4015 = vadd.f32 %v3742, %v3963
        %v4016 = vadd.f32 %v3743, %v3968
        %v4017 = vadd.f32 %v3744, %v3971
        %v4018 = vadd.f32 %v3745, %v3976
        %v4019 = vadd.f32 %v3746, %v3979
        %v4020 = vadd.f32 %v3747, %v3984
        %v4021 = vadd.f32 %v3748, %v3987
        %s4022 = scalar_lea.vmem [#allocation3], 32
        %v4023 = vld [vmem:[%s4022] sm:$0xff]
        %v4024 = vld [vmem:[%s4022 + $0x8] sm:$0xff]
        %v4025 = vld [vmem:[%s4022 + $0x10] sm:$0xff]
        %v4026 = vld [vmem:[%s4022 + $0x18] sm:$0xff]
        %v4027 = vld [vmem:[%s4022 + $0x20] sm:$0xff]
        %v4028 = vld [vmem:[%s4022 + $0x28] sm:$0xff]
        %v4029 = vld [vmem:[%s4022 + $0x30] sm:$0xff]
        %v4030 = vld [vmem:[%s4022 + $0x38] sm:$0xff]
        %v4031 = vld [vmem:[%s4022 + $0x40] sm:$0xff]
        %v4032 = vld [vmem:[%s4022 + $0x48] sm:$0xff]
        %v4033 = vld [vmem:[%s4022 + $0x50] sm:$0xff]
        %v4034 = vld [vmem:[%s4022 + $0x58] sm:$0xff]
        %v4035 = vld [vmem:[%s4022 + $0x60] sm:$0xff]
        %v4036 = vld [vmem:[%s4022 + $0x68] sm:$0xff]
        %v4037 = vld [vmem:[%s4022 + $0x70] sm:$0xff]
        %v4038 = vld [vmem:[%s4022 + $0x78] sm:$0xff]
        %v4039 = vld [vmem:[%s4022 + $0x80] sm:$0xff]
        %v4040 = vld [vmem:[%s4022 + $0x88] sm:$0xff]
        %v4041 = vld [vmem:[%s4022 + $0x90] sm:$0xff]
        %v4042 = vld [vmem:[%s4022 + $0x98] sm:$0xff]
        %v4043 = vld [vmem:[%s4022 + $0xa0] sm:$0xff]
        %v4044 = vld [vmem:[%s4022 + $0xa8] sm:$0xff]
        %v4045 = vld [vmem:[%s4022 + $0xb0] sm:$0xff]
        %v4046 = vld [vmem:[%s4022 + $0xb8] sm:$0xff]
        %v4047 = vld [vmem:[%s4022 + $0xc0] sm:$0xff]
        %v4048 = vld [vmem:[%s4022 + $0xc8] sm:$0xff]
        %v4049 = vld [vmem:[%s4022 + $0xd0] sm:$0xff]
        %v4050 = vld [vmem:[%s4022 + $0xd8] sm:$0xff]
        %v4051 = vld [vmem:[%s4022 + $0xe0] sm:$0xff]
        %v4052 = vld [vmem:[%s4022 + $0xe8] sm:$0xff]
        %v4053 = vld [vmem:[%s4022 + $0xf0] sm:$0xff]
        %v4054 = vld [vmem:[%s4022 + $0xf8] sm:$0xff]
        %v4055 = vrot.slane %v4023, 7
        %v4056 = vrot.slane %v4024, 7
        %v4057 = vrot.slane %v4025, 7
        %v4058 = vrot.slane %v4026, 7
        %v4059 = vrot.slane %v4027, 7
        %v4060 = vrot.slane %v4028, 7
        %v4061 = vrot.slane %v4029, 7
        %v4062 = vrot.slane %v4030, 7
        %v4063 = vrot.slane %v4031, 7
        %v4064 = vrot.slane %v4032, 7
        %v4065 = vrot.slane %v4033, 7
        %v4066 = vrot.slane %v4034, 7
        %v4067 = vrot.slane %v4035, 7
        %v4068 = vrot.slane %v4036, 7
        %v4069 = vrot.slane %v4037, 7
        %v4070 = vrot.slane %v4038, 7
        %v4071 = vrot.slane %v4039, 7
        %v4072 = vrot.slane %v4040, 7
        %v4073 = vrot.slane %v4041, 7
        %v4074 = vrot.slane %v4042, 7
        %v4075 = vrot.slane %v4043, 7
        %v4076 = vrot.slane %v4044, 7
        %v4077 = vrot.slane %v4045, 7
        %v4078 = vrot.slane %v4046, 7
        %v4079 = vrot.slane %v4047, 7
        %v4080 = vrot.slane %v4048, 7
        %v4081 = vrot.slane %v4049, 7
        %v4082 = vrot.slane %v4050, 7
        %v4083 = vrot.slane %v4051, 7
        %v4084 = vrot.slane %v4052, 7
        %v4085 = vrot.slane %v4053, 7
        %v4086 = vrot.slane %v4054, 7
        %v4087 = vsel %vm531, %v4085, %v4086
        %v4088 = vsel %vm531, %v4084, %v4085
        %v4089 = vsel %vm531, %v4083, %v4084
        %v4090 = vsel %vm531, %v4082, %v4083
        %v4091 = vsel %vm531, %v4081, %v4082
        %v4092 = vsel %vm531, %v4080, %v4081
        %v4093 = vsel %vm531, %v4079, %v4080
        %v4094 = vsel %vm531, %v4078, %v4079
        %v4095 = vsel %vm531, %v4077, %v4078
        %v4096 = vsel %vm531, %v4076, %v4077
        %v4097 = vsel %vm531, %v4075, %v4076
        %v4098 = vsel %vm531, %v4074, %v4075
        %v4099 = vsel %vm531, %v4073, %v4074
        %v4100 = vsel %vm531, %v4072, %v4073
        %v4101 = vsel %vm531, %v4071, %v4072
        %v4102 = vsel %vm531, %v4070, %v4071
        %v4103 = vsel %vm531, %v4069, %v4070
        %v4104 = vsel %vm531, %v4068, %v4069
        %v4105 = vsel %vm531, %v4067, %v4068
        %v4106 = vsel %vm531, %v4066, %v4067
        %v4107 = vsel %vm531, %v4065, %v4066
        %v4108 = vsel %vm531, %v4064, %v4065
        %v4109 = vsel %vm531, %v4063, %v4064
        %v4110 = vsel %vm531, %v4062, %v4063
        %v4111 = vsel %vm531, %v4061, %v4062
        %v4112 = vsel %vm531, %v4060, %v4061
        %v4113 = vsel %vm531, %v4059, %v4060
        %v4114 = vsel %vm531, %v4058, %v4059
        %v4115 = vsel %vm531, %v4057, %v4058
        %v4116 = vsel %vm531, %v4056, %v4057
        %v4117 = vsel %vm531, %v4055, %v4056
        %v4118 = vsel %vm531, %v4086, %v4055
        %v4119 = vsel %vm495, 0.0, %v4118
        %v4120 = vsel %vm496, 0.0, %v4117
        %v4121 = vsel %vm495, 0.0, %v4116
        %v4122 = vsel %vm496, 0.0, %v4115
        %v4123 = vsel %vm495, 0.0, %v4114
        %v4124 = vsel %vm496, 0.0, %v4113
        %v4125 = vsel %vm495, 0.0, %v4112
        %v4126 = vsel %vm496, 0.0, %v4111
        %v4127 = vsel %vm495, 0.0, %v4110
        %v4128 = vsel %vm496, 0.0, %v4109
        %v4129 = vsel %vm495, 0.0, %v4108
        %v4130 = vsel %vm496, 0.0, %v4107
        %v4131 = vsel %vm495, 0.0, %v4106
        %v4132 = vsel %vm496, 0.0, %v4105
        %v4133 = vsel %vm495, 0.0, %v4104
        %v4134 = vsel %vm496, 0.0, %v4103
        %v4135 = vsel %vm495, 0.0, %v4102
        %v4136 = vsel %vm496, 0.0, %v4101
        %v4137 = vsel %vm495, 0.0, %v4100
        %v4138 = vsel %vm496, 0.0, %v4099
        %v4139 = vsel %vm495, 0.0, %v4098
        %v4140 = vsel %vm496, 0.0, %v4097
        %v4141 = vsel %vm495, 0.0, %v4096
        %v4142 = vsel %vm496, 0.0, %v4095
        %v4143 = vsel %vm495, 0.0, %v4094
        %v4144 = vsel %vm496, 0.0, %v4093
        %v4145 = vsel %vm495, 0.0, %v4092
        %v4146 = vsel %vm496, 0.0, %v4091
        %v4147 = vsel %vm495, 0.0, %v4090
        %v4148 = vsel %vm496, 0.0, %v4089
        %v4149 = vsel %vm495, 0.0, %v4088
        %v4150 = vsel %vm496, 0.0, %v4087
        %v4151 = vrot.slane %v4023, 1
        %v4152 = vrot.slane %v4024, 1
        %v4153 = vrot.slane %v4025, 1
        %v4154 = vrot.slane %v4026, 1
        %v4155 = vrot.slane %v4027, 1
        %v4156 = vrot.slane %v4028, 1
        %v4157 = vrot.slane %v4029, 1
        %v4158 = vrot.slane %v4030, 1
        %v4159 = vrot.slane %v4031, 1
        %v4160 = vrot.slane %v4032, 1
        %v4161 = vrot.slane %v4033, 1
        %v4162 = vrot.slane %v4034, 1
        %v4163 = vrot.slane %v4035, 1
        %v4164 = vrot.slane %v4036, 1
        %v4165 = vrot.slane %v4037, 1
        %v4166 = vrot.slane %v4038, 1
        %v4167 = vrot.slane %v4039, 1
        %v4168 = vrot.slane %v4040, 1
        %v4169 = vrot.slane %v4041, 1
        %v4170 = vrot.slane %v4042, 1
        %v4171 = vrot.slane %v4043, 1
        %v4172 = vrot.slane %v4044, 1
        %v4173 = vrot.slane %v4045, 1
        %v4174 = vrot.slane %v4046, 1
        %v4175 = vrot.slane %v4047, 1
        %v4176 = vrot.slane %v4048, 1
        %v4177 = vrot.slane %v4049, 1
        %v4178 = vrot.slane %v4050, 1
        %v4179 = vrot.slane %v4051, 1
        %v4180 = vrot.slane %v4052, 1
        %v4181 = vrot.slane %v4053, 1
        %v4182 = vrot.slane %v4054, 1
        %v4183 = vsel %vm628, %v4181, %v4182
        %v4184 = vsel %vm628, %v4180, %v4181
        %v4185 = vsel %vm628, %v4179, %v4180
        %v4186 = vsel %vm628, %v4178, %v4179
        %v4187 = vsel %vm628, %v4177, %v4178
        %v4188 = vsel %vm628, %v4176, %v4177
        %v4189 = vsel %vm628, %v4175, %v4176
        %v4190 = vsel %vm628, %v4174, %v4175
        %v4191 = vsel %vm628, %v4173, %v4174
        %v4192 = vsel %vm628, %v4172, %v4173
        %v4193 = vsel %vm628, %v4171, %v4172
        %v4194 = vsel %vm628, %v4170, %v4171
        %v4195 = vsel %vm628, %v4169, %v4170
        %v4196 = vsel %vm628, %v4168, %v4169
        %v4197 = vsel %vm628, %v4167, %v4168
        %v4198 = vsel %vm628, %v4166, %v4167
        %v4199 = vsel %vm628, %v4165, %v4166
        %v4200 = vsel %vm628, %v4164, %v4165
        %v4201 = vsel %vm628, %v4163, %v4164
        %v4202 = vsel %vm628, %v4162, %v4163
        %v4203 = vsel %vm628, %v4161, %v4162
        %v4204 = vsel %vm628, %v4160, %v4161
        %v4205 = vsel %vm628, %v4159, %v4160
        %v4206 = vsel %vm628, %v4158, %v4159
        %v4207 = vsel %vm628, %v4157, %v4158
        %v4208 = vsel %vm628, %v4156, %v4157
        %v4209 = vsel %vm628, %v4155, %v4156
        %v4210 = vsel %vm628, %v4154, %v4155
        %v4211 = vsel %vm628, %v4153, %v4154
        %v4212 = vsel %vm628, %v4152, %v4153
        %v4213 = vsel %vm628, %v4151, %v4152
        %v4214 = vsel %vm628, %v4182, %v4151
        %v4215 = vsel %vm497, 0.0, %v4213
        %v4216 = vsel %vm498, 0.0, %v4212
        %v4217 = vsel %vm497, 0.0, %v4211
        %v4218 = vsel %vm498, 0.0, %v4210
        %v4219 = vsel %vm497, 0.0, %v4209
        %v4220 = vsel %vm498, 0.0, %v4208
        %v4221 = vsel %vm497, 0.0, %v4207
        %v4222 = vsel %vm498, 0.0, %v4206
        %v4223 = vsel %vm497, 0.0, %v4205
        %v4224 = vsel %vm498, 0.0, %v4204
        %v4225 = vsel %vm497, 0.0, %v4203
        %v4226 = vsel %vm498, 0.0, %v4202
        %v4227 = vsel %vm497, 0.0, %v4201
        %v4228 = vsel %vm498, 0.0, %v4200
        %v4229 = vsel %vm497, 0.0, %v4199
        %v4230 = vsel %vm498, 0.0, %v4198
        %v4231 = vsel %vm497, 0.0, %v4197
        %v4232 = vsel %vm498, 0.0, %v4196
        %v4233 = vsel %vm497, 0.0, %v4195
        %v4234 = vsel %vm498, 0.0, %v4194
        %v4235 = vsel %vm497, 0.0, %v4193
        %v4236 = vsel %vm498, 0.0, %v4192
        %v4237 = vsel %vm497, 0.0, %v4191
        %v4238 = vsel %vm498, 0.0, %v4190
        %v4239 = vsel %vm497, 0.0, %v4189
        %v4240 = vsel %vm498, 0.0, %v4188
        %v4241 = vsel %vm497, 0.0, %v4187
        %v4242 = vsel %vm498, 0.0, %v4186
        %v4243 = vsel %vm497, 0.0, %v4185
        %v4244 = vsel %vm498, 0.0, %v4184
        %v4245 = vsel %vm497, 0.0, %v4183
        %v4246 = vsel %vm498, 0.0, %v4214
        %v4247 = vpack.c.bf16 %v4120, %v4119
        %v4248 = vpack.c.bf16 %v4122, %v4121
        %v4249 = vpack.c.bf16 %v4124, %v4123
        %v4250 = vpack.c.bf16 %v4126, %v4125
        %v4251 = vpack.c.bf16 %v4128, %v4127
        %v4252 = vpack.c.bf16 %v4130, %v4129
        %v4253 = vpack.c.bf16 %v4132, %v4131
        %v4254 = vpack.c.bf16 %v4134, %v4133
        %v4255 = vpack.c.bf16 %v4136, %v4135
        %v4256 = vpack.c.bf16 %v4138, %v4137
        %v4257 = vpack.c.bf16 %v4140, %v4139
        %v4258 = vpack.c.bf16 %v4142, %v4141
        %v4259 = vpack.c.bf16 %v4144, %v4143
        %v4260 = vpack.c.bf16 %v4146, %v4145
        %v4261 = vpack.c.bf16 %v4148, %v4147
        %v4262 = vpack.c.bf16 %v4150, %v4149
        %s4263 = scalar_lea.vmem %s10, 72
        %v4264 = vld [vmem:[%s4263] sm:$0xf]
        %v4265 = vld [vmem:[%s4263 + $0x4] sm:$0xf]
        %v4266 = vld [vmem:[%s4263 + $0x8] sm:$0xf]
        %v4270 = vunpack.c.l.b16 %v4264
        %v4271 = vunpack.c.l.b16 %v4265
        %v4272 = vunpack.c.l.b16 %v4266
        %v4273 = vpack.c.b16 %v4271, %v4270
        %v4274 = vpack.c.b16 %v4272, %v4272
        %v4277 = vsel %vm1961, %v4247, 0
        %v4280 = vsel %vm1961, %v4248, 0
        %v4283 = vsel %vm1961, %v4249, 0
        %v4286 = vsel %vm1961, %v4250, 0
        %v4289 = vsel %vm1961, %v4251, 0
        %v4292 = vsel %vm1961, %v4252, 0
        %v4295 = vsel %vm1961, %v4253, 0
        %v4298 = vsel %vm1961, %v4254, 0
        %v4301 = vsel %vm1961, %v4255, 0
        %v4304 = vsel %vm1961, %v4256, 0
        %v4307 = vsel %vm1961, %v4257, 0
        %v4310 = vsel %vm1961, %v4258, 0
        %v4313 = vsel %vm1961, %v4259, 0
        %v4316 = vsel %vm1961, %v4260, 0
        %v4319 = vsel %vm1961, %v4261, 0
        %v4322 = vsel %vm1961, %v4262, 0
        %v4325 = vsel %vm2320, %v4274, 0
        %4327 = vmatprep.subr.bf16.mxu0 0
        %4328 = vmatpush1.bf16.msra.mxu0 %v4273
        %4329 = vmatprep.subr.bf16.mxu0 0
        %4330 = vmatpush1.bf16.msra.mxu0 %v4325
        %4331 = vmatprep.subr.bf16.mxu0 0
        %4332 = vmatpush1.bf16.msra.mxu0 0
        %4333 = vmatprep.subr.bf16.mxu0 0
        %4334 = vmatpush1.bf16.msra.mxu0 0
        %4335 = vmatprep.subr.bf16.mxu0 0
        %4336 = vmatpush1.bf16.msra.mxu0 0
        %4337 = vmatprep.subr.bf16.mxu0 0
        %4338 = vmatpush1.bf16.msra.mxu0 0
        %4339 = vmatprep.subr.bf16.mxu0 0
        %4340 = vmatpush1.bf16.msra.mxu0 0
        %4341 = vmatprep.subr.bf16.mxu0 0
        %4342 = vmatpush1.bf16.msra.mxu0 0
        %4343 = vmatprep.subr.bf16.mxu0 0
        %4344 = vmatpush1.bf16.msra.mxu0 0
        %4345 = vmatprep.subr.bf16.mxu0 0
        %4346 = vmatpush1.bf16.msra.mxu0 0
        %4347 = vmatprep.subr.bf16.mxu0 0
        %4348 = vmatpush1.bf16.msra.mxu0 0
        %4349 = vmatprep.subr.bf16.mxu0 0
        %4350 = vmatpush1.bf16.msra.mxu0 0
        %4351 = vmatprep.subr.bf16.mxu0 0
        %4352 = vmatpush1.bf16.msra.mxu0 0
        %4353 = vmatprep.subr.bf16.mxu0 0
        %4354 = vmatpush1.bf16.msra.mxu0 0
        %4355 = vmatprep.subr.bf16.mxu0 0
        %4356 = vmatpush1.bf16.msra.mxu0 0
        %4357 = vmatprep.subr.bf16.mxu0 0
        %4358 = vmatpush1.bf16.msra.mxu0 0
        %4359 = vmatprep.mubr.bf16.mxu0 0
        %4360 = vmatmul.mubr.bf16.gmra.mrb[0].mxu0 %v4277
        %v4361 = vpop.f32.mrb[0].mxu0
        %v4362 = vadd.f32 0.0, %v4361
        %v4363 = vpop.f32.mrb[0].mxu0
        %v4364 = vpop.f32.mrb[0].mxu0
        %v4365 = vadd.f32 0.0, %v4364
        %v4366 = vpop.f32.mrb[0].mxu0
        %4367 = vmatprep.mubr.bf16.mxu0 0
        %4368 = vmatmul.mubr.bf16.gmra.mrb[0].mxu0 %v4280
        %v4369 = vpop.f32.mrb[0].mxu0
        %v4370 = vadd.f32 0.0, %v4369
        %v4371 = vpop.f32.mrb[0].mxu0
        %v4372 = vpop.f32.mrb[0].mxu0
        %v4373 = vadd.f32 0.0, %v4372
        %v4374 = vpop.f32.mrb[0].mxu0
        %4375 = vmatprep.mubr.bf16.mxu0 0
        %4376 = vmatmul.mubr.bf16.gmra.mrb[0].mxu0 %v4283
        %v4377 = vpop.f32.mrb[0].mxu0
        %v4378 = vadd.f32 0.0, %v4377
        %v4379 = vpop.f32.mrb[0].mxu0
        %v4380 = vpop.f32.mrb[0].mxu0
        %v4381 = vadd.f32 0.0, %v4380
        %v4382 = vpop.f32.mrb[0].mxu0
        %4383 = vmatprep.mubr.bf16.mxu0 0
        %4384 = vmatmul.mubr.bf16.gmra.mrb[0].mxu0 %v4286
        %v4385 = vpop.f32.mrb[0].mxu0
        %v4386 = vadd.f32 0.0, %v4385
        %v4387 = vpop.f32.mrb[0].mxu0
        %v4388 = vpop.f32.mrb[0].mxu0
        %v4389 = vadd.f32 0.0, %v4388
        %v4390 = vpop.f32.mrb[0].mxu0
        %4391 = vmatprep.mubr.bf16.mxu0 0
        %4392 = vmatmul.mubr.bf16.gmra.mrb[0].mxu0 %v4289
        %v4393 = vpop.f32.mrb[0].mxu0
        %v4394 = vadd.f32 0.0, %v4393
        %v4395 = vpop.f32.mrb[0].mxu0
        %v4396 = vpop.f32.mrb[0].mxu0
        %v4397 = vadd.f32 0.0, %v4396
        %v4398 = vpop.f32.mrb[0].mxu0
        %4399 = vmatprep.mubr.bf16.mxu0 0
        %4400 = vmatmul.mubr.bf16.gmra.mrb[0].mxu0 %v4292
        %v4401 = vpop.f32.mrb[0].mxu0
        %v4402 = vadd.f32 0.0, %v4401
        %v4403 = vpop.f32.mrb[0].mxu0
        %v4404 = vpop.f32.mrb[0].mxu0
        %v4405 = vadd.f32 0.0, %v4404
        %v4406 = vpop.f32.mrb[0].mxu0
        %4407 = vmatprep.mubr.bf16.mxu0 0
        %4408 = vmatmul.mubr.bf16.gmra.mrb[0].mxu0 %v4295
        %v4409 = vpop.f32.mrb[0].mxu0
        %v4410 = vadd.f32 0.0, %v4409
        %v4411 = vpop.f32.mrb[0].mxu0
        %v4412 = vpop.f32.mrb[0].mxu0
        %v4413 = vadd.f32 0.0, %v4412
        %v4414 = vpop.f32.mrb[0].mxu0
        %4415 = vmatprep.mubr.bf16.mxu0 0
        %4416 = vmatmul.mubr.bf16.gmra.mrb[0].mxu0 %v4298
        %v4417 = vpop.f32.mrb[0].mxu0
        %v4418 = vadd.f32 0.0, %v4417
        %v4419 = vpop.f32.mrb[0].mxu0
        %v4420 = vpop.f32.mrb[0].mxu0
        %v4421 = vadd.f32 0.0, %v4420
        %v4422 = vpop.f32.mrb[0].mxu0
        %4423 = vmatprep.mubr.bf16.mxu0 0
        %4424 = vmatmul.mubr.bf16.gmra.mrb[0].mxu0 %v4301
        %v4425 = vpop.f32.mrb[0].mxu0
        %v4426 = vadd.f32 0.0, %v4425
        %v4427 = vpop.f32.mrb[0].mxu0
        %v4428 = vpop.f32.mrb[0].mxu0
        %v4429 = vadd.f32 0.0, %v4428
        %v4430 = vpop.f32.mrb[0].mxu0
        %4431 = vmatprep.mubr.bf16.mxu0 0
        %4432 = vmatmul.mubr.bf16.gmra.mrb[0].mxu0 %v4304
        %v4433 = vpop.f32.mrb[0].mxu0
        %v4434 = vadd.f32 0.0, %v4433
        %v4435 = vpop.f32.mrb[0].mxu0
        %v4436 = vpop.f32.mrb[0].mxu0
        %v4437 = vadd.f32 0.0, %v4436
        %v4438 = vpop.f32.mrb[0].mxu0
        %4439 = vmatprep.mubr.bf16.mxu0 0
        %4440 = vmatmul.mubr.bf16.gmra.mrb[0].mxu0 %v4307
        %v4441 = vpop.f32.mrb[0].mxu0
        %v4442 = vadd.f32 0.0, %v4441
        %v4443 = vpop.f32.mrb[0].mxu0
        %v4444 = vpop.f32.mrb[0].mxu0
        %v4445 = vadd.f32 0.0, %v4444
        %v4446 = vpop.f32.mrb[0].mxu0
        %4447 = vmatprep.mubr.bf16.mxu0 0
        %4448 = vmatmul.mubr.bf16.gmra.mrb[0].mxu0 %v4310
        %v4449 = vpop.f32.mrb[0].mxu0
        %v4450 = vadd.f32 0.0, %v4449
        %v4451 = vpop.f32.mrb[0].mxu0
        %v4452 = vpop.f32.mrb[0].mxu0
        %v4453 = vadd.f32 0.0, %v4452
        %v4454 = vpop.f32.mrb[0].mxu0
        %4455 = vmatprep.mubr.bf16.mxu0 0
        %4456 = vmatmul.mubr.bf16.gmra.mrb[0].mxu0 %v4313
        %v4457 = vpop.f32.mrb[0].mxu0
        %v4458 = vadd.f32 0.0, %v4457
        %v4459 = vpop.f32.mrb[0].mxu0
        %v4460 = vpop.f32.mrb[0].mxu0
        %v4461 = vadd.f32 0.0, %v4460
        %v4462 = vpop.f32.mrb[0].mxu0
        %4463 = vmatprep.mubr.bf16.mxu0 0
        %4464 = vmatmul.mubr.bf16.gmra.mrb[0].mxu0 %v4316
        %v4465 = vpop.f32.mrb[0].mxu0
        %v4466 = vadd.f32 0.0, %v4465
        %v4467 = vpop.f32.mrb[0].mxu0
        %v4468 = vpop.f32.mrb[0].mxu0
        %v4469 = vadd.f32 0.0, %v4468
        %v4470 = vpop.f32.mrb[0].mxu0
        %4471 = vmatprep.mubr.bf16.mxu0 0
        %4472 = vmatmul.mubr.bf16.gmra.mrb[0].mxu0 %v4319
        %v4473 = vpop.f32.mrb[0].mxu0
        %v4474 = vadd.f32 0.0, %v4473
        %v4475 = vpop.f32.mrb[0].mxu0
        %v4476 = vpop.f32.mrb[0].mxu0
        %v4477 = vadd.f32 0.0, %v4476
        %v4478 = vpop.f32.mrb[0].mxu0
        %4479 = vmatprep.mubr.bf16.mxu0 0
        %4480 = vmatmul.mubr.bf16.gmra.mrb[0].mxu0 %v4322
        %v4481 = vpop.f32.mrb[0].mxu0
        %v4482 = vadd.f32 0.0, %v4481
        %v4483 = vpop.f32.mrb[0].mxu0
        %v4484 = vpop.f32.mrb[0].mxu0
        %v4485 = vadd.f32 0.0, %v4484
        %v4486 = vpop.f32.mrb[0].mxu0
        %4487 = vdwg.mxu0
        %v4488 = vadd.f32 %v3990, %v4362
        %v4489 = vadd.f32 %v3991, %v4365
        %v4490 = vadd.f32 %v3992, %v4370
        %v4491 = vadd.f32 %v3993, %v4373
        %v4492 = vadd.f32 %v3994, %v4378
        %v4493 = vadd.f32 %v3995, %v4381
        %v4494 = vadd.f32 %v3996, %v4386
        %v4495 = vadd.f32 %v3997, %v4389
        %v4496 = vadd.f32 %v3998, %v4394
        %v4497 = vadd.f32 %v3999, %v4397
        %v4498 = vadd.f32 %v4000, %v4402
        %v4499 = vadd.f32 %v4001, %v4405
        %v4500 = vadd.f32 %v4002, %v4410
        %v4501 = vadd.f32 %v4003, %v4413
        %v4502 = vadd.f32 %v4004, %v4418
        %v4503 = vadd.f32 %v4005, %v4421
        %v4504 = vadd.f32 %v4006, %v4426
        %v4505 = vadd.f32 %v4007, %v4429
        %v4506 = vadd.f32 %v4008, %v4434
        %v4507 = vadd.f32 %v4009, %v4437
        %v4508 = vadd.f32 %v4010, %v4442
        %v4509 = vadd.f32 %v4011, %v4445
        %v4510 = vadd.f32 %v4012, %v4450
        %v4511 = vadd.f32 %v4013, %v4453
        %v4512 = vadd.f32 %v4014, %v4458
        %v4513 = vadd.f32 %v4015, %v4461
        %v4514 = vadd.f32 %v4016, %v4466
        %v4515 = vadd.f32 %v4017, %v4469
        %v4516 = vadd.f32 %v4018, %v4474
        %v4517 = vadd.f32 %v4019, %v4477
        %v4518 = vadd.f32 %v4020, %v4482
        %v4519 = vadd.f32 %v4021, %v4485
        %v4520 = vpack.c.bf16 %v4024, %v4023
        %v4521 = vpack.c.bf16 %v4026, %v4025
        %v4522 = vpack.c.bf16 %v4028, %v4027
        %v4523 = vpack.c.bf16 %v4030, %v4029
        %v4524 = vpack.c.bf16 %v4032, %v4031
        %v4525 = vpack.c.bf16 %v4034, %v4033
        %v4526 = vpack.c.bf16 %v4036, %v4035
        %v4527 = vpack.c.bf16 %v4038, %v4037
        %v4528 = vpack.c.bf16 %v4040, %v4039
        %v4529 = vpack.c.bf16 %v4042, %v4041
        %v4530 = vpack.c.bf16 %v4044, %v4043
        %v4531 = vpack.c.bf16 %v4046, %v4045
        %v4532 = vpack.c.bf16 %v4048, %v4047
        %v4533 = vpack.c.bf16 %v4050, %v4049
        %v4534 = vpack.c.bf16 %v4052, %v4051
        %v4535 = vpack.c.bf16 %v4054, %v4053
        %s4536 = scalar_lea.vmem %s10, 84
        %v4537 = vld [vmem:[%s4536] sm:$0xf]
        %v4538 = vld [vmem:[%s4536 + $0x4] sm:$0xf]
        %v4539 = vld [vmem:[%s4536 + $0x8] sm:$0xf]
        %v4543 = vunpack.c.l.b16 %v4537
        %v4544 = vunpack.c.l.b16 %v4538
        %v4545 = vunpack.c.l.b16 %v4539
        %v4546 = vpack.c.b16 %v4544, %v4543
        %v4547 = vpack.c.b16 %v4545, %v4545
        %v4550 = vsel %vm1961, %v4520, 0
        %v4553 = vsel %vm1961, %v4521, 0
        %v4556 = vsel %vm1961, %v4522, 0
        %v4559 = vsel %vm1961, %v4523, 0
        %v4562 = vsel %vm1961, %v4524, 0
        %v4565 = vsel %vm1961, %v4525, 0
        %v4568 = vsel %vm1961, %v4526, 0
        %v4571 = vsel %vm1961, %v4527, 0
        %v4574 = vsel %vm1961, %v4528, 0
        %v4577 = vsel %vm1961, %v4529, 0
        %v4580 = vsel %vm1961, %v4530, 0
        %v4583 = vsel %vm1961, %v4531, 0
        %v4586 = vsel %vm1961, %v4532, 0
        %v4589 = vsel %vm1961, %v4533, 0
        %v4592 = vsel %vm1961, %v4534, 0
        %v4595 = vsel %vm1961, %v4535, 0
        %v4598 = vsel %vm2320, %v4547, 0
        %4600 = vmatprep.subr.bf16.mxu0 0
        %4601 = vmatpush1.bf16.msra.mxu0 %v4546
        %4602 = vmatprep.subr.bf16.mxu0 0
        %4603 = vmatpush1.bf16.msra.mxu0 %v4598
        %4604 = vmatprep.subr.bf16.mxu0 0
        %4605 = vmatpush1.bf16.msra.mxu0 0
        %4606 = vmatprep.subr.bf16.mxu0 0
        %4607 = vmatpush1.bf16.msra.mxu0 0
        %4608 = vmatprep.subr.bf16.mxu0 0
        %4609 = vmatpush1.bf16.msra.mxu0 0
        %4610 = vmatprep.subr.bf16.mxu0 0
        %4611 = vmatpush1.bf16.msra.mxu0 0
        %4612 = vmatprep.subr.bf16.mxu0 0
        %4613 = vmatpush1.bf16.msra.mxu0 0
        %4614 = vmatprep.subr.bf16.mxu0 0
        %4615 = vmatpush1.bf16.msra.mxu0 0
        %4616 = vmatprep.subr.bf16.mxu0 0
        %4617 = vmatpush1.bf16.msra.mxu0 0
        %4618 = vmatprep.subr.bf16.mxu0 0
        %4619 = vmatpush1.bf16.msra.mxu0 0
        %4620 = vmatprep.subr.bf16.mxu0 0
        %4621 = vmatpush1.bf16.msra.mxu0 0
        %4622 = vmatprep.subr.bf16.mxu0 0
        %4623 = vmatpush1.bf16.msra.mxu0 0
        %4624 = vmatprep.subr.bf16.mxu0 0
        %4625 = vmatpush1.bf16.msra.mxu0 0
        %4626 = vmatprep.subr.bf16.mxu0 0
        %4627 = vmatpush1.bf16.msra.mxu0 0
        %4628 = vmatprep.subr.bf16.mxu0 0
        %4629 = vmatpush1.bf16.msra.mxu0 0
        %4630 = vmatprep.subr.bf16.mxu0 0
        %4631 = vmatpush1.bf16.msra.mxu0 0
        %4632 = vmatprep.mubr.bf16.mxu0 0
        %4633 = vmatmul.mubr.bf16.gmra.mrb[0].mxu0 %v4550
        %v4634 = vpop.f32.mrb[0].mxu0
        %v4635 = vadd.f32 0.0, %v4634
        %v4636 = vpop.f32.mrb[0].mxu0
        %v4637 = vpop.f32.mrb[0].mxu0
        %v4638 = vadd.f32 0.0, %v4637
        %v4639 = vpop.f32.mrb[0].mxu0
        %4640 = vmatprep.mubr.bf16.mxu0 0
        %4641 = vmatmul.mubr.bf16.gmra.mrb[0].mxu0 %v4553
        %v4642 = vpop.f32.mrb[0].mxu0
        %v4643 = vadd.f32 0.0, %v4642
        %v4644 = vpop.f32.mrb[0].mxu0
        %v4645 = vpop.f32.mrb[0].mxu0
        %v4646 = vadd.f32 0.0, %v4645
        %v4647 = vpop.f32.mrb[0].mxu0
        %4648 = vmatprep.mubr.bf16.mxu0 0
        %4649 = vmatmul.mubr.bf16.gmra.mrb[0].mxu0 %v4556
        %v4650 = vpop.f32.mrb[0].mxu0
        %v4651 = vadd.f32 0.0, %v4650
        %v4652 = vpop.f32.mrb[0].mxu0
        %v4653 = vpop.f32.mrb[0].mxu0
        %v4654 = vadd.f32 0.0, %v4653
        %v4655 = vpop.f32.mrb[0].mxu0
        %4656 = vmatprep.mubr.bf16.mxu0 0
        %4657 = vmatmul.mubr.bf16.gmra.mrb[0].mxu0 %v4559
        %v4658 = vpop.f32.mrb[0].mxu0
        %v4659 = vadd.f32 0.0, %v4658
        %v4660 = vpop.f32.mrb[0].mxu0
        %v4661 = vpop.f32.mrb[0].mxu0
        %v4662 = vadd.f32 0.0, %v4661
        %v4663 = vpop.f32.mrb[0].mxu0
        %4664 = vmatprep.mubr.bf16.mxu0 0
        %4665 = vmatmul.mubr.bf16.gmra.mrb[0].mxu0 %v4562
        %v4666 = vpop.f32.mrb[0].mxu0
        %v4667 = vadd.f32 0.0, %v4666
        %v4668 = vpop.f32.mrb[0].mxu0
        %v4669 = vpop.f32.mrb[0].mxu0
        %v4670 = vadd.f32 0.0, %v4669
        %v4671 = vpop.f32.mrb[0].mxu0
        %4672 = vmatprep.mubr.bf16.mxu0 0
        %4673 = vmatmul.mubr.bf16.gmra.mrb[0].mxu0 %v4565
        %v4674 = vpop.f32.mrb[0].mxu0
        %v4675 = vadd.f32 0.0, %v4674
        %v4676 = vpop.f32.mrb[0].mxu0
        %v4677 = vpop.f32.mrb[0].mxu0
        %v4678 = vadd.f32 0.0, %v4677
        %v4679 = vpop.f32.mrb[0].mxu0
        %4680 = vmatprep.mubr.bf16.mxu0 0
        %4681 = vmatmul.mubr.bf16.gmra.mrb[0].mxu0 %v4568
        %v4682 = vpop.f32.mrb[0].mxu0
        %v4683 = vadd.f32 0.0, %v4682
        %v4684 = vpop.f32.mrb[0].mxu0
        %v4685 = vpop.f32.mrb[0].mxu0
        %v4686 = vadd.f32 0.0, %v4685
        %v4687 = vpop.f32.mrb[0].mxu0
        %4688 = vmatprep.mubr.bf16.mxu0 0
        %4689 = vmatmul.mubr.bf16.gmra.mrb[0].mxu0 %v4571
        %v4690 = vpop.f32.mrb[0].mxu0
        %v4691 = vadd.f32 0.0, %v4690
        %v4692 = vpop.f32.mrb[0].mxu0
        %v4693 = vpop.f32.mrb[0].mxu0
        %v4694 = vadd.f32 0.0, %v4693
        %v4695 = vpop.f32.mrb[0].mxu0
        %4696 = vmatprep.mubr.bf16.mxu0 0
        %4697 = vmatmul.mubr.bf16.gmra.mrb[0].mxu0 %v4574
        %v4698 = vpop.f32.mrb[0].mxu0
        %v4699 = vadd.f32 0.0, %v4698
        %v4700 = vpop.f32.mrb[0].mxu0
        %v4701 = vpop.f32.mrb[0].mxu0
        %v4702 = vadd.f32 0.0, %v4701
        %v4703 = vpop.f32.mrb[0].mxu0
        %4704 = vmatprep.mubr.bf16.mxu0 0
        %4705 = vmatmul.mubr.bf16.gmra.mrb[0].mxu0 %v4577
        %v4706 = vpop.f32.mrb[0].mxu0
        %v4707 = vadd.f32 0.0, %v4706
        %v4708 = vpop.f32.mrb[0].mxu0
        %v4709 = vpop.f32.mrb[0].mxu0
        %v4710 = vadd.f32 0.0, %v4709
        %v4711 = vpop.f32.mrb[0].mxu0
        %4712 = vmatprep.mubr.bf16.mxu0 0
        %4713 = vmatmul.mubr.bf16.gmra.mrb[0].mxu0 %v4580
        %v4714 = vpop.f32.mrb[0].mxu0
        %v4715 = vadd.f32 0.0, %v4714
        %v4716 = vpop.f32.mrb[0].mxu0
        %v4717 = vpop.f32.mrb[0].mxu0
        %v4718 = vadd.f32 0.0, %v4717
        %v4719 = vpop.f32.mrb[0].mxu0
        %4720 = vmatprep.mubr.bf16.mxu0 0
        %4721 = vmatmul.mubr.bf16.gmra.mrb[0].mxu0 %v4583
        %v4722 = vpop.f32.mrb[0].mxu0
        %v4723 = vadd.f32 0.0, %v4722
        %v4724 = vpop.f32.mrb[0].mxu0
        %v4725 = vpop.f32.mrb[0].mxu0
        %v4726 = vadd.f32 0.0, %v4725
        %v4727 = vpop.f32.mrb[0].mxu0
        %4728 = vmatprep.mubr.bf16.mxu0 0
        %4729 = vmatmul.mubr.bf16.gmra.mrb[0].mxu0 %v4586
        %v4730 = vpop.f32.mrb[0].mxu0
        %v4731 = vadd.f32 0.0, %v4730
        %v4732 = vpop.f32.mrb[0].mxu0
        %v4733 = vpop.f32.mrb[0].mxu0
        %v4734 = vadd.f32 0.0, %v4733
        %v4735 = vpop.f32.mrb[0].mxu0
        %4736 = vmatprep.mubr.bf16.mxu0 0
        %4737 = vmatmul.mubr.bf16.gmra.mrb[0].mxu0 %v4589
        %v4738 = vpop.f32.mrb[0].mxu0
        %v4739 = vadd.f32 0.0, %v4738
        %v4740 = vpop.f32.mrb[0].mxu0
        %v4741 = vpop.f32.mrb[0].mxu0
        %v4742 = vadd.f32 0.0, %v4741
        %v4743 = vpop.f32.mrb[0].mxu0
        %4744 = vmatprep.mubr.bf16.mxu0 0
        %4745 = vmatmul.mubr.bf16.gmra.mrb[0].mxu0 %v4592
        %v4746 = vpop.f32.mrb[0].mxu0
        %v4747 = vadd.f32 0.0, %v4746
        %v4748 = vpop.f32.mrb[0].mxu0
        %v4749 = vpop.f32.mrb[0].mxu0
        %v4750 = vadd.f32 0.0, %v4749
        %v4751 = vpop.f32.mrb[0].mxu0
        %4752 = vmatprep.mubr.bf16.mxu0 0
        %4753 = vmatmul.mubr.bf16.gmra.mrb[0].mxu0 %v4595
        %v4754 = vpop.f32.mrb[0].mxu0
        %v4755 = vadd.f32 0.0, %v4754
        %v4756 = vpop.f32.mrb[0].mxu0
        %v4757 = vpop.f32.mrb[0].mxu0
        %v4758 = vadd.f32 0.0, %v4757
        %v4759 = vpop.f32.mrb[0].mxu0
        %4760 = vdwg.mxu0
        %v4761 = vadd.f32 %v4488, %v4635
        %v4762 = vadd.f32 %v4489, %v4638
        %v4763 = vadd.f32 %v4490, %v4643
        %v4764 = vadd.f32 %v4491, %v4646
        %v4765 = vadd.f32 %v4492, %v4651
        %v4766 = vadd.f32 %v4493, %v4654
        %v4767 = vadd.f32 %v4494, %v4659
        %v4768 = vadd.f32 %v4495, %v4662
        %v4769 = vadd.f32 %v4496, %v4667
        %v4770 = vadd.f32 %v4497, %v4670
        %v4771 = vadd.f32 %v4498, %v4675
        %v4772 = vadd.f32 %v4499, %v4678
        %v4773 = vadd.f32 %v4500, %v4683
        %v4774 = vadd.f32 %v4501, %v4686
        %v4775 = vadd.f32 %v4502, %v4691
        %v4776 = vadd.f32 %v4503, %v4694
        %v4777 = vadd.f32 %v4504, %v4699
        %v4778 = vadd.f32 %v4505, %v4702
        %v4779 = vadd.f32 %v4506, %v4707
        %v4780 = vadd.f32 %v4507, %v4710
        %v4781 = vadd.f32 %v4508, %v4715
        %v4782 = vadd.f32 %v4509, %v4718
        %v4783 = vadd.f32 %v4510, %v4723
        %v4784 = vadd.f32 %v4511, %v4726
        %v4785 = vadd.f32 %v4512, %v4731
        %v4786 = vadd.f32 %v4513, %v4734
        %v4787 = vadd.f32 %v4514, %v4739
        %v4788 = vadd.f32 %v4515, %v4742
        %v4789 = vadd.f32 %v4516, %v4747
        %v4790 = vadd.f32 %v4517, %v4750
        %v4791 = vadd.f32 %v4518, %v4755
        %v4792 = vadd.f32 %v4519, %v4758
        %v4793 = vpack.c.bf16 %v4216, %v4215
        %v4794 = vpack.c.bf16 %v4218, %v4217
        %v4795 = vpack.c.bf16 %v4220, %v4219
        %v4796 = vpack.c.bf16 %v4222, %v4221
        %v4797 = vpack.c.bf16 %v4224, %v4223
        %v4798 = vpack.c.bf16 %v4226, %v4225
        %v4799 = vpack.c.bf16 %v4228, %v4227
        %v4800 = vpack.c.bf16 %v4230, %v4229
        %v4801 = vpack.c.bf16 %v4232, %v4231
        %v4802 = vpack.c.bf16 %v4234, %v4233
        %v4803 = vpack.c.bf16 %v4236, %v4235
        %v4804 = vpack.c.bf16 %v4238, %v4237
        %v4805 = vpack.c.bf16 %v4240, %v4239
        %v4806 = vpack.c.bf16 %v4242, %v4241
        %v4807 = vpack.c.bf16 %v4244, %v4243
        %v4808 = vpack.c.bf16 %v4246, %v4245
        %s4809 = scalar_lea.vmem %s10, 96
        %v4810 = vld [vmem:[%s4809] sm:$0xf]
        %v4811 = vld [vmem:[%s4809 + $0x4] sm:$0xf]
        %v4812 = vld [vmem:[%s4809 + $0x8] sm:$0xf]
        %v4816 = vunpack.c.l.b16 %v4810
        %v4817 = vunpack.c.l.b16 %v4811
        %v4818 = vunpack.c.l.b16 %v4812
        %v4819 = vpack.c.b16 %v4817, %v4816
        %v4820 = vpack.c.b16 %v4818, %v4818
        %v4823 = vsel %vm1961, %v4793, 0
        %v4826 = vsel %vm1961, %v4794, 0
        %v4829 = vsel %vm1961, %v4795, 0
        %v4832 = vsel %vm1961, %v4796, 0
        %v4835 = vsel %vm1961, %v4797, 0
        %v4838 = vsel %vm1961, %v4798, 0
        %v4841 = vsel %vm1961, %v4799, 0
        %v4844 = vsel %vm1961, %v4800, 0
        %v4847 = vsel %vm1961, %v4801, 0
        %v4850 = vsel %vm1961, %v4802, 0
        %v4853 = vsel %vm1961, %v4803, 0
        %v4856 = vsel %vm1961, %v4804, 0
        %v4859 = vsel %vm1961, %v4805, 0
        %v4862 = vsel %vm1961, %v4806, 0
        %v4865 = vsel %vm1961, %v4807, 0
        %v4868 = vsel %vm1961, %v4808, 0
        %v4871 = vsel %vm2320, %v4820, 0
        %4873 = vmatprep.subr.bf16.mxu0 0
        %4874 = vmatpush1.bf16.msra.mxu0 %v4819
        %4875 = vmatprep.subr.bf16.mxu0 0
        %4876 = vmatpush1.bf16.msra.mxu0 %v4871
        %4877 = vmatprep.subr.bf16.mxu0 0
        %4878 = vmatpush1.bf16.msra.mxu0 0
        %4879 = vmatprep.subr.bf16.mxu0 0
        %4880 = vmatpush1.bf16.msra.mxu0 0
        %4881 = vmatprep.subr.bf16.mxu0 0
        %4882 = vmatpush1.bf16.msra.mxu0 0
        %4883 = vmatprep.subr.bf16.mxu0 0
        %4884 = vmatpush1.bf16.msra.mxu0 0
        %4885 = vmatprep.subr.bf16.mxu0 0
        %4886 = vmatpush1.bf16.msra.mxu0 0
        %4887 = vmatprep.subr.bf16.mxu0 0
        %4888 = vmatpush1.bf16.msra.mxu0 0
        %4889 = vmatprep.subr.bf16.mxu0 0
        %4890 = vmatpush1.bf16.msra.mxu0 0
        %4891 = vmatprep.subr.bf16.mxu0 0
        %4892 = vmatpush1.bf16.msra.mxu0 0
        %4893 = vmatprep.subr.bf16.mxu0 0
        %4894 = vmatpush1.bf16.msra.mxu0 0
        %4895 = vmatprep.subr.bf16.mxu0 0
        %4896 = vmatpush1.bf16.msra.mxu0 0
        %4897 = vmatprep.subr.bf16.mxu0 0
        %4898 = vmatpush1.bf16.msra.mxu0 0
        %4899 = vmatprep.subr.bf16.mxu0 0
        %4900 = vmatpush1.bf16.msra.mxu0 0
        %4901 = vmatprep.subr.bf16.mxu0 0
        %4902 = vmatpush1.bf16.msra.mxu0 0
        %4903 = vmatprep.subr.bf16.mxu0 0
        %4904 = vmatpush1.bf16.msra.mxu0 0
        %4905 = vmatprep.mubr.bf16.mxu0 0
        %4906 = vmatmul.mubr.bf16.gmra.mrb[0].mxu0 %v4823
        %v4907 = vpop.f32.mrb[0].mxu0
        %v4908 = vadd.f32 0.0, %v4907
        %v4909 = vpop.f32.mrb[0].mxu0
        %v4910 = vpop.f32.mrb[0].mxu0
        %v4911 = vadd.f32 0.0, %v4910
        %v4912 = vpop.f32.mrb[0].mxu0
        %4913 = vmatprep.mubr.bf16.mxu0 0
        %4914 = vmatmul.mubr.bf16.gmra.mrb[0].mxu0 %v4826
        %v4915 = vpop.f32.mrb[0].mxu0
        %v4916 = vadd.f32 0.0, %v4915
        %v4917 = vpop.f32.mrb[0].mxu0
        %v4918 = vpop.f32.mrb[0].mxu0
        %v4919 = vadd.f32 0.0, %v4918
        %v4920 = vpop.f32.mrb[0].mxu0
        %4921 = vmatprep.mubr.bf16.mxu0 0
        %4922 = vmatmul.mubr.bf16.gmra.mrb[0].mxu0 %v4829
        %v4923 = vpop.f32.mrb[0].mxu0
        %v4924 = vadd.f32 0.0, %v4923
        %v4925 = vpop.f32.mrb[0].mxu0
        %v4926 = vpop.f32.mrb[0].mxu0
        %v4927 = vadd.f32 0.0, %v4926
        %v4928 = vpop.f32.mrb[0].mxu0
        %4929 = vmatprep.mubr.bf16.mxu0 0
        %4930 = vmatmul.mubr.bf16.gmra.mrb[0].mxu0 %v4832
        %v4931 = vpop.f32.mrb[0].mxu0
        %v4932 = vadd.f32 0.0, %v4931
        %v4933 = vpop.f32.mrb[0].mxu0
        %v4934 = vpop.f32.mrb[0].mxu0
        %v4935 = vadd.f32 0.0, %v4934
        %v4936 = vpop.f32.mrb[0].mxu0
        %4937 = vmatprep.mubr.bf16.mxu0 0
        %4938 = vmatmul.mubr.bf16.gmra.mrb[0].mxu0 %v4835
        %v4939 = vpop.f32.mrb[0].mxu0
        %v4940 = vadd.f32 0.0, %v4939
        %v4941 = vpop.f32.mrb[0].mxu0
        %v4942 = vpop.f32.mrb[0].mxu0
        %v4943 = vadd.f32 0.0, %v4942
        %v4944 = vpop.f32.mrb[0].mxu0
        %4945 = vmatprep.mubr.bf16.mxu0 0
        %4946 = vmatmul.mubr.bf16.gmra.mrb[0].mxu0 %v4838
        %v4947 = vpop.f32.mrb[0].mxu0
        %v4948 = vadd.f32 0.0, %v4947
        %v4949 = vpop.f32.mrb[0].mxu0
        %v4950 = vpop.f32.mrb[0].mxu0
        %v4951 = vadd.f32 0.0, %v4950
        %v4952 = vpop.f32.mrb[0].mxu0
        %4953 = vmatprep.mubr.bf16.mxu0 0
        %4954 = vmatmul.mubr.bf16.gmra.mrb[0].mxu0 %v4841
        %v4955 = vpop.f32.mrb[0].mxu0
        %v4956 = vadd.f32 0.0, %v4955
        %v4957 = vpop.f32.mrb[0].mxu0
        %v4958 = vpop.f32.mrb[0].mxu0
        %v4959 = vadd.f32 0.0, %v4958
        %v4960 = vpop.f32.mrb[0].mxu0
        %4961 = vmatprep.mubr.bf16.mxu0 0
        %4962 = vmatmul.mubr.bf16.gmra.mrb[0].mxu0 %v4844
        %v4963 = vpop.f32.mrb[0].mxu0
        %v4964 = vadd.f32 0.0, %v4963
        %v4965 = vpop.f32.mrb[0].mxu0
        %v4966 = vpop.f32.mrb[0].mxu0
        %v4967 = vadd.f32 0.0, %v4966
        %v4968 = vpop.f32.mrb[0].mxu0
        %4969 = vmatprep.mubr.bf16.mxu0 0
        %4970 = vmatmul.mubr.bf16.gmra.mrb[0].mxu0 %v4847
        %v4971 = vpop.f32.mrb[0].mxu0
        %v4972 = vadd.f32 0.0, %v4971
        %v4973 = vpop.f32.mrb[0].mxu0
        %v4974 = vpop.f32.mrb[0].mxu0
        %v4975 = vadd.f32 0.0, %v4974
        %v4976 = vpop.f32.mrb[0].mxu0
        %4977 = vmatprep.mubr.bf16.mxu0 0
        %4978 = vmatmul.mubr.bf16.gmra.mrb[0].mxu0 %v4850
        %v4979 = vpop.f32.mrb[0].mxu0
        %v4980 = vadd.f32 0.0, %v4979
        %v4981 = vpop.f32.mrb[0].mxu0
        %v4982 = vpop.f32.mrb[0].mxu0
        %v4983 = vadd.f32 0.0, %v4982
        %v4984 = vpop.f32.mrb[0].mxu0
        %4985 = vmatprep.mubr.bf16.mxu0 0
        %4986 = vmatmul.mubr.bf16.gmra.mrb[0].mxu0 %v4853
        %v4987 = vpop.f32.mrb[0].mxu0
        %v4988 = vadd.f32 0.0, %v4987
        %v4989 = vpop.f32.mrb[0].mxu0
        %v4990 = vpop.f32.mrb[0].mxu0
        %v4991 = vadd.f32 0.0, %v4990
        %v4992 = vpop.f32.mrb[0].mxu0
        %4993 = vmatprep.mubr.bf16.mxu0 0
        %4994 = vmatmul.mubr.bf16.gmra.mrb[0].mxu0 %v4856
        %v4995 = vpop.f32.mrb[0].mxu0
        %v4996 = vadd.f32 0.0, %v4995
        %v4997 = vpop.f32.mrb[0].mxu0
        %v4998 = vpop.f32.mrb[0].mxu0
        %v4999 = vadd.f32 0.0, %v4998
        %v5000 = vpop.f32.mrb[0].mxu0
        %5001 = vmatprep.mubr.bf16.mxu0 0
        %5002 = vmatmul.mubr.bf16.gmra.mrb[0].mxu0 %v4859
        %v5003 = vpop.f32.mrb[0].mxu0
        %v5004 = vadd.f32 0.0, %v5003
        %v5005 = vpop.f32.mrb[0].mxu0
        %v5006 = vpop.f32.mrb[0].mxu0
        %v5007 = vadd.f32 0.0, %v5006
        %v5008 = vpop.f32.mrb[0].mxu0
        %5009 = vmatprep.mubr.bf16.mxu0 0
        %5010 = vmatmul.mubr.bf16.gmra.mrb[0].mxu0 %v4862
        %v5011 = vpop.f32.mrb[0].mxu0
        %v5012 = vadd.f32 0.0, %v5011
        %v5013 = vpop.f32.mrb[0].mxu0
        %v5014 = vpop.f32.mrb[0].mxu0
        %v5015 = vadd.f32 0.0, %v5014
        %v5016 = vpop.f32.mrb[0].mxu0
        %5017 = vmatprep.mubr.bf16.mxu0 0
        %5018 = vmatmul.mubr.bf16.gmra.mrb[0].mxu0 %v4865
        %v5019 = vpop.f32.mrb[0].mxu0
        %v5020 = vadd.f32 0.0, %v5019
        %v5021 = vpop.f32.mrb[0].mxu0
        %v5022 = vpop.f32.mrb[0].mxu0
        %v5023 = vadd.f32 0.0, %v5022
        %v5024 = vpop.f32.mrb[0].mxu0
        %5025 = vmatprep.mubr.bf16.mxu0 0
        %5026 = vmatmul.mubr.bf16.gmra.mrb[0].mxu0 %v4868
        %v5027 = vpop.f32.mrb[0].mxu0
        %v5028 = vadd.f32 0.0, %v5027
        %v5029 = vpop.f32.mrb[0].mxu0
        %v5030 = vpop.f32.mrb[0].mxu0
        %v5031 = vadd.f32 0.0, %v5030
        %v5032 = vpop.f32.mrb[0].mxu0
        %5033 = vdwg.mxu0
        %v5034 = vadd.f32 %v4761, %v4908
        %v5035 = vadd.f32 %v4762, %v4911
        %v5036 = vadd.f32 %v4763, %v4916
        %v5037 = vadd.f32 %v4764, %v4919
        %v5038 = vadd.f32 %v4765, %v4924
        %v5039 = vadd.f32 %v4766, %v4927
        %v5040 = vadd.f32 %v4767, %v4932
        %v5041 = vadd.f32 %v4768, %v4935
        %v5042 = vadd.f32 %v4769, %v4940
        %v5043 = vadd.f32 %v4770, %v4943
        %v5044 = vadd.f32 %v4771, %v4948
        %v5045 = vadd.f32 %v4772, %v4951
        %v5046 = vadd.f32 %v4773, %v4956
        %v5047 = vadd.f32 %v4774, %v4959
        %v5048 = vadd.f32 %v4775, %v4964
        %v5049 = vadd.f32 %v4776, %v4967
        %v5050 = vadd.f32 %v4777, %v4972
        %v5051 = vadd.f32 %v4778, %v4975
        %v5052 = vadd.f32 %v4779, %v4980
        %v5053 = vadd.f32 %v4780, %v4983
        %v5054 = vadd.f32 %v4781, %v4988
        %v5055 = vadd.f32 %v4782, %v4991
        %v5056 = vadd.f32 %v4783, %v4996
        %v5057 = vadd.f32 %v4784, %v4999
        %v5058 = vadd.f32 %v4785, %v5004
        %v5059 = vadd.f32 %v4786, %v5007
        %v5060 = vadd.f32 %v4787, %v5012
        %v5061 = vadd.f32 %v4788, %v5015
        %v5062 = vadd.f32 %v4789, %v5020
        %v5063 = vadd.f32 %v4790, %v5023
        %v5064 = vadd.f32 %v4791, %v5028
        %v5065 = vadd.f32 %v4792, %v5031
        %v5066 = vld [vmem:[%s11] sm:$0x1]
        %v5068 = vlaneseq
        %v5069 = vshrl.u32 %v5068, 7
        %v5070 = vsub.s32 0, %v5069
        %v5071 = vrot.slane %v5066, %v5070
        %v5073 = vmul.f32 %v5034, %v5071
        %v5074 = vmul.f32 %v5035, %v5071
        %v5075 = vmul.f32 %v5036, %v5071
        %v5076 = vmul.f32 %v5037, %v5071
        %v5077 = vmul.f32 %v5038, %v5071
        %v5078 = vmul.f32 %v5039, %v5071
        %v5079 = vmul.f32 %v5040, %v5071
        %v5080 = vmul.f32 %v5041, %v5071
        %v5081 = vmul.f32 %v5042, %v5071
        %v5082 = vmul.f32 %v5043, %v5071
        %v5083 = vmul.f32 %v5044, %v5071
        %v5084 = vmul.f32 %v5045, %v5071
        %v5085 = vmul.f32 %v5046, %v5071
        %v5086 = vmul.f32 %v5047, %v5071
        %v5087 = vmul.f32 %v5048, %v5071
        %v5088 = vmul.f32 %v5049, %v5071
        %v5089 = vmul.f32 %v5050, %v5071
        %v5090 = vmul.f32 %v5051, %v5071
        %v5091 = vmul.f32 %v5052, %v5071
        %v5092 = vmul.f32 %v5053, %v5071
        %v5093 = vmul.f32 %v5054, %v5071
        %v5094 = vmul.f32 %v5055, %v5071
        %v5095 = vmul.f32 %v5056, %v5071
        %v5096 = vmul.f32 %v5057, %v5071
        %v5097 = vmul.f32 %v5058, %v5071
        %v5098 = vmul.f32 %v5059, %v5071
        %v5099 = vmul.f32 %v5060, %v5071
        %v5100 = vmul.f32 %v5061, %v5071
        %v5101 = vmul.f32 %v5062, %v5071
        %v5102 = vmul.f32 %v5063, %v5071
        %v5103 = vmul.f32 %v5064, %v5071
        %v5104 = vmul.f32 %v5065, %v5071
        %v5105 = vld [vmem:[%s12] sm:$0x1]
        %v5107 = vlaneseq
        %v5108 = vshrl.u32 %v5107, 7
        %v5109 = vsub.s32 0, %v5108
        %v5110 = vrot.slane %v5105, %v5109
        %v5112 = vadd.f32 %v5073, %v5110
        %v5113 = vadd.f32 %v5074, %v5110
        %v5114 = vadd.f32 %v5075, %v5110
        %v5115 = vadd.f32 %v5076, %v5110
        %v5116 = vadd.f32 %v5077, %v5110
        %v5117 = vadd.f32 %v5078, %v5110
        %v5118 = vadd.f32 %v5079, %v5110
        %v5119 = vadd.f32 %v5080, %v5110
        %v5120 = vadd.f32 %v5081, %v5110
        %v5121 = vadd.f32 %v5082, %v5110
        %v5122 = vadd.f32 %v5083, %v5110
        %v5123 = vadd.f32 %v5084, %v5110
        %v5124 = vadd.f32 %v5085, %v5110
        %v5125 = vadd.f32 %v5086, %v5110
        %v5126 = vadd.f32 %v5087, %v5110
        %v5127 = vadd.f32 %v5088, %v5110
        %v5128 = vadd.f32 %v5089, %v5110
        %v5129 = vadd.f32 %v5090, %v5110
        %v5130 = vadd.f32 %v5091, %v5110
        %v5131 = vadd.f32 %v5092, %v5110
        %v5132 = vadd.f32 %v5093, %v5110
        %v5133 = vadd.f32 %v5094, %v5110
        %v5134 = vadd.f32 %v5095, %v5110
        %v5135 = vadd.f32 %v5096, %v5110
        %v5136 = vadd.f32 %v5097, %v5110
        %v5137 = vadd.f32 %v5098, %v5110
        %v5138 = vadd.f32 %v5099, %v5110
        %v5139 = vadd.f32 %v5100, %v5110
        %v5140 = vadd.f32 %v5101, %v5110
        %v5141 = vadd.f32 %v5102, %v5110
        %v5142 = vadd.f32 %v5103, %v5110
        %v5143 = vadd.f32 %v5104, %v5110
        %v5144 = vmax.f32 %v5112, 0.0
        %v5145 = vmax.f32 %v5113, 0.0
        %v5146 = vmax.f32 %v5114, 0.0
        %v5147 = vmax.f32 %v5115, 0.0
        %v5148 = vmax.f32 %v5116, 0.0
        %v5149 = vmax.f32 %v5117, 0.0
        %v5150 = vmax.f32 %v5118, 0.0
        %v5151 = vmax.f32 %v5119, 0.0
        %v5152 = vmax.f32 %v5120, 0.0
        %v5153 = vmax.f32 %v5121, 0.0
        %v5154 = vmax.f32 %v5122, 0.0
        %v5155 = vmax.f32 %v5123, 0.0
        %v5156 = vmax.f32 %v5124, 0.0
        %v5157 = vmax.f32 %v5125, 0.0
        %v5158 = vmax.f32 %v5126, 0.0
        %v5159 = vmax.f32 %v5127, 0.0
        %v5160 = vmax.f32 %v5128, 0.0
        %v5161 = vmax.f32 %v5129, 0.0
        %v5162 = vmax.f32 %v5130, 0.0
        %v5163 = vmax.f32 %v5131, 0.0
        %v5164 = vmax.f32 %v5132, 0.0
        %v5165 = vmax.f32 %v5133, 0.0
        %v5166 = vmax.f32 %v5134, 0.0
        %v5167 = vmax.f32 %v5135, 0.0
        %v5168 = vmax.f32 %v5136, 0.0
        %v5169 = vmax.f32 %v5137, 0.0
        %v5170 = vmax.f32 %v5138, 0.0
        %v5171 = vmax.f32 %v5139, 0.0
        %v5172 = vmax.f32 %v5140, 0.0
        %v5173 = vmax.f32 %v5141, 0.0
        %v5174 = vmax.f32 %v5142, 0.0
        %v5175 = vmax.f32 %v5143, 0.0
        %5208 = vrot.lane.b32.xlu0 %v1594, 43
        %v5209 = vpop.permute.xlu0 %5208
        %5210 = vrot.lane.b32.xlu0 %v1595, 43
        %v5211 = vpop.permute.xlu0 %5210
        %5212 = vrot.lane.b32.xlu0 %v1596, 43
        %v5213 = vpop.permute.xlu0 %5212
        %5214 = vrot.lane.b32.xlu0 %v1597, 43
        %v5215 = vpop.permute.xlu0 %5214
        %5216 = vrot.lane.b32.xlu0 %v1598, 43
        %v5217 = vpop.permute.xlu0 %5216
        %5218 = vrot.lane.b32.xlu0 %v1599, 43
        %v5219 = vpop.permute.xlu0 %5218
        %5220 = vrot.lane.b32.xlu0 %v1600, 43
        %v5221 = vpop.permute.xlu0 %5220
        %5222 = vrot.lane.b32.xlu0 %v1601, 43
        %v5223 = vpop.permute.xlu0 %5222
        %5224 = vrot.lane.b32.xlu0 %v1602, 43
        %v5225 = vpop.permute.xlu0 %5224
        %5226 = vrot.lane.b32.xlu0 %v1603, 43
        %v5227 = vpop.permute.xlu0 %5226
        %5228 = vrot.lane.b32.xlu0 %v1604, 43
        %v5229 = vpop.permute.xlu0 %5228
        %5230 = vrot.lane.b32.xlu0 %v1605, 43
        %v5231 = vpop.permute.xlu0 %5230
        %5232 = vrot.lane.b32.xlu0 %v1606, 43
        %v5233 = vpop.permute.xlu0 %5232
        %5234 = vrot.lane.b32.xlu0 %v1607, 43
        %v5235 = vpop.permute.xlu0 %5234
        %5236 = vrot.lane.b32.xlu0 %v1608, 43
        %v5237 = vpop.permute.xlu0 %5236
        %5238 = vrot.lane.b32.xlu0 %v1609, 43
        %v5239 = vpop.permute.xlu0 %5238
        %5240 = vrot.lane.b32.xlu0 %v1610, 43
        %v5241 = vpop.permute.xlu0 %5240
        %5242 = vrot.lane.b32.xlu0 %v1611, 43
        %v5243 = vpop.permute.xlu0 %5242
        %5244 = vrot.lane.b32.xlu0 %v1612, 43
        %v5245 = vpop.permute.xlu0 %5244
        %5246 = vrot.lane.b32.xlu0 %v1613, 43
        %v5247 = vpop.permute.xlu0 %5246
        %5248 = vrot.lane.b32.xlu0 %v1614, 43
        %v5249 = vpop.permute.xlu0 %5248
        %5250 = vrot.lane.b32.xlu0 %v1615, 43
        %v5251 = vpop.permute.xlu0 %5250
        %5252 = vrot.lane.b32.xlu0 %v1616, 43
        %v5253 = vpop.permute.xlu0 %5252
        %5254 = vrot.lane.b32.xlu0 %v1617, 43
        %v5255 = vpop.permute.xlu0 %5254
        %5256 = vrot.lane.b32.xlu0 %v1618, 43
        %v5257 = vpop.permute.xlu0 %5256
        %5258 = vrot.lane.b32.xlu0 %v1619, 43
        %v5259 = vpop.permute.xlu0 %5258
        %5260 = vrot.lane.b32.xlu0 %v1620, 43
        %v5261 = vpop.permute.xlu0 %5260
        %5262 = vrot.lane.b32.xlu0 %v1621, 43
        %v5263 = vpop.permute.xlu0 %5262
        %5264 = vrot.lane.b32.xlu0 %v1622, 43
        %v5265 = vpop.permute.xlu0 %5264
        %5266 = vrot.lane.b32.xlu0 %v1623, 43
        %v5267 = vpop.permute.xlu0 %5266
        %5268 = vrot.lane.b32.xlu0 %v1624, 43
        %v5269 = vpop.permute.xlu0 %5268
        %5270 = vrot.lane.b32.xlu0 %v1625, 43
        %v5271 = vpop.permute.xlu0 %5270
        %5336 = vrot.lane.b32.xlu0 %v5144, 86
        %v5337 = vpop.permute.xlu0 %5336
        %5338 = vrot.lane.b32.xlu0 %v5145, 86
        %v5339 = vpop.permute.xlu0 %5338
        %5340 = vrot.lane.b32.xlu0 %v5146, 86
        %v5341 = vpop.permute.xlu0 %5340
        %5342 = vrot.lane.b32.xlu0 %v5147, 86
        %v5343 = vpop.permute.xlu0 %5342
        %5344 = vrot.lane.b32.xlu0 %v5148, 86
        %v5345 = vpop.permute.xlu0 %5344
        %5346 = vrot.lane.b32.xlu0 %v5149, 86
        %v5347 = vpop.permute.xlu0 %5346
        %5348 = vrot.lane.b32.xlu0 %v5150, 86
        %v5349 = vpop.permute.xlu0 %5348
        %5350 = vrot.lane.b32.xlu0 %v5151, 86
        %v5351 = vpop.permute.xlu0 %5350
        %5352 = vrot.lane.b32.xlu0 %v5152, 86
        %v5353 = vpop.permute.xlu0 %5352
        %5354 = vrot.lane.b32.xlu0 %v5153, 86
        %v5355 = vpop.permute.xlu0 %5354
        %5356 = vrot.lane.b32.xlu0 %v5154, 86
        %v5357 = vpop.permute.xlu0 %5356
        %5358 = vrot.lane.b32.xlu0 %v5155, 86
        %v5359 = vpop.permute.xlu0 %5358
        %5360 = vrot.lane.b32.xlu0 %v5156, 86
        %v5361 = vpop.permute.xlu0 %5360
        %5362 = vrot.lane.b32.xlu0 %v5157, 86
        %v5363 = vpop.permute.xlu0 %5362
        %5364 = vrot.lane.b32.xlu0 %v5158, 86
        %v5365 = vpop.permute.xlu0 %5364
        %5366 = vrot.lane.b32.xlu0 %v5159, 86
        %v5367 = vpop.permute.xlu0 %5366
        %5368 = vrot.lane.b32.xlu0 %v5160, 86
        %v5369 = vpop.permute.xlu0 %5368
        %5370 = vrot.lane.b32.xlu0 %v5161, 86
        %v5371 = vpop.permute.xlu0 %5370
        %5372 = vrot.lane.b32.xlu0 %v5162, 86
        %v5373 = vpop.permute.xlu0 %5372
        %5374 = vrot.lane.b32.xlu0 %v5163, 86
        %v5375 = vpop.permute.xlu0 %5374
        %5376 = vrot.lane.b32.xlu0 %v5164, 86
        %v5377 = vpop.permute.xlu0 %5376
        %5378 = vrot.lane.b32.xlu0 %v5165, 86
        %v5379 = vpop.permute.xlu0 %5378
        %5380 = vrot.lane.b32.xlu0 %v5166, 86
        %v5381 = vpop.permute.xlu0 %5380
        %5382 = vrot.lane.b32.xlu0 %v5167, 86
        %v5383 = vpop.permute.xlu0 %5382
        %5384 = vrot.lane.b32.xlu0 %v5168, 86
        %v5385 = vpop.permute.xlu0 %5384
        %5386 = vrot.lane.b32.xlu0 %v5169, 86
        %v5387 = vpop.permute.xlu0 %5386
        %5388 = vrot.lane.b32.xlu0 %v5170, 86
        %v5389 = vpop.permute.xlu0 %5388
        %5390 = vrot.lane.b32.xlu0 %v5171, 86
        %v5391 = vpop.permute.xlu0 %5390
        %5392 = vrot.lane.b32.xlu0 %v5172, 86
        %v5393 = vpop.permute.xlu0 %5392
        %5394 = vrot.lane.b32.xlu0 %v5173, 86
        %v5395 = vpop.permute.xlu0 %5394
        %5396 = vrot.lane.b32.xlu0 %v5174, 86
        %v5397 = vpop.permute.xlu0 %5396
        %5398 = vrot.lane.b32.xlu0 %v5175, 86
        %v5399 = vpop.permute.xlu0 %5398
        %vm5432 = vcmask 351232
        %v5433 = vsel %vm5432, %v1259, %v5209
        %v5434 = vsel %vm5432, %v1260, %v5211
        %v5435 = vsel %vm5432, %v1261, %v5213
        %v5436 = vsel %vm5432, %v1262, %v5215
        %v5437 = vsel %vm5432, %v1263, %v5217
        %v5438 = vsel %vm5432, %v1264, %v5219
        %v5439 = vsel %vm5432, %v1265, %v5221
        %v5440 = vsel %vm5432, %v1266, %v5223
        %v5441 = vsel %vm5432, %v1267, %v5225
        %v5442 = vsel %vm5432, %v1268, %v5227
        %v5443 = vsel %vm5432, %v1269, %v5229
        %v5444 = vsel %vm5432, %v1270, %v5231
        %v5445 = vsel %vm5432, %v1271, %v5233
        %v5446 = vsel %vm5432, %v1272, %v5235
        %v5447 = vsel %vm5432, %v1273, %v5237
        %v5448 = vsel %vm5432, %v1274, %v5239
        %v5449 = vsel %vm5432, %v1275, %v5241
        %v5450 = vsel %vm5432, %v1276, %v5243
        %v5451 = vsel %vm5432, %v1277, %v5245
        %v5452 = vsel %vm5432, %v1278, %v5247
        %v5453 = vsel %vm5432, %v1279, %v5249
        %v5454 = vsel %vm5432, %v1280, %v5251
        %v5455 = vsel %vm5432, %v1281, %v5253
        %v5456 = vsel %vm5432, %v1282, %v5255
        %v5457 = vsel %vm5432, %v1283, %v5257
        %v5458 = vsel %vm5432, %v1284, %v5259
        %v5459 = vsel %vm5432, %v1285, %v5261
        %v5460 = vsel %vm5432, %v1286, %v5263
        %v5461 = vsel %vm5432, %v1287, %v5265
        %v5462 = vsel %vm5432, %v1288, %v5267
        %v5463 = vsel %vm5432, %v1289, %v5269
        %v5464 = vsel %vm5432, %v1290, %v5271
        %vm5465 = vcmask 703488
        %v5466 = vsel %vm5465, %v5433, %v5337
        %v5467 = vsel %vm5465, %v5434, %v5339
        %v5468 = vsel %vm5465, %v5435, %v5341
        %v5469 = vsel %vm5465, %v5436, %v5343
        %v5470 = vsel %vm5465, %v5437, %v5345
        %v5471 = vsel %vm5465, %v5438, %v5347
        %v5472 = vsel %vm5465, %v5439, %v5349
        %v5473 = vsel %vm5465, %v5440, %v5351
        %v5474 = vsel %vm5465, %v5441, %v5353
        %v5475 = vsel %vm5465, %v5442, %v5355
        %v5476 = vsel %vm5465, %v5443, %v5357
        %v5477 = vsel %vm5465, %v5444, %v5359
        %v5478 = vsel %vm5465, %v5445, %v5361
        %v5479 = vsel %vm5465, %v5446, %v5363
        %v5480 = vsel %vm5465, %v5447, %v5365
        %v5481 = vsel %vm5465, %v5448, %v5367
        %v5482 = vsel %vm5465, %v5449, %v5369
        %v5483 = vsel %vm5465, %v5450, %v5371
        %v5484 = vsel %vm5465, %v5451, %v5373
        %v5485 = vsel %vm5465, %v5452, %v5375
        %v5486 = vsel %vm5465, %v5453, %v5377
        %v5487 = vsel %vm5465, %v5454, %v5379
        %v5488 = vsel %vm5465, %v5455, %v5381
        %v5489 = vsel %vm5465, %v5456, %v5383
        %v5490 = vsel %vm5465, %v5457, %v5385
        %v5491 = vsel %vm5465, %v5458, %v5387
        %v5492 = vsel %vm5465, %v5459, %v5389
        %v5493 = vsel %vm5465, %v5460, %v5391
        %v5494 = vsel %vm5465, %v5461, %v5393
        %v5495 = vsel %vm5465, %v5462, %v5395
        %v5496 = vsel %vm5465, %v5463, %v5397
        %v5497 = vsel %vm5465, %v5464, %v5399
        %5498 = vst [vmem:[%s458] sm:$0xff] %v5466
        %5499 = vst [vmem:[%s458 + $0x8] sm:$0xff] %v5467
        %5500 = vst [vmem:[%s458 + $0x10] sm:$0xff] %v5468
        %5501 = vst [vmem:[%s458 + $0x18] sm:$0xff] %v5469
        %5502 = vst [vmem:[%s458 + $0x20] sm:$0xff] %v5470
        %5503 = vst [vmem:[%s458 + $0x28] sm:$0xff] %v5471
        %5504 = vst [vmem:[%s458 + $0x30] sm:$0xff] %v5472
        %5505 = vst [vmem:[%s458 + $0x38] sm:$0xff] %v5473
        %5506 = vst [vmem:[%s458 + $0x40] sm:$0xff] %v5474
        %5507 = vst [vmem:[%s458 + $0x48] sm:$0xff] %v5475
        %5508 = vst [vmem:[%s458 + $0x50] sm:$0xff] %v5476
        %5509 = vst [vmem:[%s458 + $0x58] sm:$0xff] %v5477
        %5510 = vst [vmem:[%s458 + $0x60] sm:$0xff] %v5478
        %5511 = vst [vmem:[%s458 + $0x68] sm:$0xff] %v5479
        %5512 = vst [vmem:[%s458 + $0x70] sm:$0xff] %v5480
        %5513 = vst [vmem:[%s458 + $0x78] sm:$0xff] %v5481
        %5514 = vst [vmem:[%s458 + $0x80] sm:$0xff] %v5482
        %5515 = vst [vmem:[%s458 + $0x88] sm:$0xff] %v5483
        %5516 = vst [vmem:[%s458 + $0x90] sm:$0xff] %v5484
        %5517 = vst [vmem:[%s458 + $0x98] sm:$0xff] %v5485
        %5518 = vst [vmem:[%s458 + $0xa0] sm:$0xff] %v5486
        %5519 = vst [vmem:[%s458 + $0xa8] sm:$0xff] %v5487
        %5520 = vst [vmem:[%s458 + $0xb0] sm:$0xff] %v5488
        %5521 = vst [vmem:[%s458 + $0xb8] sm:$0xff] %v5489
        %5522 = vst [vmem:[%s458 + $0xc0] sm:$0xff] %v5490
        %5523 = vst [vmem:[%s458 + $0xc8] sm:$0xff] %v5491
        %5524 = vst [vmem:[%s458 + $0xd0] sm:$0xff] %v5492
        %5525 = vst [vmem:[%s458 + $0xd8] sm:$0xff] %v5493
        %5526 = vst [vmem:[%s458 + $0xe0] sm:$0xff] %v5494
        %5527 = vst [vmem:[%s458 + $0xe8] sm:$0xff] %v5495
        %5528 = vst [vmem:[%s458 + $0xf0] sm:$0xff] %v5496
        %5529 = vst [vmem:[%s458 + $0xf8] sm:$0xff] %v5497
        %s5530 = sand.u32 %s316, 1
        %s5531 = scalar_lea.sflag [#allocation6], %s5530
        %s5532 = sand.u32 %s316, 1
        %s5533 = smul.addr %s5532, 256
        %s5534 = scalar_lea.vmem [#allocation7], %s5533
        // Predicated region
        $region77: #{inception_forward.1} parent=71 // pred_check
          %p5535 = pneg %p326
        $region78: #{inception_forward.1} parent=71 // pred_check_branch
          %5537 = sbr.rel (%p5535) target = $region80
        $region79: #{inception_forward.1} parent=71 // pred_region
          %s5539 = ssub.s32 4096, 4096
          %5540 = vsyncadd %s5531, %s5539
          %s5541 = smul.addr %s30, 32
          %s5542 = smul.addr %s5541, 128
          %s5543 = scalar_lea.hbm %s13, %s5542
          %s5544 = sshll.u32 %s5534, 4
          %s5545 = int_to_ptr.vmem [resolvable:$true] %s5544
          %5550 = dma.vmem_to_hbm [thread:$0]  %s5545, 4096, %s5543, %s5531, 128, 128, 8
        $region80: #{inception_forward.1} parent=71 // pred_fallthru
          _
      $region72: #{inception_forward.1} parent=5 // pred_fallthru
        _
      %p5551 = scmp.le.s32.totalorder 2, %s25
      // Predicated region
      $region81: #{inception_forward.1} parent=5 // pred_check
        %p5552 = pneg %p5551
      $region82: #{inception_forward.1} parent=5 // pred_check_branch
        %5554 = sbr.rel (%p5552) target = $region84
      $region83: #{inception_forward.1} parent=5 // pred_region
        %s5555 = ssub.s32 %s25, 2
        // Predicated region
        $region85: #{inception_forward.1} parent=83 // pred_check
          %p5556 = pneg %p332
        $region86: #{inception_forward.1} parent=83 // pred_check_branch
          %5558 = sbr.rel (%p5556) target = $region88
        $region87: #{inception_forward.1} parent=83 // pred_region
          %s5559 = sand.u32 %s317, 1
          %s5560 = scalar_lea.sflag [#allocation6], %s5559
          %s5561 = sand.u32 %s317, 1
          %s5562 = smul.addr %s5561, 256
          %s5563 = scalar_lea.vmem [#allocation7], %s5562
          %5564 = dma.done %s5560, 4096
        $region88: #{inception_forward.1} parent=83 // pred_fallthru
          _
      $region84: #{inception_forward.1} parent=5 // pred_fallthru
        _
    $region6: #{inception_forward.1} parent=1 // loop_footer
      %s29 = sadd.s32 1, %s25
    $region7: #{inception_forward.1} parent=1 // loop_footer_branch
      %24 = sbr.rel target = $region3
    $region8: #{inception_forward.1} parent=1 // loop_exit
      _
    %5565 = vsyncpa [#allocation5], 1
    %s5566 = scalar_lea.sflag [#allocation5], 1
    %5567 = vsyncpa %s5566, 1
    %5568 = vsyncpa [#allocation6], 1
    %s5569 = scalar_lea.sflag [#allocation6], 1
    %5570 = vsyncpa %s5569, 1

</llo_original>
